<compile_context>
chip_gen: v5e
topology: v5e:2x2
jax: 0.10.0
libtpu: 0.0.40
codegen_flags: <defaults>
</compile_context>

<pallas_src>
import functools
import math

import jax
import jax.numpy as jnp
from jax import lax
from jax.experimental import pallas as pl
from jax.experimental.pallas import tpu as pltpu

# ----------------------------- config -----------------------------
VOCAB = 256
HIDDEN = 128
N_HEADS = 4
HEAD_DIM = HIDDEN // N_HEADS          # 32
INTERMEDIATE = 256
N_LAYERS = 2
BATCH = 2
SEQ = 8
RMS_EPS = 1e-6
NEG_INF = -1e9


# ----------------------------- fused forward kernel -----------------------------
def _fused_forward_kernel(ids_ref, mask_ref, embed_ref,
                          cos_ref, sin_hi_ref, sin_lo_ref, hm_ref,
                          ln1_ref, wqkv_ref, wo_ref,
                          ln2_ref, wgu_ref, wd_ref,
                          lnf_ref, lmh_ref, o_ref):
    B, S = mask_ref.shape
    D = HIDDEN
    I = INTERMEDIATE
    H = N_HEADS
    Dh = HEAD_DIM
    BS = B * S
    half = Dh // 2
    scale = 1.0 / math.sqrt(Dh)
    f32 = jnp.float32
    bf16 = jnp.bfloat16

    # ---- embedding gather as one-hot matmul (single MXU issue) ----
    ids = ids_ref[...]                                            # (BS, 1) i32
    vocab_iota = lax.broadcasted_iota(jnp.int32, (BS, VOCAB), 1)
    onehot = jnp.where(vocab_iota == ids, 1.0, 0.0).astype(bf16)  # (BS, V)
    x = jnp.dot(onehot, embed_ref[...], preferred_element_type=f32)   # (BS, D) f32

    # ---- one-time constants (outside the layer loop) ----
    head_mask = hm_ref[...]                                       # (H, 1, D) f32

    cos_t = jnp.broadcast_to(cos_ref[...][None], (B, S, D)).reshape(BS, D)
    sin_hi = jnp.broadcast_to(sin_hi_ref[...][None], (B, S, D)).reshape(BS, D)
    sin_lo = jnp.broadcast_to(sin_lo_ref[...][None], (B, S, D)).reshape(BS, D)

    # causal + key-padding additive bias, per batch row, tiled per head.
    row = lax.broadcasted_iota(jnp.int32, (S, S), 0)
    col = lax.broadcasted_iota(jnp.int32, (S, S), 1)
    causal = jnp.where(col <= row, 0.0, NEG_INF)                  # (S, S) f32
    maskf = mask_ref[...].astype(f32)                             # (B, S)
    biases = []
    for b in range(B):
        pad = (1.0 - maskf[b:b + 1, :]) * NEG_INF                 # (1, S)
        bias_b = causal + pad                                     # (S, S)
        biases.append(
            jnp.broadcast_to(bias_b[None], (H, S, S)).reshape(H * S, S))

    def rope(t):
        # t: (BS, H*Dh) f32; rolls stay on the XLU slot, select folded into tables.
        fwd = pltpu.roll(t, shift=half, axis=1)            # t[:, j - half]
        bwd = pltpu.roll(t, shift=D - half, axis=1)        # t[:, j + half]
        return t * cos_t + fwd * sin_hi - bwd * sin_lo

    def rmsnorm(t, w):
        var = jnp.mean(t * t, axis=-1, keepdims=True)
        return (t * lax.rsqrt(var + RMS_EPS)) * w

    for l in range(N_LAYERS):                              # static unroll
        # --- self-attention block ---
        h = rmsnorm(x, ln1_ref[l])
        qkv = jnp.dot(h.astype(bf16), wqkv_ref[l],
                      preferred_element_type=f32)          # (BS, 3D)
        q = rope(qkv[:, 0:D])
        k = rope(qkv[:, D:2 * D])
        v = qkv[:, 2 * D:3 * D]

        ctx_rows = []
        for b in range(B):                                 # static 2-iteration loop
            sl = slice(b * S, (b + 1) * S)
            qb, kb, vb = q[sl], k[sl], v[sl]               # (S, D) f32
            # replicate q per head and zero other heads' lanes -> (H*S, D)
            q_exp = (qb[None] * head_mask).reshape(H * S, D).astype(bf16)
            # all-head scores in ONE matmul: (H*S, D) x (S, D)^T -> (H*S, S)
            s = lax.dot_general(q_exp, kb.astype(bf16),
                                (((1,), (1,)), ((), ())),
                                preferred_element_type=f32) * scale
            s = s + biases[b]
            m = jnp.max(s, axis=-1, keepdims=True)
            p = jnp.exp(s - m)
            denom = jnp.sum(p, axis=-1, keepdims=True)
            p = p * pl.reciprocal(denom, approx=True)
            # all-head context in ONE matmul: (H*S, S) x (S, D) -> (H*S, D)
            ctx_all = jnp.dot(p.astype(bf16), vb.astype(bf16),
                              preferred_element_type=f32)
            # pick each head's own lane block -> (S, D) lane-dense, no concat
            ctx = jnp.sum(ctx_all.reshape(H, S, D) * head_mask, axis=0)
            ctx_rows.append(ctx)
        attn = jnp.concatenate(ctx_rows, axis=0)           # (BS, D)
        x = x + jnp.dot(attn.astype(bf16), wo_ref[l],
                        preferred_element_type=f32)

        # --- SwiGLU MLP block ---
        h2 = rmsnorm(x, ln2_ref[l])
        gu = jnp.dot(h2.astype(bf16), wgu_ref[l],
                     preferred_element_type=f32)           # (BS, 2I)
        g = gu[:, :I]
        u = gu[:, I:]
        mlp = (g * (1.0 / (1.0 + jnp.exp(-g)))) * u        # SiLU in f32 (v5e-safe)
        x = x + jnp.dot(mlp.astype(bf16), wd_ref[l],
                        preferred_element_type=f32)

    hf = rmsnorm(x, lnf_ref[...])
    logits = jnp.dot(hf.astype(bf16), lmh_ref[...],
                     preferred_element_type=f32)           # (BS, V)
    o_ref[...] = logits.reshape(B, S, VOCAB)


def fused_forward(ids_flat, mask, p):
    B, S = mask.shape
    BS = B * S
    D, I, H, V, L = HIDDEN, INTERMEDIATE, N_HEADS, VOCAB, N_LAYERS

    args = (ids_flat, mask, p["embed"], p["cos"], p["sin_hi"], p["sin_lo"],
            p["head_mask"], p["ln1"], p["wqkv"], p["wo"], p["ln2"], p["wgu"],
            p["wd"], p["ln_f"], p["lm_head"])

    flops = 2 * BS * V * D                                     # embedding one-hot matmul
    flops += L * (2 * BS * D * 3 * D                           # qkv
                  + B * (2 * H * S * D * S + 2 * H * S * S * D)  # scores + context
                  + 2 * BS * D * D                             # wo
                  + 2 * BS * D * 2 * I                         # gate+up
                  + 2 * BS * I * D)                            # down
    flops += 2 * BS * D * V                                    # lm head
    transcendentals = L * (B * H * S * S + BS * I) + (2 * L + 1) * BS
    bytes_accessed = sum(int(a.size) * a.dtype.itemsize for a in args) + BS * V * 4

    def _full(a):
        return pl.BlockSpec(a.shape, lambda i, _nd=a.ndim: (0,) * _nd)

    return pl.pallas_call(
        _fused_forward_kernel,
        out_shape=jax.ShapeDtypeStruct((B, S, VOCAB), jnp.float32),
        grid=(1,),
        in_specs=[_full(a) for a in args],
        out_specs=pl.BlockSpec((B, S, VOCAB), lambda i: (0, 0, 0)),
        compiler_params=pltpu.CompilerParams(
            dimension_semantics=("arbitrary",)),
        cost_estimate=pl.CostEstimate(flops=flops,
                                      transcendentals=transcendentals,
                                      bytes_accessed=bytes_accessed),
    )(*args)


# ----------------------------- host-side constants -----------------------------
def rope_tables(seq_len, head_dim, n_heads, base=10000.0):
    """cos / sign-folded sin tables tiled per head on the flat (S, H*Dh) layout."""
    half = head_dim // 2
    inv_freq = 1.0 / (base ** (jnp.arange(0, head_dim, 2, dtype=jnp.float32) / head_dim))
    t = jnp.arange(seq_len, dtype=jnp.float32)
    freqs = jnp.outer(t, inv_freq)                       # (S, Dh/2)
    emb = jnp.concatenate([freqs, freqs], axis=-1)       # (S, Dh)
    cos = jnp.cos(emb)
    sin = jnp.sin(emb)
    lane = jnp.arange(head_dim)
    sin_hi = jnp.where(lane >= half, sin, 0.0)           # pairs with roll(+half)
    sin_lo = jnp.where(lane < half, sin, 0.0)            # pairs with roll(-half), negated

    def tile(a):
        return jnp.tile(a, (1, n_heads)).astype(jnp.float32)

    return tile(cos), tile(sin_hi), tile(sin_lo)


def init_params(key):
    def dense(k, shape, scale=0.02):
        return scale * jax.random.normal(k, shape, dtype=jnp.float32)

    keys = jax.random.split(key, 2 + N_LAYERS)
    embed = dense(keys[0], (VOCAB, HIDDEN)).astype(jnp.bfloat16)
    lm_head = dense(keys[1], (HIDDEN, VOCAB)).astype(jnp.bfloat16)

    wqkv, wo, wgu, wd = [], [], [], []
    for i in range(N_LAYERS):
        lk = jax.random.split(keys[2 + i], 7)
        wq = dense(lk[0], (HIDDEN, HIDDEN))
        wk = dense(lk[1], (HIDDEN, HIDDEN))
        wv = dense(lk[2], (HIDDEN, HIDDEN))
        wqkv.append(jnp.concatenate([wq, wk, wv], axis=1))       # (D, 3D)
        wo.append(dense(lk[3], (HIDDEN, HIDDEN)))
        wg = dense(lk[4], (HIDDEN, INTERMEDIATE))
        wu = dense(lk[5], (HIDDEN, INTERMEDIATE))
        wgu.append(jnp.concatenate([wg, wu], axis=1))            # (D, 2I)
        wd.append(dense(lk[6], (INTERMEDIATE, HIDDEN)))

    cos_t, sin_hi, sin_lo = rope_tables(SEQ, HEAD_DIM, N_HEADS)
    head_mask = (jnp.arange(HIDDEN)[None, None, :] // HEAD_DIM
                 == jnp.arange(N_HEADS)[:, None, None]).astype(jnp.float32)  # (H,1,D)

    return {
        "embed": embed,                                           # bf16 MXU operand
        "lm_head": lm_head,                                       # bf16 MXU operand
        "ln_f": jnp.ones((1, HIDDEN), jnp.float32),
        "ln1": jnp.ones((N_LAYERS, 1, HIDDEN), jnp.float32),
        "ln2": jnp.ones((N_LAYERS, 1, HIDDEN), jnp.float32),
        "wqkv": jnp.stack(wqkv).astype(jnp.bfloat16),
        "wo": jnp.stack(wo).astype(jnp.bfloat16),
        "wgu": jnp.stack(wgu).astype(jnp.bfloat16),
        "wd": jnp.stack(wd).astype(jnp.bfloat16),
        "cos": cos_t, "sin_hi": sin_hi, "sin_lo": sin_lo,
        "head_mask": head_mask,
    }


# ----------------------------- forward -----------------------------
def advanced_model_forward(params, input_ids, attention_mask):
    """input_ids: (B, S) int32, attention_mask: (B, S) int -> logits (B, S, V)."""
    B, S = input_ids.shape
    ids_flat = input_ids.reshape(B * S, 1).astype(jnp.int32)
    return fused_forward(ids_flat, attention_mask.astype(jnp.int32), params)


# TODO(synk): tokenizer loading / generate_text (sampling loop) from the
# original module have no Pallas equivalent and are out of scope here.

if __name__ == "__main__":
    root = jax.random.PRNGKey(0)
    kp, ki = jax.random.split(root)
    params = init_params(kp)

    input_ids = jax.random.randint(ki, (BATCH, SEQ), 0, VOCAB, dtype=jnp.int32)
    attention_mask = jnp.array(
        [[1] * SEQ, [1] * (SEQ - 2) + [0, 0]], dtype=jnp.int32)   # batch 1 padded

    fwd = jax.jit(functools.partial(advanced_model_forward, params))
    logits = fwd(input_ids, attention_mask)
    jax.block_until_ready(logits)

    assert logits.shape == (BATCH, SEQ, VOCAB)
    assert logits.dtype == jnp.float32
    assert bool(jnp.all(jnp.isfinite(logits)))
    print("KERNEL_OK")
</pallas_src>

<mosaic_0001>
module attributes {stable_mosaic.version = 11 : i64} {
  func.func @_fused_forward_kernel(%arg0: i32, %arg1: memref<16x1xi32, #tpu.memory_space<vmem>>, %arg2: memref<2x8xi32, #tpu.memory_space<vmem>>, %arg3: memref<256x128xbf16, #tpu.memory_space<vmem>>, %arg4: memref<8x128xf32, #tpu.memory_space<vmem>>, %arg5: memref<8x128xf32, #tpu.memory_space<vmem>>, %arg6: memref<8x128xf32, #tpu.memory_space<vmem>>, %arg7: memref<4x1x128xf32, #tpu.memory_space<vmem>>, %arg8: memref<2x1x128xf32, #tpu.memory_space<vmem>>, %arg9: memref<2x128x384xbf16, #tpu.memory_space<vmem>>, %arg10: memref<2x128x128xbf16, #tpu.memory_space<vmem>>, %arg11: memref<2x1x128xf32, #tpu.memory_space<vmem>>, %arg12: memref<2x128x512xbf16, #tpu.memory_space<vmem>>, %arg13: memref<2x256x128xbf16, #tpu.memory_space<vmem>>, %arg14: memref<1x128xf32, #tpu.memory_space<vmem>>, %arg15: memref<128x256xbf16, #tpu.memory_space<vmem>>, %arg16: memref<2x8x256xf32, #tpu.memory_space<vmem>>) attributes {dimension_semantics = [#tpu.dimension_semantics<arbitrary>], iteration_bounds = array<i64: 1>, scalar_prefetch = 0 : i64, scratch_operands = 0 : i64, tpu.core_type = #tpu.core_type<tc>, window_params = [{pipeline_mode = #tpu.pipeline_mode<synchronous>, transform_indices = @transform_0, window_bounds = array<i64: 16, 1>}, {pipeline_mode = #tpu.pipeline_mode<synchronous>, transform_indices = @transform_1, window_bounds = array<i64: 2, 8>}, {pipeline_mode = #tpu.pipeline_mode<synchronous>, transform_indices = @transform_2, window_bounds = array<i64: 256, 128>}, {pipeline_mode = #tpu.pipeline_mode<synchronous>, transform_indices = @transform_3, window_bounds = array<i64: 8, 128>}, {pipeline_mode = #tpu.pipeline_mode<synchronous>, transform_indices = @transform_4, window_bounds = array<i64: 8, 128>}, {pipeline_mode = #tpu.pipeline_mode<synchronous>, transform_indices = @transform_5, window_bounds = array<i64: 8, 128>}, {pipeline_mode = #tpu.pipeline_mode<synchronous>, transform_indices = @transform_6, window_bounds = array<i64: 4, 1, 128>}, {pipeline_mode = #tpu.pipeline_mode<synchronous>, transform_indices = @transform_7, window_bounds = array<i64: 2, 1, 128>}, {pipeline_mode = #tpu.pipeline_mode<synchronous>, transform_indices = @transform_8, window_bounds = array<i64: 2, 128, 384>}, {pipeline_mode = #tpu.pipeline_mode<synchronous>, transform_indices = @transform_9, window_bounds = array<i64: 2, 128, 128>}, {pipeline_mode = #tpu.pipeline_mode<synchronous>, transform_indices = @transform_10, window_bounds = array<i64: 2, 1, 128>}, {pipeline_mode = #tpu.pipeline_mode<synchronous>, transform_indices = @transform_11, window_bounds = array<i64: 2, 128, 512>}, {pipeline_mode = #tpu.pipeline_mode<synchronous>, transform_indices = @transform_12, window_bounds = array<i64: 2, 256, 128>}, {pipeline_mode = #tpu.pipeline_mode<synchronous>, transform_indices = @transform_13, window_bounds = array<i64: 1, 128>}, {pipeline_mode = #tpu.pipeline_mode<synchronous>, transform_indices = @transform_14, window_bounds = array<i64: 128, 256>}, {pipeline_mode = #tpu.pipeline_mode<synchronous>, transform_indices = @transform_15, window_bounds = array<i64: 2, 8, 256>}]} {
    %c0 = arith.constant 0 : index
    %c0_0 = arith.constant 0 : index
    %0 = vector.load %arg1[%c0, %c0_0] : memref<16x1xi32, #tpu.memory_space<vmem>>, vector<16x1xi32>
    %1 = tpu.iota {dimensions = array<i32: 1>} : vector<16x256xi32>
    %2 = vector.broadcast %0 : vector<16x1xi32> to vector<16x256xi32>
    %3 = arith.cmpi eq, %1, %2 : vector<16x256xi32>
    %cst = arith.constant 1.000000e+00 : f32
    %cst_1 = arith.constant 0.000000e+00 : f32
    %4 = vector.broadcast %cst : f32 to vector<16x256xf32>
    %5 = vector.broadcast %cst_1 : f32 to vector<16x256xf32>
    %6 = arith.select %3, %4, %5 : vector<16x256xi1>, vector<16x256xf32>
    %7 = arith.truncf %6 : vector<16x256xf32> to vector<16x256xbf16>
    %c0_2 = arith.constant 0 : index
    %c0_3 = arith.constant 0 : index
    %8 = vector.load %arg3[%c0_2, %c0_3] : memref<256x128xbf16, #tpu.memory_space<vmem>>, vector<256x128xbf16>
    %cst_4 = arith.constant dense<0.000000e+00> : vector<16x128xf32>
    %9 = tpu.matmul %7, %8, %cst_4 {dimension_numbers = #tpu.dot_dimension_numbers<[1], [0], [0], [1], [0, 0, 1, 1], [], []>} : vector<16x256xbf16>, vector<256x128xbf16>, vector<16x128xf32> -> vector<16x128xf32>
    %c0_5 = arith.constant 0 : index
    %c0_6 = arith.constant 0 : index
    %c0_7 = arith.constant 0 : index
    %10 = vector.load %arg7[%c0_5, %c0_6, %c0_7] : memref<4x1x128xf32, #tpu.memory_space<vmem>>, vector<4x1x128xf32>
    %c0_8 = arith.constant 0 : index
    %c0_9 = arith.constant 0 : index
    %11 = vector.load %arg4[%c0_8, %c0_9] : memref<8x128xf32, #tpu.memory_space<vmem>>, vector<8x128xf32>
    %12 = vector.shape_cast %11 : vector<8x128xf32> to vector<1x8x128xf32>
    %13 = vector.shape_cast %12 : vector<1x8x128xf32> to vector<1x8x128xf32>
    %14 = vector.broadcast %13 : vector<1x8x128xf32> to vector<2x8x128xf32>
    %15 = vector.shape_cast %14 : vector<2x8x128xf32> to vector<16x128xf32>
    %c0_10 = arith.constant 0 : index
    %c0_11 = arith.constant 0 : index
    %16 = vector.load %arg5[%c0_10, %c0_11] : memref<8x128xf32, #tpu.memory_space<vmem>>, vector<8x128xf32>
    %17 = vector.shape_cast %16 : vector<8x128xf32> to vector<1x8x128xf32>
    %18 = vector.shape_cast %17 : vector<1x8x128xf32> to vector<1x8x128xf32>
    %19 = vector.broadcast %18 : vector<1x8x128xf32> to vector<2x8x128xf32>
    %20 = vector.shape_cast %19 : vector<2x8x128xf32> to vector<16x128xf32>
    %c0_12 = arith.constant 0 : index
    %c0_13 = arith.constant 0 : index
    %21 = vector.load %arg6[%c0_12, %c0_13] : memref<8x128xf32, #tpu.memory_space<vmem>>, vector<8x128xf32>
    %22 = vector.shape_cast %21 : vector<8x128xf32> to vector<1x8x128xf32>
    %23 = vector.shape_cast %22 : vector<1x8x128xf32> to vector<1x8x128xf32>
    %24 = vector.broadcast %23 : vector<1x8x128xf32> to vector<2x8x128xf32>
    %25 = vector.shape_cast %24 : vector<2x8x128xf32> to vector<16x128xf32>
    %26 = tpu.iota {dimensions = array<i32: 0>} : vector<8x8xi32>
    %27 = tpu.iota {dimensions = array<i32: 1>} : vector<8x8xi32>
    %28 = arith.cmpi sle, %27, %26 : vector<8x8xi32>
    %cst_14 = arith.constant 0.000000e+00 : f32
    %cst_15 = arith.constant -1.000000e+09 : f32
    %29 = vector.broadcast %cst_14 : f32 to vector<8x8xf32>
    %30 = vector.broadcast %cst_15 : f32 to vector<8x8xf32>
    %31 = arith.select %28, %29, %30 : vector<8x8xi1>, vector<8x8xf32>
    %c0_16 = arith.constant 0 : index
    %c0_17 = arith.constant 0 : index
    %32 = vector.load %arg2[%c0_16, %c0_17] : memref<2x8xi32, #tpu.memory_space<vmem>>, vector<2x8xi32>
    %33 = arith.sitofp %32 : vector<2x8xi32> to vector<2x8xf32>
    %34 = vector.extract_strided_slice %33 {offsets = [0, 0], sizes = [1, 8], strides = [1, 1]} : vector<2x8xf32> to vector<1x8xf32>
    %cst_18 = arith.constant 1.000000e+00 : f32
    %35 = vector.broadcast %cst_18 : f32 to vector<1x8xf32>
    %36 = arith.subf %35, %34 : vector<1x8xf32>
    %cst_19 = arith.constant -1.000000e+09 : f32
    %37 = vector.broadcast %cst_19 : f32 to vector<1x8xf32>
    %38 = arith.mulf %36, %37 : vector<1x8xf32>
    %39 = vector.broadcast %38 : vector<1x8xf32> to vector<8x8xf32>
    %40 = arith.addf %31, %39 : vector<8x8xf32>
    %41 = vector.shape_cast %40 : vector<8x8xf32> to vector<1x8x8xf32>
    %42 = vector.shape_cast %41 : vector<1x8x8xf32> to vector<1x8x8xf32>
    %43 = vector.broadcast %42 : vector<1x8x8xf32> to vector<4x8x8xf32>
    %44 = vector.shape_cast %43 : vector<4x8x8xf32> to vector<32x8xf32>
    %45 = vector.extract_strided_slice %33 {offsets = [1, 0], sizes = [1, 8], strides = [1, 1]} : vector<2x8xf32> to vector<1x8xf32>
    %cst_20 = arith.constant 1.000000e+00 : f32
    %46 = vector.broadcast %cst_20 : f32 to vector<1x8xf32>
    %47 = arith.subf %46, %45 : vector<1x8xf32>
    %cst_21 = arith.constant -1.000000e+09 : f32
    %48 = vector.broadcast %cst_21 : f32 to vector<1x8xf32>
    %49 = arith.mulf %47, %48 : vector<1x8xf32>
    %50 = vector.broadcast %49 : vector<1x8xf32> to vector<8x8xf32>
    %51 = arith.addf %31, %50 : vector<8x8xf32>
    %52 = vector.shape_cast %51 : vector<8x8xf32> to vector<1x8x8xf32>
    %53 = vector.shape_cast %52 : vector<1x8x8xf32> to vector<1x8x8xf32>
    %54 = vector.broadcast %53 : vector<1x8x8xf32> to vector<4x8x8xf32>
    %55 = vector.shape_cast %54 : vector<4x8x8xf32> to vector<32x8xf32>
    %c0_22 = arith.constant 0 : index
    %c0_23 = arith.constant 0 : index
    %c0_24 = arith.constant 0 : index
    %56 = vector.load %arg8[%c0_22, %c0_23, %c0_24] : memref<2x1x128xf32, #tpu.memory_space<vmem>>, vector<1x1x128xf32>
    %57 = vector.shape_cast %56 : vector<1x1x128xf32> to vector<1x128xf32>
    %58 = arith.mulf %9, %9 : vector<16x128xf32>
    %cst_25 = arith.constant dense<0.000000e+00> : vector<16xf32>
    %59 = vector.multi_reduction <add>, %58, %cst_25 [1] : vector<16x128xf32> to vector<16xf32>
    %60 = vector.shape_cast %59 : vector<16xf32> to vector<16x1xf32>
    %cst_26 = arith.constant 1.280000e+02 : f32
    %61 = vector.broadcast %cst_26 : f32 to vector<16x1xf32>
    %62 = arith.divf %60, %61 : vector<16x1xf32>
    %cst_27 = arith.constant 9.99999997E-7 : f32
    %63 = vector.broadcast %cst_27 : f32 to vector<16x1xf32>
    %64 = arith.addf %62, %63 : vector<16x1xf32>
    %65 = math.rsqrt %64 : vector<16x1xf32>
    %66 = vector.broadcast %65 : vector<16x1xf32> to vector<16x128xf32>
    %67 = arith.mulf %9, %66 : vector<16x128xf32>
    %68 = vector.broadcast %57 : vector<1x128xf32> to vector<16x128xf32>
    %69 = arith.mulf %67, %68 : vector<16x128xf32>
    %70 = arith.truncf %69 : vector<16x128xf32> to vector<16x128xbf16>
    %c0_28 = arith.constant 0 : index
    %c0_29 = arith.constant 0 : index
    %c0_30 = arith.constant 0 : index
    %71 = vector.load %arg9[%c0_28, %c0_29, %c0_30] : memref<2x128x384xbf16, #tpu.memory_space<vmem>>, vector<1x128x384xbf16>
    %72 = vector.shape_cast %71 : vector<1x128x384xbf16> to vector<128x384xbf16>
    %cst_31 = arith.constant dense<0.000000e+00> : vector<16x384xf32>
    %73 = tpu.matmul %70, %72, %cst_31 {dimension_numbers = #tpu.dot_dimension_numbers<[1], [0], [0], [1], [0, 0, 1, 1], [], []>} : vector<16x128xbf16>, vector<128x384xbf16>, vector<16x384xf32> -> vector<16x384xf32>
    %74 = vector.extract_strided_slice %73 {offsets = [0, 0], sizes = [16, 128], strides = [1, 1]} : vector<16x384xf32> to vector<16x128xf32>
    %c16_i32 = arith.constant 16 : i32
    %75 = tpu.dynamic_rotate %74 by %c16_i32 dim 1 : vector<16x128xf32>, i32 -> vector<16x128xf32>
    %c112_i32 = arith.constant 112 : i32
    %76 = tpu.dynamic_rotate %74 by %c112_i32 dim 1 : vector<16x128xf32>, i32 -> vector<16x128xf32>
    %77 = arith.mulf %74, %15 : vector<16x128xf32>
    %78 = arith.mulf %75, %20 : vector<16x128xf32>
    %79 = arith.addf %77, %78 : vector<16x128xf32>
    %80 = arith.mulf %76, %25 : vector<16x128xf32>
    %81 = arith.subf %79, %80 : vector<16x128xf32>
    %82 = vector.extract_strided_slice %73 {offsets = [0, 128], sizes = [16, 128], strides = [1, 1]} : vector<16x384xf32> to vector<16x128xf32>
    %c16_i32_32 = arith.constant 16 : i32
    %83 = tpu.dynamic_rotate %82 by %c16_i32_32 dim 1 : vector<16x128xf32>, i32 -> vector<16x128xf32>
    %c112_i32_33 = arith.constant 112 : i32
    %84 = tpu.dynamic_rotate %82 by %c112_i32_33 dim 1 : vector<16x128xf32>, i32 -> vector<16x128xf32>
    %85 = arith.mulf %82, %15 : vector<16x128xf32>
    %86 = arith.mulf %83, %20 : vector<16x128xf32>
    %87 = arith.addf %85, %86 : vector<16x128xf32>
    %88 = arith.mulf %84, %25 : vector<16x128xf32>
    %89 = arith.subf %87, %88 : vector<16x128xf32>
    %90 = vector.extract_strided_slice %73 {offsets = [0, 256], sizes = [16, 128], strides = [1, 1]} : vector<16x384xf32> to vector<16x128xf32>
    %91 = vector.extract_strided_slice %81 {offsets = [0, 0], sizes = [8, 128], strides = [1, 1]} : vector<16x128xf32> to vector<8x128xf32>
    %92 = vector.extract_strided_slice %89 {offsets = [0, 0], sizes = [8, 128], strides = [1, 1]} : vector<16x128xf32> to vector<8x128xf32>
    %93 = vector.extract_strided_slice %90 {offsets = [0, 0], sizes = [8, 128], strides = [1, 1]} : vector<16x128xf32> to vector<8x128xf32>
    %94 = vector.shape_cast %91 : vector<8x128xf32> to vector<1x8x128xf32>
    %95 = vector.broadcast %94 : vector<1x8x128xf32> to vector<4x8x128xf32>
    %96 = vector.broadcast %10 : vector<4x1x128xf32> to vector<4x8x128xf32>
    %97 = arith.mulf %95, %96 : vector<4x8x128xf32>
    %98 = vector.shape_cast %97 : vector<4x8x128xf32> to vector<32x128xf32>
    %99 = arith.truncf %98 : vector<32x128xf32> to vector<32x128xbf16>
    %100 = arith.truncf %92 : vector<8x128xf32> to vector<8x128xbf16>
    %cst_34 = arith.constant dense<0.000000e+00> : vector<32x8xf32>
    %101 = tpu.matmul %99, %100, %cst_34 {dimension_numbers = #tpu.dot_dimension_numbers<[1], [1], [0], [0], [0, 0, 1, 0], [], []>} : vector<32x128xbf16>, vector<8x128xbf16>, vector<32x8xf32> -> vector<32x8xf32>
    %cst_35 = arith.constant 0.176776692 : f32
    %102 = vector.broadcast %cst_35 : f32 to vector<32x8xf32>
    %103 = arith.mulf %101, %102 : vector<32x8xf32>
    %104 = arith.addf %103, %44 : vector<32x8xf32>
    %cst_36 = arith.constant dense<0xFF800000> : vector<32xf32>
    %105 = vector.multi_reduction <maximumf>, %104, %cst_36 [1] : vector<32x8xf32> to vector<32xf32>
    %106 = vector.shape_cast %105 : vector<32xf32> to vector<32x1xf32>
    %107 = vector.broadcast %106 : vector<32x1xf32> to vector<32x8xf32>
    %108 = arith.subf %104, %107 : vector<32x8xf32>
    %109 = math.exp %108 : vector<32x8xf32>
    %cst_37 = arith.constant dense<0.000000e+00> : vector<32xf32>
    %110 = vector.multi_reduction <add>, %109, %cst_37 [1] : vector<32x8xf32> to vector<32xf32>
    %111 = vector.shape_cast %110 : vector<32xf32> to vector<32x1xf32>
    %112 = tpu.reciprocal %111 {approx = true} : vector<32x1xf32> -> vector<32x1xf32>
    %113 = vector.broadcast %112 : vector<32x1xf32> to vector<32x8xf32>
    %114 = arith.mulf %109, %113 : vector<32x8xf32>
    %115 = arith.truncf %114 : vector<32x8xf32> to vector<32x8xbf16>
    %116 = arith.truncf %93 : vector<8x128xf32> to vector<8x128xbf16>
    %cst_38 = arith.constant dense<0.000000e+00> : vector<32x128xf32>
    %117 = tpu.matmul %115, %116, %cst_38 {dimension_numbers = #tpu.dot_dimension_numbers<[1], [0], [0], [1], [0, 0, 1, 1], [], []>} : vector<32x8xbf16>, vector<8x128xbf16>, vector<32x128xf32> -> vector<32x128xf32>
    %118 = vector.shape_cast %117 : vector<32x128xf32> to vector<4x8x128xf32>
    %119 = vector.broadcast %10 : vector<4x1x128xf32> to vector<4x8x128xf32>
    %120 = arith.mulf %118, %119 : vector<4x8x128xf32>
    %cst_39 = arith.constant dense<0.000000e+00> : vector<8x128xf32>
    %121 = vector.multi_reduction <add>, %120, %cst_39 [0] : vector<4x8x128xf32> to vector<8x128xf32>
    %122 = vector.extract_strided_slice %81 {offsets = [8, 0], sizes = [8, 128], strides = [1, 1]} : vector<16x128xf32> to vector<8x128xf32>
    %123 = vector.extract_strided_slice %89 {offsets = [8, 0], sizes = [8, 128], strides = [1, 1]} : vector<16x128xf32> to vector<8x128xf32>
    %124 = vector.extract_strided_slice %90 {offsets = [8, 0], sizes = [8, 128], strides = [1, 1]} : vector<16x128xf32> to vector<8x128xf32>
    %125 = vector.shape_cast %122 : vector<8x128xf32> to vector<1x8x128xf32>
    %126 = vector.broadcast %125 : vector<1x8x128xf32> to vector<4x8x128xf32>
    %127 = vector.broadcast %10 : vector<4x1x128xf32> to vector<4x8x128xf32>
    %128 = arith.mulf %126, %127 : vector<4x8x128xf32>
    %129 = vector.shape_cast %128 : vector<4x8x128xf32> to vector<32x128xf32>
    %130 = arith.truncf %129 : vector<32x128xf32> to vector<32x128xbf16>
    %131 = arith.truncf %123 : vector<8x128xf32> to vector<8x128xbf16>
    %cst_40 = arith.constant dense<0.000000e+00> : vector<32x8xf32>
    %132 = tpu.matmul %130, %131, %cst_40 {dimension_numbers = #tpu.dot_dimension_numbers<[1], [1], [0], [0], [0, 0, 1, 0], [], []>} : vector<32x128xbf16>, vector<8x128xbf16>, vector<32x8xf32> -> vector<32x8xf32>
    %cst_41 = arith.constant 0.176776692 : f32
    %133 = vector.broadcast %cst_41 : f32 to vector<32x8xf32>
    %134 = arith.mulf %132, %133 : vector<32x8xf32>
    %135 = arith.addf %134, %55 : vector<32x8xf32>
    %cst_42 = arith.constant dense<0xFF800000> : vector<32xf32>
    %136 = vector.multi_reduction <maximumf>, %135, %cst_42 [1] : vector<32x8xf32> to vector<32xf32>
    %137 = vector.shape_cast %136 : vector<32xf32> to vector<32x1xf32>
    %138 = vector.broadcast %137 : vector<32x1xf32> to vector<32x8xf32>
    %139 = arith.subf %135, %138 : vector<32x8xf32>
    %140 = math.exp %139 : vector<32x8xf32>
    %cst_43 = arith.constant dense<0.000000e+00> : vector<32xf32>
    %141 = vector.multi_reduction <add>, %140, %cst_43 [1] : vector<32x8xf32> to vector<32xf32>
    %142 = vector.shape_cast %141 : vector<32xf32> to vector<32x1xf32>
    %143 = tpu.reciprocal %142 {approx = true} : vector<32x1xf32> -> vector<32x1xf32>
    %144 = vector.broadcast %143 : vector<32x1xf32> to vector<32x8xf32>
    %145 = arith.mulf %140, %144 : vector<32x8xf32>
    %146 = arith.truncf %145 : vector<32x8xf32> to vector<32x8xbf16>
    %147 = arith.truncf %124 : vector<8x128xf32> to vector<8x128xbf16>
    %cst_44 = arith.constant dense<0.000000e+00> : vector<32x128xf32>
    %148 = tpu.matmul %146, %147, %cst_44 {dimension_numbers = #tpu.dot_dimension_numbers<[1], [0], [0], [1], [0, 0, 1, 1], [], []>} : vector<32x8xbf16>, vector<8x128xbf16>, vector<32x128xf32> -> vector<32x128xf32>
    %149 = vector.shape_cast %148 : vector<32x128xf32> to vector<4x8x128xf32>
    %150 = vector.broadcast %10 : vector<4x1x128xf32> to vector<4x8x128xf32>
    %151 = arith.mulf %149, %150 : vector<4x8x128xf32>
    %cst_45 = arith.constant dense<0.000000e+00> : vector<8x128xf32>
    %152 = vector.multi_reduction <add>, %151, %cst_45 [0] : vector<4x8x128xf32> to vector<8x128xf32>
    %153 = tpu.concatenate %121, %152 in 0 : vector<8x128xf32>, vector<8x128xf32> -> vector<16x128xf32>
    %154 = arith.truncf %153 : vector<16x128xf32> to vector<16x128xbf16>
    %c0_46 = arith.constant 0 : index
    %c0_47 = arith.constant 0 : index
    %c0_48 = arith.constant 0 : index
    %155 = vector.load %arg10[%c0_46, %c0_47, %c0_48] : memref<2x128x128xbf16, #tpu.memory_space<vmem>>, vector<1x128x128xbf16>
    %156 = vector.shape_cast %155 : vector<1x128x128xbf16> to vector<128x128xbf16>
    %cst_49 = arith.constant dense<0.000000e+00> : vector<16x128xf32>
    %157 = tpu.matmul %154, %156, %cst_49 {dimension_numbers = #tpu.dot_dimension_numbers<[1], [0], [0], [1], [0, 0, 1, 1], [], []>} : vector<16x128xbf16>, vector<128x128xbf16>, vector<16x128xf32> -> vector<16x128xf32>
    %158 = arith.addf %9, %157 : vector<16x128xf32>
    %c0_50 = arith.constant 0 : index
    %c0_51 = arith.constant 0 : index
    %c0_52 = arith.constant 0 : index
    %159 = vector.load %arg11[%c0_50, %c0_51, %c0_52] : memref<2x1x128xf32, #tpu.memory_space<vmem>>, vector<1x1x128xf32>
    %160 = vector.shape_cast %159 : vector<1x1x128xf32> to vector<1x128xf32>
    %161 = arith.mulf %158, %158 : vector<16x128xf32>
    %cst_53 = arith.constant dense<0.000000e+00> : vector<16xf32>
    %162 = vector.multi_reduction <add>, %161, %cst_53 [1] : vector<16x128xf32> to vector<16xf32>
    %163 = vector.shape_cast %162 : vector<16xf32> to vector<16x1xf32>
    %cst_54 = arith.constant 1.280000e+02 : f32
    %164 = vector.broadcast %cst_54 : f32 to vector<16x1xf32>
    %165 = arith.divf %163, %164 : vector<16x1xf32>
    %cst_55 = arith.constant 9.99999997E-7 : f32
    %166 = vector.broadcast %cst_55 : f32 to vector<16x1xf32>
    %167 = arith.addf %165, %166 : vector<16x1xf32>
    %168 = math.rsqrt %167 : vector<16x1xf32>
    %169 = vector.broadcast %168 : vector<16x1xf32> to vector<16x128xf32>
    %170 = arith.mulf %158, %169 : vector<16x128xf32>
    %171 = vector.broadcast %160 : vector<1x128xf32> to vector<16x128xf32>
    %172 = arith.mulf %170, %171 : vector<16x128xf32>
    %173 = arith.truncf %172 : vector<16x128xf32> to vector<16x128xbf16>
    %c0_56 = arith.constant 0 : index
    %c0_57 = arith.constant 0 : index
    %c0_58 = arith.constant 0 : index
    %174 = vector.load %arg12[%c0_56, %c0_57, %c0_58] : memref<2x128x512xbf16, #tpu.memory_space<vmem>>, vector<1x128x512xbf16>
    %175 = vector.shape_cast %174 : vector<1x128x512xbf16> to vector<128x512xbf16>
    %cst_59 = arith.constant dense<0.000000e+00> : vector<16x512xf32>
    %176 = tpu.matmul %173, %175, %cst_59 {dimension_numbers = #tpu.dot_dimension_numbers<[1], [0], [0], [1], [0, 0, 1, 1], [], []>} : vector<16x128xbf16>, vector<128x512xbf16>, vector<16x512xf32> -> vector<16x512xf32>
    %177 = vector.extract_strided_slice %176 {offsets = [0, 0], sizes = [16, 256], strides = [1, 1]} : vector<16x512xf32> to vector<16x256xf32>
    %178 = vector.extract_strided_slice %176 {offsets = [0, 256], sizes = [16, 256], strides = [1, 1]} : vector<16x512xf32> to vector<16x256xf32>
    %cst_60 = arith.constant 0.000000e+00 : f32
    %179 = vector.broadcast %cst_60 : f32 to vector<16x256xf32>
    %180 = arith.subf %179, %177 : vector<16x256xf32>
    %181 = math.exp %180 : vector<16x256xf32>
    %cst_61 = arith.constant 1.000000e+00 : f32
    %182 = vector.broadcast %cst_61 : f32 to vector<16x256xf32>
    %183 = arith.addf %182, %181 : vector<16x256xf32>
    %cst_62 = arith.constant 1.000000e+00 : f32
    %184 = vector.broadcast %cst_62 : f32 to vector<16x256xf32>
    %185 = arith.divf %184, %183 : vector<16x256xf32>
    %186 = arith.mulf %177, %185 : vector<16x256xf32>
    %187 = arith.mulf %186, %178 : vector<16x256xf32>
    %188 = arith.truncf %187 : vector<16x256xf32> to vector<16x256xbf16>
    %c0_63 = arith.constant 0 : index
    %c0_64 = arith.constant 0 : index
    %c0_65 = arith.constant 0 : index
    %189 = vector.load %arg13[%c0_63, %c0_64, %c0_65] : memref<2x256x128xbf16, #tpu.memory_space<vmem>>, vector<1x256x128xbf16>
    %190 = vector.shape_cast %189 : vector<1x256x128xbf16> to vector<256x128xbf16>
    %cst_66 = arith.constant dense<0.000000e+00> : vector<16x128xf32>
    %191 = tpu.matmul %188, %190, %cst_66 {dimension_numbers = #tpu.dot_dimension_numbers<[1], [0], [0], [1], [0, 0, 1, 1], [], []>} : vector<16x256xbf16>, vector<256x128xbf16>, vector<16x128xf32> -> vector<16x128xf32>
    %192 = arith.addf %158, %191 : vector<16x128xf32>
    %c1 = arith.constant 1 : index
    %c0_67 = arith.constant 0 : index
    %c0_68 = arith.constant 0 : index
    %193 = vector.load %arg8[%c1, %c0_67, %c0_68] : memref<2x1x128xf32, #tpu.memory_space<vmem>>, vector<1x1x128xf32>
    %194 = vector.shape_cast %193 : vector<1x1x128xf32> to vector<1x128xf32>
    %195 = arith.mulf %192, %192 : vector<16x128xf32>
    %cst_69 = arith.constant dense<0.000000e+00> : vector<16xf32>
    %196 = vector.multi_reduction <add>, %195, %cst_69 [1] : vector<16x128xf32> to vector<16xf32>
    %197 = vector.shape_cast %196 : vector<16xf32> to vector<16x1xf32>
    %cst_70 = arith.constant 1.280000e+02 : f32
    %198 = vector.broadcast %cst_70 : f32 to vector<16x1xf32>
    %199 = arith.divf %197, %198 : vector<16x1xf32>
    %cst_71 = arith.constant 9.99999997E-7 : f32
    %200 = vector.broadcast %cst_71 : f32 to vector<16x1xf32>
    %201 = arith.addf %199, %200 : vector<16x1xf32>
    %202 = math.rsqrt %201 : vector<16x1xf32>
    %203 = vector.broadcast %202 : vector<16x1xf32> to vector<16x128xf32>
    %204 = arith.mulf %192, %203 : vector<16x128xf32>
    %205 = vector.broadcast %194 : vector<1x128xf32> to vector<16x128xf32>
    %206 = arith.mulf %204, %205 : vector<16x128xf32>
    %207 = arith.truncf %206 : vector<16x128xf32> to vector<16x128xbf16>
    %c1_72 = arith.constant 1 : index
    %c0_73 = arith.constant 0 : index
    %c0_74 = arith.constant 0 : index
    %208 = vector.load %arg9[%c1_72, %c0_73, %c0_74] : memref<2x128x384xbf16, #tpu.memory_space<vmem>>, vector<1x128x384xbf16>
    %209 = vector.shape_cast %208 : vector<1x128x384xbf16> to vector<128x384xbf16>
    %cst_75 = arith.constant dense<0.000000e+00> : vector<16x384xf32>
    %210 = tpu.matmul %207, %209, %cst_75 {dimension_numbers = #tpu.dot_dimension_numbers<[1], [0], [0], [1], [0, 0, 1, 1], [], []>} : vector<16x128xbf16>, vector<128x384xbf16>, vector<16x384xf32> -> vector<16x384xf32>
    %211 = vector.extract_strided_slice %210 {offsets = [0, 0], sizes = [16, 128], strides = [1, 1]} : vector<16x384xf32> to vector<16x128xf32>
    %c16_i32_76 = arith.constant 16 : i32
    %212 = tpu.dynamic_rotate %211 by %c16_i32_76 dim 1 : vector<16x128xf32>, i32 -> vector<16x128xf32>
    %c112_i32_77 = arith.constant 112 : i32
    %213 = tpu.dynamic_rotate %211 by %c112_i32_77 dim 1 : vector<16x128xf32>, i32 -> vector<16x128xf32>
    %214 = arith.mulf %211, %15 : vector<16x128xf32>
    %215 = arith.mulf %212, %20 : vector<16x128xf32>
    %216 = arith.addf %214, %215 : vector<16x128xf32>
    %217 = arith.mulf %213, %25 : vector<16x128xf32>
    %218 = arith.subf %216, %217 : vector<16x128xf32>
    %219 = vector.extract_strided_slice %210 {offsets = [0, 128], sizes = [16, 128], strides = [1, 1]} : vector<16x384xf32> to vector<16x128xf32>
    %c16_i32_78 = arith.constant 16 : i32
    %220 = tpu.dynamic_rotate %219 by %c16_i32_78 dim 1 : vector<16x128xf32>, i32 -> vector<16x128xf32>
    %c112_i32_79 = arith.constant 112 : i32
    %221 = tpu.dynamic_rotate %219 by %c112_i32_79 dim 1 : vector<16x128xf32>, i32 -> vector<16x128xf32>
    %222 = arith.mulf %219, %15 : vector<16x128xf32>
    %223 = arith.mulf %220, %20 : vector<16x128xf32>
    %224 = arith.addf %222, %223 : vector<16x128xf32>
    %225 = arith.mulf %221, %25 : vector<16x128xf32>
    %226 = arith.subf %224, %225 : vector<16x128xf32>
    %227 = vector.extract_strided_slice %210 {offsets = [0, 256], sizes = [16, 128], strides = [1, 1]} : vector<16x384xf32> to vector<16x128xf32>
    %228 = vector.extract_strided_slice %218 {offsets = [0, 0], sizes = [8, 128], strides = [1, 1]} : vector<16x128xf32> to vector<8x128xf32>
    %229 = vector.extract_strided_slice %226 {offsets = [0, 0], sizes = [8, 128], strides = [1, 1]} : vector<16x128xf32> to vector<8x128xf32>
    %230 = vector.extract_strided_slice %227 {offsets = [0, 0], sizes = [8, 128], strides = [1, 1]} : vector<16x128xf32> to vector<8x128xf32>
    %231 = vector.shape_cast %228 : vector<8x128xf32> to vector<1x8x128xf32>
    %232 = vector.broadcast %231 : vector<1x8x128xf32> to vector<4x8x128xf32>
    %233 = vector.broadcast %10 : vector<4x1x128xf32> to vector<4x8x128xf32>
    %234 = arith.mulf %232, %233 : vector<4x8x128xf32>
    %235 = vector.shape_cast %234 : vector<4x8x128xf32> to vector<32x128xf32>
    %236 = arith.truncf %235 : vector<32x128xf32> to vector<32x128xbf16>
    %237 = arith.truncf %229 : vector<8x128xf32> to vector<8x128xbf16>
    %cst_80 = arith.constant dense<0.000000e+00> : vector<32x8xf32>
    %238 = tpu.matmul %236, %237, %cst_80 {dimension_numbers = #tpu.dot_dimension_numbers<[1], [1], [0], [0], [0, 0, 1, 0], [], []>} : vector<32x128xbf16>, vector<8x128xbf16>, vector<32x8xf32> -> vector<32x8xf32>
    %cst_81 = arith.constant 0.176776692 : f32
    %239 = vector.broadcast %cst_81 : f32 to vector<32x8xf32>
    %240 = arith.mulf %238, %239 : vector<32x8xf32>
    %241 = arith.addf %240, %44 : vector<32x8xf32>
    %cst_82 = arith.constant dense<0xFF800000> : vector<32xf32>
    %242 = vector.multi_reduction <maximumf>, %241, %cst_82 [1] : vector<32x8xf32> to vector<32xf32>
    %243 = vector.shape_cast %242 : vector<32xf32> to vector<32x1xf32>
    %244 = vector.broadcast %243 : vector<32x1xf32> to vector<32x8xf32>
    %245 = arith.subf %241, %244 : vector<32x8xf32>
    %246 = math.exp %245 : vector<32x8xf32>
    %cst_83 = arith.constant dense<0.000000e+00> : vector<32xf32>
    %247 = vector.multi_reduction <add>, %246, %cst_83 [1] : vector<32x8xf32> to vector<32xf32>
    %248 = vector.shape_cast %247 : vector<32xf32> to vector<32x1xf32>
    %249 = tpu.reciprocal %248 {approx = true} : vector<32x1xf32> -> vector<32x1xf32>
    %250 = vector.broadcast %249 : vector<32x1xf32> to vector<32x8xf32>
    %251 = arith.mulf %246, %250 : vector<32x8xf32>
    %252 = arith.truncf %251 : vector<32x8xf32> to vector<32x8xbf16>
    %253 = arith.truncf %230 : vector<8x128xf32> to vector<8x128xbf16>
    %cst_84 = arith.constant dense<0.000000e+00> : vector<32x128xf32>
    %254 = tpu.matmul %252, %253, %cst_84 {dimension_numbers = #tpu.dot_dimension_numbers<[1], [0], [0], [1], [0, 0, 1, 1], [], []>} : vector<32x8xbf16>, vector<8x128xbf16>, vector<32x128xf32> -> vector<32x128xf32>
    %255 = vector.shape_cast %254 : vector<32x128xf32> to vector<4x8x128xf32>
    %256 = vector.broadcast %10 : vector<4x1x128xf32> to vector<4x8x128xf32>
    %257 = arith.mulf %255, %256 : vector<4x8x128xf32>
    %cst_85 = arith.constant dense<0.000000e+00> : vector<8x128xf32>
    %258 = vector.multi_reduction <add>, %257, %cst_85 [0] : vector<4x8x128xf32> to vector<8x128xf32>
    %259 = vector.extract_strided_slice %218 {offsets = [8, 0], sizes = [8, 128], strides = [1, 1]} : vector<16x128xf32> to vector<8x128xf32>
    %260 = vector.extract_strided_slice %226 {offsets = [8, 0], sizes = [8, 128], strides = [1, 1]} : vector<16x128xf32> to vector<8x128xf32>
    %261 = vector.extract_strided_slice %227 {offsets = [8, 0], sizes = [8, 128], strides = [1, 1]} : vector<16x128xf32> to vector<8x128xf32>
    %262 = vector.shape_cast %259 : vector<8x128xf32> to vector<1x8x128xf32>
    %263 = vector.broadcast %262 : vector<1x8x128xf32> to vector<4x8x128xf32>
    %264 = vector.broadcast %10 : vector<4x1x128xf32> to vector<4x8x128xf32>
    %265 = arith.mulf %263, %264 : vector<4x8x128xf32>
    %266 = vector.shape_cast %265 : vector<4x8x128xf32> to vector<32x128xf32>
    %267 = arith.truncf %266 : vector<32x128xf32> to vector<32x128xbf16>
    %268 = arith.truncf %260 : vector<8x128xf32> to vector<8x128xbf16>
    %cst_86 = arith.constant dense<0.000000e+00> : vector<32x8xf32>
    %269 = tpu.matmul %267, %268, %cst_86 {dimension_numbers = #tpu.dot_dimension_numbers<[1], [1], [0], [0], [0, 0, 1, 0], [], []>} : vector<32x128xbf16>, vector<8x128xbf16>, vector<32x8xf32> -> vector<32x8xf32>
    %cst_87 = arith.constant 0.176776692 : f32
    %270 = vector.broadcast %cst_87 : f32 to vector<32x8xf32>
    %271 = arith.mulf %269, %270 : vector<32x8xf32>
    %272 = arith.addf %271, %55 : vector<32x8xf32>
    %cst_88 = arith.constant dense<0xFF800000> : vector<32xf32>
    %273 = vector.multi_reduction <maximumf>, %272, %cst_88 [1] : vector<32x8xf32> to vector<32xf32>
    %274 = vector.shape_cast %273 : vector<32xf32> to vector<32x1xf32>
    %275 = vector.broadcast %274 : vector<32x1xf32> to vector<32x8xf32>
    %276 = arith.subf %272, %275 : vector<32x8xf32>
    %277 = math.exp %276 : vector<32x8xf32>
    %cst_89 = arith.constant dense<0.000000e+00> : vector<32xf32>
    %278 = vector.multi_reduction <add>, %277, %cst_89 [1] : vector<32x8xf32> to vector<32xf32>
    %279 = vector.shape_cast %278 : vector<32xf32> to vector<32x1xf32>
    %280 = tpu.reciprocal %279 {approx = true} : vector<32x1xf32> -> vector<32x1xf32>
    %281 = vector.broadcast %280 : vector<32x1xf32> to vector<32x8xf32>
    %282 = arith.mulf %277, %281 : vector<32x8xf32>
    %283 = arith.truncf %282 : vector<32x8xf32> to vector<32x8xbf16>
    %284 = arith.truncf %261 : vector<8x128xf32> to vector<8x128xbf16>
    %cst_90 = arith.constant dense<0.000000e+00> : vector<32x128xf32>
    %285 = tpu.matmul %283, %284, %cst_90 {dimension_numbers = #tpu.dot_dimension_numbers<[1], [0], [0], [1], [0, 0, 1, 1], [], []>} : vector<32x8xbf16>, vector<8x128xbf16>, vector<32x128xf32> -> vector<32x128xf32>
    %286 = vector.shape_cast %285 : vector<32x128xf32> to vector<4x8x128xf32>
    %287 = vector.broadcast %10 : vector<4x1x128xf32> to vector<4x8x128xf32>
    %288 = arith.mulf %286, %287 : vector<4x8x128xf32>
    %cst_91 = arith.constant dense<0.000000e+00> : vector<8x128xf32>
    %289 = vector.multi_reduction <add>, %288, %cst_91 [0] : vector<4x8x128xf32> to vector<8x128xf32>
    %290 = tpu.concatenate %258, %289 in 0 : vector<8x128xf32>, vector<8x128xf32> -> vector<16x128xf32>
    %291 = arith.truncf %290 : vector<16x128xf32> to vector<16x128xbf16>
    %c1_92 = arith.constant 1 : index
    %c0_93 = arith.constant 0 : index
    %c0_94 = arith.constant 0 : index
    %292 = vector.load %arg10[%c1_92, %c0_93, %c0_94] : memref<2x128x128xbf16, #tpu.memory_space<vmem>>, vector<1x128x128xbf16>
    %293 = vector.shape_cast %292 : vector<1x128x128xbf16> to vector<128x128xbf16>
    %cst_95 = arith.constant dense<0.000000e+00> : vector<16x128xf32>
    %294 = tpu.matmul %291, %293, %cst_95 {dimension_numbers = #tpu.dot_dimension_numbers<[1], [0], [0], [1], [0, 0, 1, 1], [], []>} : vector<16x128xbf16>, vector<128x128xbf16>, vector<16x128xf32> -> vector<16x128xf32>
    %295 = arith.addf %192, %294 : vector<16x128xf32>
    %c1_96 = arith.constant 1 : index
    %c0_97 = arith.constant 0 : index
    %c0_98 = arith.constant 0 : index
    %296 = vector.load %arg11[%c1_96, %c0_97, %c0_98] : memref<2x1x128xf32, #tpu.memory_space<vmem>>, vector<1x1x128xf32>
    %297 = vector.shape_cast %296 : vector<1x1x128xf32> to vector<1x128xf32>
    %298 = arith.mulf %295, %295 : vector<16x128xf32>
    %cst_99 = arith.constant dense<0.000000e+00> : vector<16xf32>
    %299 = vector.multi_reduction <add>, %298, %cst_99 [1] : vector<16x128xf32> to vector<16xf32>
    %300 = vector.shape_cast %299 : vector<16xf32> to vector<16x1xf32>
    %cst_100 = arith.constant 1.280000e+02 : f32
    %301 = vector.broadcast %cst_100 : f32 to vector<16x1xf32>
    %302 = arith.divf %300, %301 : vector<16x1xf32>
    %cst_101 = arith.constant 9.99999997E-7 : f32
    %303 = vector.broadcast %cst_101 : f32 to vector<16x1xf32>
    %304 = arith.addf %302, %303 : vector<16x1xf32>
    %305 = math.rsqrt %304 : vector<16x1xf32>
    %306 = vector.broadcast %305 : vector<16x1xf32> to vector<16x128xf32>
    %307 = arith.mulf %295, %306 : vector<16x128xf32>
    %308 = vector.broadcast %297 : vector<1x128xf32> to vector<16x128xf32>
    %309 = arith.mulf %307, %308 : vector<16x128xf32>
    %310 = arith.truncf %309 : vector<16x128xf32> to vector<16x128xbf16>
    %c1_102 = arith.constant 1 : index
    %c0_103 = arith.constant 0 : index
    %c0_104 = arith.constant 0 : index
    %311 = vector.load %arg12[%c1_102, %c0_103, %c0_104] : memref<2x128x512xbf16, #tpu.memory_space<vmem>>, vector<1x128x512xbf16>
    %312 = vector.shape_cast %311 : vector<1x128x512xbf16> to vector<128x512xbf16>
    %cst_105 = arith.constant dense<0.000000e+00> : vector<16x512xf32>
    %313 = tpu.matmul %310, %312, %cst_105 {dimension_numbers = #tpu.dot_dimension_numbers<[1], [0], [0], [1], [0, 0, 1, 1], [], []>} : vector<16x128xbf16>, vector<128x512xbf16>, vector<16x512xf32> -> vector<16x512xf32>
    %314 = vector.extract_strided_slice %313 {offsets = [0, 0], sizes = [16, 256], strides = [1, 1]} : vector<16x512xf32> to vector<16x256xf32>
    %315 = vector.extract_strided_slice %313 {offsets = [0, 256], sizes = [16, 256], strides = [1, 1]} : vector<16x512xf32> to vector<16x256xf32>
    %cst_106 = arith.constant 0.000000e+00 : f32
    %316 = vector.broadcast %cst_106 : f32 to vector<16x256xf32>
    %317 = arith.subf %316, %314 : vector<16x256xf32>
    %318 = math.exp %317 : vector<16x256xf32>
    %cst_107 = arith.constant 1.000000e+00 : f32
    %319 = vector.broadcast %cst_107 : f32 to vector<16x256xf32>
    %320 = arith.addf %319, %318 : vector<16x256xf32>
    %cst_108 = arith.constant 1.000000e+00 : f32
    %321 = vector.broadcast %cst_108 : f32 to vector<16x256xf32>
    %322 = arith.divf %321, %320 : vector<16x256xf32>
    %323 = arith.mulf %314, %322 : vector<16x256xf32>
    %324 = arith.mulf %323, %315 : vector<16x256xf32>
    %325 = arith.truncf %324 : vector<16x256xf32> to vector<16x256xbf16>
    %c1_109 = arith.constant 1 : index
    %c0_110 = arith.constant 0 : index
    %c0_111 = arith.constant 0 : index
    %326 = vector.load %arg13[%c1_109, %c0_110, %c0_111] : memref<2x256x128xbf16, #tpu.memory_space<vmem>>, vector<1x256x128xbf16>
    %327 = vector.shape_cast %326 : vector<1x256x128xbf16> to vector<256x128xbf16>
    %cst_112 = arith.constant dense<0.000000e+00> : vector<16x128xf32>
    %328 = tpu.matmul %325, %327, %cst_112 {dimension_numbers = #tpu.dot_dimension_numbers<[1], [0], [0], [1], [0, 0, 1, 1], [], []>} : vector<16x256xbf16>, vector<256x128xbf16>, vector<16x128xf32> -> vector<16x128xf32>
    %329 = arith.addf %295, %328 : vector<16x128xf32>
    %c0_113 = arith.constant 0 : index
    %c0_114 = arith.constant 0 : index
    %330 = vector.load %arg14[%c0_113, %c0_114] : memref<1x128xf32, #tpu.memory_space<vmem>>, vector<1x128xf32>
    %331 = arith.mulf %329, %329 : vector<16x128xf32>
    %cst_115 = arith.constant dense<0.000000e+00> : vector<16xf32>
    %332 = vector.multi_reduction <add>, %331, %cst_115 [1] : vector<16x128xf32> to vector<16xf32>
    %333 = vector.shape_cast %332 : vector<16xf32> to vector<16x1xf32>
    %cst_116 = arith.constant 1.280000e+02 : f32
    %334 = vector.broadcast %cst_116 : f32 to vector<16x1xf32>
    %335 = arith.divf %333, %334 : vector<16x1xf32>
    %cst_117 = arith.constant 9.99999997E-7 : f32
    %336 = vector.broadcast %cst_117 : f32 to vector<16x1xf32>
    %337 = arith.addf %335, %336 : vector<16x1xf32>
    %338 = math.rsqrt %337 : vector<16x1xf32>
    %339 = vector.broadcast %338 : vector<16x1xf32> to vector<16x128xf32>
    %340 = arith.mulf %329, %339 : vector<16x128xf32>
    %341 = vector.broadcast %330 : vector<1x128xf32> to vector<16x128xf32>
    %342 = arith.mulf %340, %341 : vector<16x128xf32>
    %343 = arith.truncf %342 : vector<16x128xf32> to vector<16x128xbf16>
    %c0_118 = arith.constant 0 : index
    %c0_119 = arith.constant 0 : index
    %344 = vector.load %arg15[%c0_118, %c0_119] : memref<128x256xbf16, #tpu.memory_space<vmem>>, vector<128x256xbf16>
    %cst_120 = arith.constant dense<0.000000e+00> : vector<16x256xf32>
    %345 = tpu.matmul %343, %344, %cst_120 {dimension_numbers = #tpu.dot_dimension_numbers<[1], [0], [0], [1], [0, 0, 1, 1], [], []>} : vector<16x128xbf16>, vector<128x256xbf16>, vector<16x256xf32> -> vector<16x256xf32>
    %346 = vector.shape_cast %345 : vector<16x256xf32> to vector<2x8x256xf32>
    %c0_121 = arith.constant 0 : index
    %c0_122 = arith.constant 0 : index
    %c0_123 = arith.constant 0 : index
    %347 = vector.load %arg16[%c0_121, %c0_122, %c0_123] : memref<2x8x256xf32, #tpu.memory_space<vmem>>, vector<2x8x256xf32>
    tpu.vector_store %arg16[%c0_121, %c0_122, %c0_123], %346 {strides = array<i32>} : memref<2x8x256xf32, #tpu.memory_space<vmem>>, vector<2x8x256xf32>,
    return
  }
  func.func @transform_0(%arg0: i32) -> (i32, i32) {
    %c0_i32 = arith.constant 0 : i32
    %c0_i32_0 = arith.constant 0 : i32
    %c0_i32_1 = arith.constant 0 : i32
    return %c0_i32, %c0_i32_0 : i32, i32
  }
  func.func @transform_1(%arg0: i32) -> (i32, i32) {
    %c0_i32 = arith.constant 0 : i32
    %c0_i32_0 = arith.constant 0 : i32
    %c0_i32_1 = arith.constant 0 : i32
    return %c0_i32, %c0_i32_0 : i32, i32
  }
  func.func @transform_2(%arg0: i32) -> (i32, i32) {
    %c0_i32 = arith.constant 0 : i32
    %c0_i32_0 = arith.constant 0 : i32
    %c0_i32_1 = arith.constant 0 : i32
    return %c0_i32, %c0_i32_0 : i32, i32
  }
  func.func @transform_3(%arg0: i32) -> (i32, i32) {
    %c0_i32 = arith.constant 0 : i32
    %c0_i32_0 = arith.constant 0 : i32
    %c0_i32_1 = arith.constant 0 : i32
    return %c0_i32, %c0_i32_0 : i32, i32
  }
  func.func @transform_4(%arg0: i32) -> (i32, i32) {
    %c0_i32 = arith.constant 0 : i32
    %c0_i32_0 = arith.constant 0 : i32
    %c0_i32_1 = arith.constant 0 : i32
    return %c0_i32, %c0_i32_0 : i32, i32
  }
  func.func @transform_5(%arg0: i32) -> (i32, i32) {
    %c0_i32 = arith.constant 0 : i32
    %c0_i32_0 = arith.constant 0 : i32
    %c0_i32_1 = arith.constant 0 : i32
    return %c0_i32, %c0_i32_0 : i32, i32
  }
  func.func @transform_6(%arg0: i32) -> (i32, i32, i32) {
    %c0_i32 = arith.constant 0 : i32
    %c0_i32_0 = arith.constant 0 : i32
    %c0_i32_1 = arith.constant 0 : i32
    %c0_i32_2 = arith.constant 0 : i32
    return %c0_i32, %c0_i32_0, %c0_i32_1 : i32, i32, i32
  }
  func.func @transform_7(%arg0: i32) -> (i32, i32, i32) {
    %c0_i32 = arith.constant 0 : i32
    %c0_i32_0 = arith.constant 0 : i32
    %c0_i32_1 = arith.constant 0 : i32
    %c0_i32_2 = arith.constant 0 : i32
    return %c0_i32, %c0_i32_0, %c0_i32_1 : i32, i32, i32
  }
  func.func @transform_8(%arg0: i32) -> (i32, i32, i32) {
    %c0_i32 = arith.constant 0 : i32
    %c0_i32_0 = arith.constant 0 : i32
    %c0_i32_1 = arith.constant 0 : i32
    %c0_i32_2 = arith.constant 0 : i32
    return %c0_i32, %c0_i32_0, %c0_i32_1 : i32, i32, i32
  }
  func.func @transform_9(%arg0: i32) -> (i32, i32, i32) {
    %c0_i32 = arith.constant 0 : i32
    %c0_i32_0 = arith.constant 0 : i32
    %c0_i32_1 = arith.constant 0 : i32
    %c0_i32_2 = arith.constant 0 : i32
    return %c0_i32, %c0_i32_0, %c0_i32_1 : i32, i32, i32
  }
  func.func @transform_10(%arg0: i32) -> (i32, i32, i32) {
    %c0_i32 = arith.constant 0 : i32
    %c0_i32_0 = arith.constant 0 : i32
    %c0_i32_1 = arith.constant 0 : i32
    %c0_i32_2 = arith.constant 0 : i32
    return %c0_i32, %c0_i32_0, %c0_i32_1 : i32, i32, i32
  }
  func.func @transform_11(%arg0: i32) -> (i32, i32, i32) {
    %c0_i32 = arith.constant 0 : i32
    %c0_i32_0 = arith.constant 0 : i32
    %c0_i32_1 = arith.constant 0 : i32
    %c0_i32_2 = arith.constant 0 : i32
    return %c0_i32, %c0_i32_0, %c0_i32_1 : i32, i32, i32
  }
  func.func @transform_12(%arg0: i32) -> (i32, i32, i32) {
    %c0_i32 = arith.constant 0 : i32
    %c0_i32_0 = arith.constant 0 : i32
    %c0_i32_1 = arith.constant 0 : i32
    %c0_i32_2 = arith.constant 0 : i32
    return %c0_i32, %c0_i32_0, %c0_i32_1 : i32, i32, i32
  }
  func.func @transform_13(%arg0: i32) -> (i32, i32) {
    %c0_i32 = arith.constant 0 : i32
    %c0_i32_0 = arith.constant 0 : i32
    %c0_i32_1 = arith.constant 0 : i32
    return %c0_i32, %c0_i32_0 : i32, i32
  }
  func.func @transform_14(%arg0: i32) -> (i32, i32) {
    %c0_i32 = arith.constant 0 : i32
    %c0_i32_0 = arith.constant 0 : i32
    %c0_i32_1 = arith.constant 0 : i32
    return %c0_i32, %c0_i32_0 : i32, i32
  }
  func.func @transform_15(%arg0: i32) -> (i32, i32, i32) {
    %c0_i32 = arith.constant 0 : i32
    %c0_i32_0 = arith.constant 0 : i32
    %c0_i32_1 = arith.constant 0 : i32
    %c0_i32_2 = arith.constant 0 : i32
    return %c0_i32, %c0_i32_0, %c0_i32_1 : i32, i32, i32
  }
}

</mosaic_0001>

<llo_original>
// kernel: advanced_model_forward.1
$region0: #{advanced_model_forward.1}
  #allocation0 [shape = 'u32[]', space=smem, size = 0x4, offset = 0x4, fixed_abs, tag = 'smem constant byte address 0x4 - core index']
  #allocation1 [shape = 'u32[72,128]{1,0:T(1,128)}', space=vmem, size = 0x9000, scoped, tag = 'internal scratch']
  %s0 = inlined_call_operand.vmem [shape: s32[16,1], index: 0, kind: input, shape index: {}]
  %s1 = inlined_call_operand.hbm [shape: s32[2,8], index: 1, kind: input, shape index: {}]
  %s2 = inlined_call_operand.hbm [shape: bf16[256,128], index: 2, kind: input, shape index: {}]
  %s3 = inlined_call_operand.vmem [shape: f32[8,128], index: 3, kind: input, shape index: {}]
  %s4 = inlined_call_operand.vmem [shape: f32[8,128], index: 4, kind: input, shape index: {}]
  %s5 = inlined_call_operand.vmem [shape: f32[8,128], index: 5, kind: input, shape index: {}]
  %s6 = inlined_call_operand.vmem [shape: f32[4,1,128], index: 6, kind: input, shape index: {}]
  %s7 = inlined_call_operand.vmem [shape: f32[2,1,128], index: 7, kind: input, shape index: {}, may-alias: {7,10}]
  %s8 = inlined_call_operand.hbm [shape: bf16[2,128,384], index: 8, kind: input, shape index: {}]
  %s9 = inlined_call_operand.hbm [shape: bf16[2,128,128], index: 9, kind: input, shape index: {}]
  %s10 = inlined_call_operand.vmem [shape: f32[2,1,128], index: 10, kind: input, shape index: {}, may-alias: {7,10}]
  %s11 = inlined_call_operand.hbm [shape: bf16[2,128,512], index: 11, kind: input, shape index: {}]
  %s12 = inlined_call_operand.hbm [shape: bf16[2,256,128], index: 12, kind: input, shape index: {}]
  %s13 = inlined_call_operand.vmem [shape: f32[1,128], index: 13, kind: input, shape index: {}]
  %s14 = inlined_call_operand.hbm [shape: bf16[128,256], index: 14, kind: input, shape index: {}]
  %s15 = inlined_call_operand.hbm [shape: f32[2,8,256], index: 15, kind: output, shape index: {}]
  %s16 = sld [smem:[#allocation0]]
  $region98: #{advanced_model_forward.1} parent=0
    _
  %s18 = ssub.s32 1, %s16
  %s19 = scalar_select 0, %s18, %s16
  $region1: #{advanced_model_forward.1} parent=0
    #allocation2 [shape = 'u8[1024]{0}', space=vmem, size = 0x400, scoped, tag = 'input window, operand 1, single buffered']
    #allocation3 [shape = 's32[1]{0}', space=sflag, size = 0x4, scoped, tag = 'scoped memory for advanced_model_forward.1']
    #allocation4 [shape = 's32[1]{0}', space=sflag, size = 0x4, scoped, tag = 'scoped memory for advanced_model_forward.1']
    #allocation5 [shape = 'u8[65536]{0}', space=vmem, size = 0x10000, scoped, tag = 'input window, operand 2, single buffered']
    #allocation6 [shape = 's32[1]{0}', space=sflag, size = 0x4, scoped, tag = 'scoped memory for advanced_model_forward.1']
    #allocation7 [shape = 'u8[196608]{0}', space=vmem, size = 0x30000, scoped, tag = 'input window, operand 8, single buffered']
    #allocation8 [shape = 'u8[65536]{0}', space=vmem, size = 0x10000, scoped, tag = 'input window, operand 9, single buffered']
    #allocation9 [shape = 's32[1]{0}', space=sflag, size = 0x4, scoped, tag = 'scoped memory for advanced_model_forward.1']
    #allocation10 [shape = 'u8[262144]{0}', space=vmem, size = 0x40000, scoped, tag = 'input window, operand 11, single buffered']
    #allocation11 [shape = 'u8[131072]{0}', space=vmem, size = 0x20000, scoped, tag = 'input window, operand 12, single buffered']
    #allocation12 [shape = 's32[1]{0}', space=sflag, size = 0x4, scoped, tag = 'scoped memory for advanced_model_forward.1']
    #allocation13 [shape = 'u8[65536]{0}', space=vmem, size = 0x10000, scoped, tag = 'input window, operand 14, single buffered']
    #allocation14 [shape = 'u8[16384]{0}', space=vmem, size = 0x4000, scoped, tag = 'output window, operand 0, single buffered']
    %20 = vsyncpa [#allocation3], 0
    %21 = vsyncpa [#allocation6], 0
    %22 = vsyncpa [#allocation9], 0
    %23 = vsyncpa [#allocation12], 0
    %24 = vsyncpa [#allocation4], 0
    // Predicated region
    $region2: #{advanced_model_forward.1} parent=1 // pred_check
      _
    $region3: #{advanced_model_forward.1} parent=1 // pred_check_branch
      %26 = sbr.rel (0) target = $region5
    $region4: #{advanced_model_forward.1} parent=1 // pred_region
      _
    $region5: #{advanced_model_forward.1} parent=1 // pred_fallthru
      _
    // Predicated region
    $region6: #{advanced_model_forward.1} parent=1 // pred_check
      _
    $region7: #{advanced_model_forward.1} parent=1 // pred_check_branch
      %28 = sbr.rel (0) target = $region9
    $region8: #{advanced_model_forward.1} parent=1 // pred_region
      %30 = vsyncadd [#allocation3], 0
      %s32 = sshll.u32 %s1, 4
      %s33 = int_to_ptr.hbm [resolvable:$true] %s32
      %s34 = sshll.u32 [#allocation2], 4
      %s35 = int_to_ptr.vmem [resolvable:$true] %s34
      %37 = dma.hbm_to_vmem [thread:$0]  %s33, 32, %s35, [#allocation3]
    $region9: #{advanced_model_forward.1} parent=1 // pred_fallthru
      _
    // Predicated region
    $region10: #{advanced_model_forward.1} parent=1 // pred_check
      _
    $region11: #{advanced_model_forward.1} parent=1 // pred_check_branch
      %39 = sbr.rel (0) target = $region13
    $region12: #{advanced_model_forward.1} parent=1 // pred_region
      %41 = vsyncadd [#allocation6], 0
      %s42 = sshll.u32 %s2, 4
      %s43 = int_to_ptr.hbm [resolvable:$true] %s42
      %s44 = sshll.u32 [#allocation5], 4
      %s45 = int_to_ptr.vmem [resolvable:$true] %s44
      %50 = dma.hbm_to_vmem [thread:$0]  %s43, 2048, %s45, [#allocation6], 64, 64, 4
    $region13: #{advanced_model_forward.1} parent=1 // pred_fallthru
      _
    // Predicated region
    $region14: #{advanced_model_forward.1} parent=1 // pred_check
      _
    $region15: #{advanced_model_forward.1} parent=1 // pred_check_branch
      %52 = sbr.rel (0) target = $region17
    $region16: #{advanced_model_forward.1} parent=1 // pred_region
      _
    $region17: #{advanced_model_forward.1} parent=1 // pred_fallthru
      _
    // Predicated region
    $region18: #{advanced_model_forward.1} parent=1 // pred_check
      _
    $region19: #{advanced_model_forward.1} parent=1 // pred_check_branch
      %54 = sbr.rel (0) target = $region21
    $region20: #{advanced_model_forward.1} parent=1 // pred_region
      _
    $region21: #{advanced_model_forward.1} parent=1 // pred_fallthru
      _
    // Predicated region
    $region22: #{advanced_model_forward.1} parent=1 // pred_check
      _
    $region23: #{advanced_model_forward.1} parent=1 // pred_check_branch
      %56 = sbr.rel (0) target = $region25
    $region24: #{advanced_model_forward.1} parent=1 // pred_region
      _
    $region25: #{advanced_model_forward.1} parent=1 // pred_fallthru
      _
    // Predicated region
    $region26: #{advanced_model_forward.1} parent=1 // pred_check
      _
    $region27: #{advanced_model_forward.1} parent=1 // pred_check_branch
      %58 = sbr.rel (0) target = $region29
    $region28: #{advanced_model_forward.1} parent=1 // pred_region
      _
    $region29: #{advanced_model_forward.1} parent=1 // pred_fallthru
      _
    // Predicated region
    $region30: #{advanced_model_forward.1} parent=1 // pred_check
      _
    $region31: #{advanced_model_forward.1} parent=1 // pred_check_branch
      %60 = sbr.rel (0) target = $region33
    $region32: #{advanced_model_forward.1} parent=1 // pred_region
      _
    $region33: #{advanced_model_forward.1} parent=1 // pred_fallthru
      _
    // Predicated region
    $region34: #{advanced_model_forward.1} parent=1 // pred_check
      _
    $region35: #{advanced_model_forward.1} parent=1 // pred_check_branch
      %62 = sbr.rel (0) target = $region37
    $region36: #{advanced_model_forward.1} parent=1 // pred_region
      %64 = vsyncadd [#allocation6], 0
      %s65 = sshll.u32 %s8, 4
      %s66 = int_to_ptr.hbm [resolvable:$true] %s65
      %s67 = sshll.u32 [#allocation7], 4
      %s68 = int_to_ptr.vmem [resolvable:$true] %s67
      %73 = dma.hbm_to_vmem [thread:$0]  %s66, 6144, %s68, [#allocation6], 192, 192, 12
    $region37: #{advanced_model_forward.1} parent=1 // pred_fallthru
      _
    // Predicated region
    $region38: #{advanced_model_forward.1} parent=1 // pred_check
      _
    $region39: #{advanced_model_forward.1} parent=1 // pred_check_branch
      %75 = sbr.rel (0) target = $region41
    $region40: #{advanced_model_forward.1} parent=1 // pred_region
      %77 = vsyncadd [#allocation9], 0
      %s78 = sshll.u32 %s9, 4
      %s79 = int_to_ptr.hbm [resolvable:$true] %s78
      %s80 = sshll.u32 [#allocation8], 4
      %s81 = int_to_ptr.vmem [resolvable:$true] %s80
      %86 = dma.hbm_to_vmem [thread:$0]  %s79, 2048, %s81, [#allocation9], 64, 64, 4
    $region41: #{advanced_model_forward.1} parent=1 // pred_fallthru
      _
    // Predicated region
    $region42: #{advanced_model_forward.1} parent=1 // pred_check
      _
    $region43: #{advanced_model_forward.1} parent=1 // pred_check_branch
      %88 = sbr.rel (0) target = $region45
    $region44: #{advanced_model_forward.1} parent=1 // pred_region
      _
    $region45: #{advanced_model_forward.1} parent=1 // pred_fallthru
      _
    // Predicated region
    $region46: #{advanced_model_forward.1} parent=1 // pred_check
      _
    $region47: #{advanced_model_forward.1} parent=1 // pred_check_branch
      %90 = sbr.rel (0) target = $region49
    $region48: #{advanced_model_forward.1} parent=1 // pred_region
      %92 = vsyncadd [#allocation9], 0
      %s93 = sshll.u32 %s11, 4
      %s94 = int_to_ptr.hbm [resolvable:$true] %s93
      %s95 = sshll.u32 [#allocation10], 4
      %s96 = int_to_ptr.vmem [resolvable:$true] %s95
      %101 = dma.hbm_to_vmem [thread:$0]  %s94, 8192, %s96, [#allocation9], 256, 256, 16
    $region49: #{advanced_model_forward.1} parent=1 // pred_fallthru
      _
    // Predicated region
    $region50: #{advanced_model_forward.1} parent=1 // pred_check
      _
    $region51: #{advanced_model_forward.1} parent=1 // pred_check_branch
      %103 = sbr.rel (0) target = $region53
    $region52: #{advanced_model_forward.1} parent=1 // pred_region
      %105 = vsyncadd [#allocation12], 0
      %s106 = sshll.u32 %s12, 4
      %s107 = int_to_ptr.hbm [resolvable:$true] %s106
      %s108 = sshll.u32 [#allocation11], 4
      %s109 = int_to_ptr.vmem [resolvable:$true] %s108
      %114 = dma.hbm_to_vmem [thread:$0]  %s107, 4096, %s109, [#allocation12], 64, 64, 4
    $region53: #{advanced_model_forward.1} parent=1 // pred_fallthru
      _
    // Predicated region
    $region54: #{advanced_model_forward.1} parent=1 // pred_check
      _
    $region55: #{advanced_model_forward.1} parent=1 // pred_check_branch
      %116 = sbr.rel (0) target = $region57
    $region56: #{advanced_model_forward.1} parent=1 // pred_region
      _
    $region57: #{advanced_model_forward.1} parent=1 // pred_fallthru
      _
    // Predicated region
    $region58: #{advanced_model_forward.1} parent=1 // pred_check
      _
    $region59: #{advanced_model_forward.1} parent=1 // pred_check_branch
      %118 = sbr.rel (0) target = $region61
    $region60: #{advanced_model_forward.1} parent=1 // pred_region
      %120 = vsyncadd [#allocation12], 0
      %s121 = sshll.u32 %s14, 4
      %s122 = int_to_ptr.hbm [resolvable:$true] %s121
      %s123 = sshll.u32 [#allocation13], 4
      %s124 = int_to_ptr.vmem [resolvable:$true] %s123
      %129 = dma.hbm_to_vmem [thread:$0]  %s122, 2048, %s124, [#allocation12], 128, 128, 8
    $region61: #{advanced_model_forward.1} parent=1 // pred_fallthru
      _
    // Predicated region
    $region62: #{advanced_model_forward.1} parent=1 // pred_check
      _
    $region63: #{advanced_model_forward.1} parent=1 // pred_check_branch
      %131 = sbr.rel (0) target = $region65
    $region64: #{advanced_model_forward.1} parent=1 // pred_region
      %133 = dma.done [#allocation3], 32
    $region65: #{advanced_model_forward.1} parent=1 // pred_fallthru
      _
    // Predicated region
    $region66: #{advanced_model_forward.1} parent=1 // pred_check
      _
    $region67: #{advanced_model_forward.1} parent=1 // pred_check_branch
      %135 = sbr.rel (0) target = $region69
    $region68: #{advanced_model_forward.1} parent=1 // pred_region
      %137 = dma.done [#allocation6], 2048
    $region69: #{advanced_model_forward.1} parent=1 // pred_fallthru
      _
    // Predicated region
    $region70: #{advanced_model_forward.1} parent=1 // pred_check
      _
    $region71: #{advanced_model_forward.1} parent=1 // pred_check_branch
      %139 = sbr.rel (0) target = $region73
    $region72: #{advanced_model_forward.1} parent=1 // pred_region
      %141 = dma.done [#allocation6], 6144
    $region73: #{advanced_model_forward.1} parent=1 // pred_fallthru
      _
    // Predicated region
    $region74: #{advanced_model_forward.1} parent=1 // pred_check
      _
    $region75: #{advanced_model_forward.1} parent=1 // pred_check_branch
      %143 = sbr.rel (0) target = $region77
    $region76: #{advanced_model_forward.1} parent=1 // pred_region
      %145 = dma.done [#allocation9], 2048
    $region77: #{advanced_model_forward.1} parent=1 // pred_fallthru
      _
    // Predicated region
    $region78: #{advanced_model_forward.1} parent=1 // pred_check
      _
    $region79: #{advanced_model_forward.1} parent=1 // pred_check_branch
      %147 = sbr.rel (0) target = $region81
    $region80: #{advanced_model_forward.1} parent=1 // pred_region
      %149 = dma.done [#allocation9], 8192
    $region81: #{advanced_model_forward.1} parent=1 // pred_fallthru
      _
    // Predicated region
    $region82: #{advanced_model_forward.1} parent=1 // pred_check
      _
    $region83: #{advanced_model_forward.1} parent=1 // pred_check_branch
      %151 = sbr.rel (0) target = $region85
    $region84: #{advanced_model_forward.1} parent=1 // pred_region
      %153 = dma.done [#allocation12], 4096
    $region85: #{advanced_model_forward.1} parent=1 // pred_fallthru
      _
    // Predicated region
    $region86: #{advanced_model_forward.1} parent=1 // pred_check
      _
    $region87: #{advanced_model_forward.1} parent=1 // pred_check_branch
      %155 = sbr.rel (0) target = $region89
    $region88: #{advanced_model_forward.1} parent=1 // pred_region
      %157 = dma.done [#allocation12], 2048
    $region89: #{advanced_model_forward.1} parent=1 // pred_fallthru
      _
    %v159 = vld [vmem:[%s0] sm:$0xff]
    %v160 = vld [vmem:[%s0 + $0x8] sm:$0xff]
    %v161 = vlaneseq
    %v162 = vand.u32 %v161, 127
    %v163 = vadd.s32 %v162, 128
    %164 = vset.pattern.permute.xlu0 0
    %165 = vperm.xlu0 %164, %v159
    %v166 = vpop.permute.xlu0 %165
    %167 = vset.pattern.permute.xlu0 0
    %168 = vperm.xlu0 %167, %v160
    %v169 = vpop.permute.xlu0 %168
    %vm170 = vcmp.eq.s32.totalorder %v162, %v166
    %vm171 = vcmp.eq.s32.totalorder %v163, %v166
    %vm172 = vcmp.eq.s32.totalorder %v162, %v169
    %vm173 = vcmp.eq.s32.totalorder %v163, %v169
    %v174 = vsel %vm170, 1.0, 0.0
    %v175 = vsel %vm171, 1.0, 0.0
    %v176 = vsel %vm172, 1.0, 0.0
    %v177 = vsel %vm173, 1.0, 0.0
    %v178 = vpack.c.bf16 %v176, %v174
    %v179 = vpack.c.bf16 %v177, %v175
    %v180 = vld [vmem:[#allocation5] sm:$0xf]
    %v181 = vld [vmem:[#allocation5 + $0x4] sm:$0xf]
    %v182 = vld [vmem:[#allocation5 + $0x8] sm:$0xf]
    %v183 = vld [vmem:[#allocation5 + $0xc] sm:$0xf]
    %v184 = vld [vmem:[#allocation5 + $0x10] sm:$0xf]
    %v185 = vld [vmem:[#allocation5 + $0x14] sm:$0xf]
    %v186 = vld [vmem:[#allocation5 + $0x18] sm:$0xf]
    %v187 = vld [vmem:[#allocation5 + $0x1c] sm:$0xf]
    %v188 = vld [vmem:[#allocation5 + $0x20] sm:$0xf]
    %v189 = vld [vmem:[#allocation5 + $0x24] sm:$0xf]
    %v190 = vld [vmem:[#allocation5 + $0x28] sm:$0xf]
    %v191 = vld [vmem:[#allocation5 + $0x2c] sm:$0xf]
    %v192 = vld [vmem:[#allocation5 + $0x30] sm:$0xf]
    %v193 = vld [vmem:[#allocation5 + $0x34] sm:$0xf]
    %v194 = vld [vmem:[#allocation5 + $0x38] sm:$0xf]
    %v195 = vld [vmem:[#allocation5 + $0x3c] sm:$0xf]
    %v196 = vld [vmem:[#allocation5 + $0x40] sm:$0xf]
    %v197 = vld [vmem:[#allocation5 + $0x44] sm:$0xf]
    %v198 = vld [vmem:[#allocation5 + $0x48] sm:$0xf]
    %v199 = vld [vmem:[#allocation5 + $0x4c] sm:$0xf]
    %v200 = vld [vmem:[#allocation5 + $0x50] sm:$0xf]
    %v201 = vld [vmem:[#allocation5 + $0x54] sm:$0xf]
    %v202 = vld [vmem:[#allocation5 + $0x58] sm:$0xf]
    %v203 = vld [vmem:[#allocation5 + $0x5c] sm:$0xf]
    %v204 = vld [vmem:[#allocation5 + $0x60] sm:$0xf]
    %v205 = vld [vmem:[#allocation5 + $0x64] sm:$0xf]
    %v206 = vld [vmem:[#allocation5 + $0x68] sm:$0xf]
    %v207 = vld [vmem:[#allocation5 + $0x6c] sm:$0xf]
    %v208 = vld [vmem:[#allocation5 + $0x70] sm:$0xf]
    %v209 = vld [vmem:[#allocation5 + $0x74] sm:$0xf]
    %v210 = vld [vmem:[#allocation5 + $0x78] sm:$0xf]
    %v211 = vld [vmem:[#allocation5 + $0x7c] sm:$0xf]
    %v244 = vunpack.c.l.b16 %v180
    %v245 = vunpack.c.l.b16 %v181
    %v246 = vunpack.c.l.b16 %v182
    %v247 = vunpack.c.l.b16 %v183
    %v248 = vunpack.c.l.b16 %v184
    %v249 = vunpack.c.l.b16 %v185
    %v250 = vunpack.c.l.b16 %v186
    %v251 = vunpack.c.l.b16 %v187
    %v252 = vunpack.c.l.b16 %v188
    %v253 = vunpack.c.l.b16 %v189
    %v254 = vunpack.c.l.b16 %v190
    %v255 = vunpack.c.l.b16 %v191
    %v256 = vunpack.c.l.b16 %v192
    %v257 = vunpack.c.l.b16 %v193
    %v258 = vunpack.c.l.b16 %v194
    %v259 = vunpack.c.l.b16 %v195
    %v260 = vunpack.c.l.b16 %v196
    %v261 = vunpack.c.l.b16 %v197
    %v262 = vunpack.c.l.b16 %v198
    %v263 = vunpack.c.l.b16 %v199
    %v264 = vunpack.c.l.b16 %v200
    %v265 = vunpack.c.l.b16 %v201
    %v266 = vunpack.c.l.b16 %v202
    %v267 = vunpack.c.l.b16 %v203
    %v268 = vunpack.c.l.b16 %v204
    %v269 = vunpack.c.l.b16 %v205
    %v270 = vunpack.c.l.b16 %v206
    %v271 = vunpack.c.l.b16 %v207
    %v272 = vunpack.c.l.b16 %v208
    %v273 = vunpack.c.l.b16 %v209
    %v274 = vunpack.c.l.b16 %v210
    %v275 = vunpack.c.l.b16 %v211
    %v276 = vpack.c.b16 %v245, %v244
    %v277 = vpack.c.b16 %v247, %v246
    %v278 = vpack.c.b16 %v249, %v248
    %v279 = vpack.c.b16 %v251, %v250
    %v280 = vpack.c.b16 %v253, %v252
    %v281 = vpack.c.b16 %v255, %v254
    %v282 = vpack.c.b16 %v257, %v256
    %v283 = vpack.c.b16 %v259, %v258
    %v284 = vpack.c.b16 %v261, %v260
    %v285 = vpack.c.b16 %v263, %v262
    %v286 = vpack.c.b16 %v265, %v264
    %v287 = vpack.c.b16 %v267, %v266
    %v288 = vpack.c.b16 %v269, %v268
    %v289 = vpack.c.b16 %v271, %v270
    %v290 = vpack.c.b16 %v273, %v272
    %v291 = vpack.c.b16 %v275, %v274
    %308 = vmatpush.bf16.msra.mxu0 %v283
    %309 = vmatpush.bf16.msra.mxu0 %v282
    %310 = vmatpush.bf16.msra.mxu0 %v281
    %311 = vmatpush.bf16.msra.mxu0 %v280
    %312 = vmatpush.bf16.msra.mxu0 %v279
    %313 = vmatpush.bf16.msra.mxu0 %v278
    %314 = vmatpush.bf16.msra.mxu0 %v277
    %315 = vmatpush.bf16.msra.mxu0 %v276
    %316 = vmatmul.bf16.gmra.mxu0 %v178
    %v317 = vpop.f32.mrf.mxu0
    %v318 = vadd.f32 0.0, %v317
    %v319 = vpop.f32.mrf.mxu0
    %v320 = vadd.f32 0.0, %v319
    %321 = vdwg.mxu0
    %322 = vmatpush.bf16.msra.mxu0 %v291
    %323 = vmatpush.bf16.msra.mxu0 %v290
    %324 = vmatpush.bf16.msra.mxu0 %v289
    %325 = vmatpush.bf16.msra.mxu0 %v288
    %326 = vmatpush.bf16.msra.mxu0 %v287
    %327 = vmatpush.bf16.msra.mxu0 %v286
    %328 = vmatpush.bf16.msra.mxu0 %v285
    %329 = vmatpush.bf16.msra.mxu0 %v284
    %330 = vmatmul.bf16.gmra.mxu0 %v179
    %v331 = vpop.f32.mrf.mxu0
    %v332 = vadd.f32 %v318, %v331
    %v333 = vpop.f32.mrf.mxu0
    %v334 = vadd.f32 %v320, %v333
    %335 = vdwg.mxu0
    %v336 = vld [vmem:[%s6] sm:$0x1]
    %v337 = vld [vmem:[%s6 + $0x1] sm:$0x1]
    %v338 = vld [vmem:[%s6 + $0x2] sm:$0x1]
    %v339 = vld [vmem:[%s6 + $0x3] sm:$0x1]
    %v340 = vld [vmem:[%s3] sm:$0xff]
    %v341 = vld [vmem:[%s4] sm:$0xff]
    %v342 = vld [vmem:[%s5] sm:$0xff]
    %v343 = vlaneseq
    %v344 = vshrl.u32 %v343, 7
    %vm345 = vcmp.le.s32.totalorder %v162, %v344
    %v346 = vsel %vm345, 0.0, -1e+09
    %v347 = vld [vmem:[#allocation2] sm:$0x3]
    %v348 = vcvt.s32.f32 %v347
    %v349 = vsub.f32 1.0, %v348
    %v350 = vmul.f32 %v349, -1e+09
    %v351 = vperm.slane %v350, 0
    %v352 = vadd.f32 %v346, %v351
    %v353 = vperm.slane %v350, 1
    %v354 = vadd.f32 %v346, %v353
    %v355 = vld [vmem:[%s7] sm:$0x1]
    %v356 = vmul.f32 %v332, %v332
    %v357 = vmul.f32 %v334, %v334
    %358 = vadd.xlane.f32.xlu0 %v356
    %v359 = vpop.xlane.xlu0 %358
    %360 = vadd.xlane.f32.xlu0 %v357
    %v361 = vpop.xlane.xlu0 %360
    %v362 = vrcp.pop 128.0
    %v363 = vmul.f32 128.0, %v362
    %v364 = vsub.f32 1.0, %v363
    %v365 = vmul.f32 %v362, %v364
    %v366 = vadd.f32 %v362, %v365
    %vm367 = vweird.f32 %v362
    %v368 = vsel %vm367, %v362, %v366
    %v369 = vmul.f32 %v359, %v368
    %v370 = vmul.f32 %v361, %v368
    %v371 = vadd.f32 %v369, 1e-06
    %v372 = vadd.f32 %v370, 1e-06
    %v373 = vrsqrt.pop %v371
    %v374 = vmul.f32 %v373, %v371
    %v375 = vmul.f32 %v374, %v373
    %v376 = vmul.f32 0.5, %v375
    %v377 = vsub.f32 1.5, %v376
    %v378 = vmul.f32 %v373, %v377
    %vm379 = vweird.f32 %v371
    %vm380 = vweird.f32 %v373
    %vm381 = vmor %vm379, %vm380
    %v382 = vsel %vm381, %v373, %v378
    %v383 = vrsqrt.pop %v372
    %v384 = vmul.f32 %v383, %v372
    %v385 = vmul.f32 %v384, %v383
    %v386 = vmul.f32 0.5, %v385
    %v387 = vsub.f32 1.5, %v386
    %v388 = vmul.f32 %v383, %v387
    %vm389 = vweird.f32 %v372
    %vm390 = vweird.f32 %v383
    %vm391 = vmor %vm389, %vm390
    %v392 = vsel %vm391, %v383, %v388
    %v393 = vmul.f32 %v332, %v382
    %v394 = vmul.f32 %v334, %v392
    %v396 = vperm.slane %v355, 0
    %v398 = vmul.f32 %v393, %v396
    %v399 = vmul.f32 %v394, %v396
    %v400 = vpack.c.bf16 %v399, %v398
    %v401 = vld [vmem:[#allocation7] sm:$0xff]
    %v402 = vld [vmem:[#allocation7 + $0x8] sm:$0xf]
    %v403 = vld [vmem:[#allocation7 + $0xc] sm:$0xff]
    %v404 = vld [vmem:[#allocation7 + $0x14] sm:$0xf]
    %v405 = vld [vmem:[#allocation7 + $0x18] sm:$0xff]
    %v406 = vld [vmem:[#allocation7 + $0x20] sm:$0xf]
    %v407 = vld [vmem:[#allocation7 + $0x24] sm:$0xff]
    %v408 = vld [vmem:[#allocation7 + $0x2c] sm:$0xf]
    %v409 = vld [vmem:[#allocation7 + $0x30] sm:$0xff]
    %v410 = vld [vmem:[#allocation7 + $0x38] sm:$0xf]
    %v411 = vld [vmem:[#allocation7 + $0x3c] sm:$0xff]
    %v412 = vld [vmem:[#allocation7 + $0x44] sm:$0xf]
    %v413 = vld [vmem:[#allocation7 + $0x48] sm:$0xff]
    %v414 = vld [vmem:[#allocation7 + $0x50] sm:$0xf]
    %v415 = vld [vmem:[#allocation7 + $0x54] sm:$0xff]
    %v416 = vld [vmem:[#allocation7 + $0x5c] sm:$0xf]
    %v417 = vld [vmem:[#allocation7 + $0x60] sm:$0xff]
    %v418 = vld [vmem:[#allocation7 + $0x68] sm:$0xf]
    %v419 = vld [vmem:[#allocation7 + $0x6c] sm:$0xff]
    %v420 = vld [vmem:[#allocation7 + $0x74] sm:$0xf]
    %v421 = vld [vmem:[#allocation7 + $0x78] sm:$0xff]
    %v422 = vld [vmem:[#allocation7 + $0x80] sm:$0xf]
    %v423 = vld [vmem:[#allocation7 + $0x84] sm:$0xff]
    %v424 = vld [vmem:[#allocation7 + $0x8c] sm:$0xf]
    %v425 = vld [vmem:[#allocation7 + $0x90] sm:$0xff]
    %v426 = vld [vmem:[#allocation7 + $0x98] sm:$0xf]
    %v427 = vld [vmem:[#allocation7 + $0x9c] sm:$0xff]
    %v428 = vld [vmem:[#allocation7 + $0xa4] sm:$0xf]
    %v429 = vld [vmem:[#allocation7 + $0xa8] sm:$0xff]
    %v430 = vld [vmem:[#allocation7 + $0xb0] sm:$0xf]
    %v431 = vld [vmem:[#allocation7 + $0xb4] sm:$0xff]
    %v432 = vld [vmem:[#allocation7 + $0xbc] sm:$0xf]
    %v465 = vunpack.c.l.b16 %v401
    %v466 = vunpack.c.h.b16 %v401
    %v467 = vunpack.c.l.b16 %v402
    %v468 = vunpack.c.l.b16 %v403
    %v469 = vunpack.c.h.b16 %v403
    %v470 = vunpack.c.l.b16 %v404
    %v471 = vunpack.c.l.b16 %v405
    %v472 = vunpack.c.h.b16 %v405
    %v473 = vunpack.c.l.b16 %v406
    %v474 = vunpack.c.l.b16 %v407
    %v475 = vunpack.c.h.b16 %v407
    %v476 = vunpack.c.l.b16 %v408
    %v477 = vunpack.c.l.b16 %v409
    %v478 = vunpack.c.h.b16 %v409
    %v479 = vunpack.c.l.b16 %v410
    %v480 = vunpack.c.l.b16 %v411
    %v481 = vunpack.c.h.b16 %v411
    %v482 = vunpack.c.l.b16 %v412
    %v483 = vunpack.c.l.b16 %v413
    %v484 = vunpack.c.h.b16 %v413
    %v485 = vunpack.c.l.b16 %v414
    %v486 = vunpack.c.l.b16 %v415
    %v487 = vunpack.c.h.b16 %v415
    %v488 = vunpack.c.l.b16 %v416
    %v489 = vunpack.c.l.b16 %v417
    %v490 = vunpack.c.h.b16 %v417
    %v491 = vunpack.c.l.b16 %v418
    %v492 = vunpack.c.l.b16 %v419
    %v493 = vunpack.c.h.b16 %v419
    %v494 = vunpack.c.l.b16 %v420
    %v495 = vunpack.c.l.b16 %v421
    %v496 = vunpack.c.h.b16 %v421
    %v497 = vunpack.c.l.b16 %v422
    %v498 = vunpack.c.l.b16 %v423
    %v499 = vunpack.c.h.b16 %v423
    %v500 = vunpack.c.l.b16 %v424
    %v501 = vunpack.c.l.b16 %v425
    %v502 = vunpack.c.h.b16 %v425
    %v503 = vunpack.c.l.b16 %v426
    %v504 = vunpack.c.l.b16 %v427
    %v505 = vunpack.c.h.b16 %v427
    %v506 = vunpack.c.l.b16 %v428
    %v507 = vunpack.c.l.b16 %v429
    %v508 = vunpack.c.h.b16 %v429
    %v509 = vunpack.c.l.b16 %v430
    %v510 = vunpack.c.l.b16 %v431
    %v511 = vunpack.c.h.b16 %v431
    %v512 = vunpack.c.l.b16 %v432
    %v513 = vpack.c.b16 %v468, %v465
    %v514 = vpack.c.b16 %v469, %v466
    %v515 = vpack.c.b16 %v470, %v467
    %v516 = vpack.c.b16 %v474, %v471
    %v517 = vpack.c.b16 %v475, %v472
    %v518 = vpack.c.b16 %v476, %v473
    %v519 = vpack.c.b16 %v480, %v477
    %v520 = vpack.c.b16 %v481, %v478
    %v521 = vpack.c.b16 %v482, %v479
    %v522 = vpack.c.b16 %v486, %v483
    %v523 = vpack.c.b16 %v487, %v484
    %v524 = vpack.c.b16 %v488, %v485
    %v525 = vpack.c.b16 %v492, %v489
    %v526 = vpack.c.b16 %v493, %v490
    %v527 = vpack.c.b16 %v494, %v491
    %v528 = vpack.c.b16 %v498, %v495
    %v529 = vpack.c.b16 %v499, %v496
    %v530 = vpack.c.b16 %v500, %v497
    %v531 = vpack.c.b16 %v504, %v501
    %v532 = vpack.c.b16 %v505, %v502
    %v533 = vpack.c.b16 %v506, %v503
    %v534 = vpack.c.b16 %v510, %v507
    %v535 = vpack.c.b16 %v511, %v508
    %v536 = vpack.c.b16 %v512, %v509
    %561 = vmatpush.bf16.msra.mxu0 %v534
    %562 = vmatpush.bf16.msra.mxu0 %v531
    %563 = vmatpush.bf16.msra.mxu0 %v528
    %564 = vmatpush.bf16.msra.mxu0 %v525
    %565 = vmatpush.bf16.msra.mxu0 %v522
    %566 = vmatpush.bf16.msra.mxu0 %v519
    %567 = vmatpush.bf16.msra.mxu0 %v516
    %568 = vmatpush.bf16.msra.mxu0 %v513
    %569 = vmatmul.bf16.gmra.mxu0 %v400
    %v570 = vpop.f32.mrf.mxu0
    %v571 = vadd.f32 0.0, %v570
    %v572 = vpop.f32.mrf.mxu0
    %v573 = vadd.f32 0.0, %v572
    %574 = vdwg.mxu0
    %575 = vmatpush.bf16.msra.mxu0 %v535
    %576 = vmatpush.bf16.msra.mxu0 %v532
    %577 = vmatpush.bf16.msra.mxu0 %v529
    %578 = vmatpush.bf16.msra.mxu0 %v526
    %579 = vmatpush.bf16.msra.mxu0 %v523
    %580 = vmatpush.bf16.msra.mxu0 %v520
    %581 = vmatpush.bf16.msra.mxu0 %v517
    %582 = vmatpush.bf16.msra.mxu0 %v514
    %583 = vmatmul.bf16.gmra.mxu0 %v400
    %v584 = vpop.f32.mrf.mxu0
    %v585 = vadd.f32 0.0, %v584
    %v586 = vpop.f32.mrf.mxu0
    %v587 = vadd.f32 0.0, %v586
    %588 = vdwg.mxu0
    %589 = vmatpush.bf16.msra.mxu0 %v536
    %590 = vmatpush.bf16.msra.mxu0 %v533
    %591 = vmatpush.bf16.msra.mxu0 %v530
    %592 = vmatpush.bf16.msra.mxu0 %v527
    %593 = vmatpush.bf16.msra.mxu0 %v524
    %594 = vmatpush.bf16.msra.mxu0 %v521
    %595 = vmatpush.bf16.msra.mxu0 %v518
    %596 = vmatpush.bf16.msra.mxu0 %v515
    %597 = vmatmul.bf16.gmra.mxu0 %v400
    %v598 = vpop.f32.mrf.mxu0
    %v599 = vadd.f32 0.0, %v598
    %v600 = vpop.f32.mrf.mxu0
    %v601 = vadd.f32 0.0, %v600
    %602 = vdwg.mxu0
    %603 = vrot.lane.b32.xlu0 %v571, 16
    %v604 = vpop.permute.xlu0 %603
    %605 = vrot.lane.b32.xlu0 %v573, 16
    %v606 = vpop.permute.xlu0 %605
    %607 = vrot.lane.b32.xlu0 %v571, 112
    %v608 = vpop.permute.xlu0 %607
    %609 = vrot.lane.b32.xlu0 %v573, 112
    %v610 = vpop.permute.xlu0 %609
    %v611 = vmul.f32 %v571, %v340
    %v612 = vmul.f32 %v573, %v340
    %v613 = vmul.f32 %v604, %v341
    %v614 = vmul.f32 %v606, %v341
    %v615 = vadd.f32 %v611, %v613
    %v616 = vadd.f32 %v612, %v614
    %v617 = vmul.f32 %v608, %v342
    %v618 = vmul.f32 %v610, %v342
    %v619 = vsub.f32 %v615, %v617
    %v620 = vsub.f32 %v616, %v618
    %621 = vrot.lane.b32.xlu0 %v585, 16
    %v622 = vpop.permute.xlu0 %621
    %623 = vrot.lane.b32.xlu0 %v587, 16
    %v624 = vpop.permute.xlu0 %623
    %625 = vrot.lane.b32.xlu0 %v585, 112
    %v626 = vpop.permute.xlu0 %625
    %627 = vrot.lane.b32.xlu0 %v587, 112
    %v628 = vpop.permute.xlu0 %627
    %v629 = vmul.f32 %v585, %v340
    %v630 = vmul.f32 %v587, %v340
    %v631 = vmul.f32 %v622, %v341
    %v632 = vmul.f32 %v624, %v341
    %v633 = vadd.f32 %v629, %v631
    %v634 = vadd.f32 %v630, %v632
    %v635 = vmul.f32 %v626, %v342
    %v636 = vmul.f32 %v628, %v342
    %v637 = vsub.f32 %v633, %v635
    %v638 = vsub.f32 %v634, %v636
    %v643 = vperm.slane %v336, 0
    %v644 = vperm.slane %v337, 0
    %v645 = vperm.slane %v338, 0
    %v646 = vperm.slane %v339, 0
    %v651 = vmul.f32 %v619, %v643
    %v652 = vmul.f32 %v619, %v644
    %v653 = vmul.f32 %v619, %v645
    %v654 = vmul.f32 %v619, %v646
    %v655 = vpack.c.bf16 %v652, %v651
    %v656 = vpack.c.bf16 %v654, %v653
    %v657 = vpack.c.bf16 %v637, %v637
    %658 = vmatpush.bf16.xpose.msra.mxu0 0
    %659 = vmatpush.bf16.xpose.msra.mxu0 0
    %660 = vmatpush.bf16.xpose.msra.mxu0 0
    %661 = vmatpush.bf16.xpose.msra.mxu0 0
    %662 = vmatpush.bf16.xpose.msra.mxu0 0
    %663 = vmatpush.bf16.xpose.msra.mxu0 0
    %664 = vmatpush.bf16.xpose.msra.mxu0 0
    %665 = vmatpush.bf16.xpose.msra.mxu0 %v657
    %666 = vmatmul.bf16.gmra.mxu0 %v655
    %v667 = vpop.f32.mrf.mxu0
    %v668 = vadd.f32 0.0, %v667
    %v669 = vpop.f32.mrf.mxu0
    %v670 = vadd.f32 0.0, %v669
    %671 = vmatmul.bf16.gmra.mxu0 %v656
    %v672 = vpop.f32.mrf.mxu0
    %v673 = vadd.f32 0.0, %v672
    %v674 = vpop.f32.mrf.mxu0
    %v675 = vadd.f32 0.0, %v674
    %676 = vdwg.mxu0
    %v677 = vmul.f32 %v668, 0.17677669
    %v678 = vmul.f32 %v670, 0.17677669
    %v679 = vmul.f32 %v673, 0.17677669
    %v680 = vmul.f32 %v675, 0.17677669
    %v681 = vadd.f32 %v677, %v352
    %v682 = vadd.f32 %v678, %v352
    %v683 = vadd.f32 %v679, %v352
    %v684 = vadd.f32 %v680, %v352
    %vm685 = vcmask 64512
    %v686 = vsel %vm685, %v681, -inf
    %687 = vmax.xlane.f32.xlu0 %v686
    %v688 = vpop.xlane.xlu0 %687
    %v689 = vsel %vm685, %v682, -inf
    %690 = vmax.xlane.f32.xlu0 %v689
    %v691 = vpop.xlane.xlu0 %690
    %v692 = vsel %vm685, %v683, -inf
    %693 = vmax.xlane.f32.xlu0 %v692
    %v694 = vpop.xlane.xlu0 %693
    %v695 = vsel %vm685, %v684, -inf
    %696 = vmax.xlane.f32.xlu0 %v695
    %v697 = vpop.xlane.xlu0 %696
    %v698 = vsub.f32 %v681, %v688
    %v699 = vsub.f32 %v682, %v691
    %v700 = vsub.f32 %v683, %v694
    %v701 = vsub.f32 %v684, %v697
    %v702 = vmul.f32 %v698, 1.442695
    %v703 = vpow.pop %v702
    %v704 = vmul.f32 %v699, 1.442695
    %v705 = vpow.pop %v704
    %v706 = vmul.f32 %v700, 1.442695
    %v707 = vpow.pop %v706
    %v708 = vmul.f32 %v701, 1.442695
    %v709 = vpow.pop %v708
    %v710 = vsel %vm685, %v703, 0.0
    %711 = vadd.xlane.f32.xlu0 %v710
    %v712 = vpop.xlane.xlu0 %711
    %v713 = vsel %vm685, %v705, 0.0
    %714 = vadd.xlane.f32.xlu0 %v713
    %v715 = vpop.xlane.xlu0 %714
    %v716 = vsel %vm685, %v707, 0.0
    %717 = vadd.xlane.f32.xlu0 %v716
    %v718 = vpop.xlane.xlu0 %717
    %v719 = vsel %vm685, %v709, 0.0
    %720 = vadd.xlane.f32.xlu0 %v719
    %v721 = vpop.xlane.xlu0 %720
    %v722 = vrcp.pop %v712
    %v723 = vrcp.pop %v715
    %v724 = vrcp.pop %v718
    %v725 = vrcp.pop %v721
    %v726 = vmul.f32 %v703, %v722
    %v727 = vmul.f32 %v705, %v723
    %v728 = vmul.f32 %v707, %v724
    %v729 = vmul.f32 %v709, %v725
    %v730 = vpack.c.bf16 %v727, %v726
    %v731 = vpack.c.bf16 %v729, %v728
    %v732 = vpack.c.bf16 %v599, %v599
    %v734 = vsel %vm685, %v730, 0
    %v737 = vsel %vm685, %v731, 0
    %vm739 = vcmask 1043456
    %v741 = vsel %vm739, %v732, 0
    %743 = vmatpush.bf16.msra.mxu0 0
    %744 = vmatpush.bf16.msra.mxu0 0
    %745 = vmatpush.bf16.msra.mxu0 0
    %746 = vmatpush.bf16.msra.mxu0 0
    %747 = vmatpush.bf16.msra.mxu0 0
    %748 = vmatpush.bf16.msra.mxu0 0
    %749 = vmatpush.bf16.msra.mxu0 0
    %750 = vmatpush.bf16.msra.mxu0 %v741
    %751 = vmatmul.bf16.gmra.mxu0 %v734
    %v752 = vpop.f32.mrf.mxu0
    %v753 = vadd.f32 0.0, %v752
    %v754 = vpop.f32.mrf.mxu0
    %v755 = vadd.f32 0.0, %v754
    %756 = vmatmul.bf16.gmra.mxu0 %v737
    %v757 = vpop.f32.mrf.mxu0
    %v758 = vadd.f32 0.0, %v757
    %v759 = vpop.f32.mrf.mxu0
    %v760 = vadd.f32 0.0, %v759
    %761 = vdwg.mxu0
    %v762 = vmul.f32 %v753, %v643
    %v763 = vmul.f32 %v755, %v644
    %v764 = vmul.f32 %v758, %v645
    %v765 = vmul.f32 %v760, %v646
    %v766 = vadd.f32 %v762, %v763
    %v767 = vadd.f32 %v766, %v764
    %v768 = vadd.f32 %v767, %v765
    %v769 = vmul.f32 %v620, %v643
    %v770 = vmul.f32 %v620, %v644
    %v771 = vmul.f32 %v620, %v645
    %v772 = vmul.f32 %v620, %v646
    %v773 = vpack.c.bf16 %v770, %v769
    %v774 = vpack.c.bf16 %v772, %v771
    %v775 = vpack.c.bf16 %v638, %v638
    %776 = vmatpush.bf16.xpose.msra.mxu0 0
    %777 = vmatpush.bf16.xpose.msra.mxu0 0
    %778 = vmatpush.bf16.xpose.msra.mxu0 0
    %779 = vmatpush.bf16.xpose.msra.mxu0 0
    %780 = vmatpush.bf16.xpose.msra.mxu0 0
    %781 = vmatpush.bf16.xpose.msra.mxu0 0
    %782 = vmatpush.bf16.xpose.msra.mxu0 0
    %783 = vmatpush.bf16.xpose.msra.mxu0 %v775
    %784 = vmatmul.bf16.gmra.mxu0 %v773
    %v785 = vpop.f32.mrf.mxu0
    %v786 = vadd.f32 0.0, %v785
    %v787 = vpop.f32.mrf.mxu0
    %v788 = vadd.f32 0.0, %v787
    %789 = vmatmul.bf16.gmra.mxu0 %v774
    %v790 = vpop.f32.mrf.mxu0
    %v791 = vadd.f32 0.0, %v790
    %v792 = vpop.f32.mrf.mxu0
    %v793 = vadd.f32 0.0, %v792
    %794 = vdwg.mxu0
    %v795 = vmul.f32 %v786, 0.17677669
    %v796 = vmul.f32 %v788, 0.17677669
    %v797 = vmul.f32 %v791, 0.17677669
    %v798 = vmul.f32 %v793, 0.17677669
    %v799 = vadd.f32 %v795, %v354
    %v800 = vadd.f32 %v796, %v354
    %v801 = vadd.f32 %v797, %v354
    %v802 = vadd.f32 %v798, %v354
    %v803 = vsel %vm685, %v799, -inf
    %804 = vmax.xlane.f32.xlu0 %v803
    %v805 = vpop.xlane.xlu0 %804
    %v806 = vsel %vm685, %v800, -inf
    %807 = vmax.xlane.f32.xlu0 %v806
    %v808 = vpop.xlane.xlu0 %807
    %v809 = vsel %vm685, %v801, -inf
    %810 = vmax.xlane.f32.xlu0 %v809
    %v811 = vpop.xlane.xlu0 %810
    %v812 = vsel %vm685, %v802, -inf
    %813 = vmax.xlane.f32.xlu0 %v812
    %v814 = vpop.xlane.xlu0 %813
    %v815 = vsub.f32 %v799, %v805
    %v816 = vsub.f32 %v800, %v808
    %v817 = vsub.f32 %v801, %v811
    %v818 = vsub.f32 %v802, %v814
    %v819 = vmul.f32 %v815, 1.442695
    %v820 = vpow.pop %v819
    %v821 = vmul.f32 %v816, 1.442695
    %v822 = vpow.pop %v821
    %v823 = vmul.f32 %v817, 1.442695
    %v824 = vpow.pop %v823
    %v825 = vmul.f32 %v818, 1.442695
    %v826 = vpow.pop %v825
    %v827 = vsel %vm685, %v820, 0.0
    %828 = vadd.xlane.f32.xlu0 %v827
    %v829 = vpop.xlane.xlu0 %828
    %v830 = vsel %vm685, %v822, 0.0
    %831 = vadd.xlane.f32.xlu0 %v830
    %v832 = vpop.xlane.xlu0 %831
    %v833 = vsel %vm685, %v824, 0.0
    %834 = vadd.xlane.f32.xlu0 %v833
    %v835 = vpop.xlane.xlu0 %834
    %v836 = vsel %vm685, %v826, 0.0
    %837 = vadd.xlane.f32.xlu0 %v836
    %v838 = vpop.xlane.xlu0 %837
    %v839 = vrcp.pop %v829
    %v840 = vrcp.pop %v832
    %v841 = vrcp.pop %v835
    %v842 = vrcp.pop %v838
    %v843 = vmul.f32 %v820, %v839
    %v844 = vmul.f32 %v822, %v840
    %v845 = vmul.f32 %v824, %v841
    %v846 = vmul.f32 %v826, %v842
    %v847 = vpack.c.bf16 %v844, %v843
    %v848 = vpack.c.bf16 %v846, %v845
    %v849 = vpack.c.bf16 %v601, %v601
    %v851 = vsel %vm685, %v847, 0
    %v854 = vsel %vm685, %v848, 0
    %v857 = vsel %vm739, %v849, 0
    %859 = vmatpush.bf16.msra.mxu0 0
    %860 = vmatpush.bf16.msra.mxu0 0
    %861 = vmatpush.bf16.msra.mxu0 0
    %862 = vmatpush.bf16.msra.mxu0 0
    %863 = vmatpush.bf16.msra.mxu0 0
    %864 = vmatpush.bf16.msra.mxu0 0
    %865 = vmatpush.bf16.msra.mxu0 0
    %866 = vmatpush.bf16.msra.mxu0 %v857
    %867 = vmatmul.bf16.gmra.mxu0 %v851
    %v868 = vpop.f32.mrf.mxu0
    %v869 = vadd.f32 0.0, %v868
    %v870 = vpop.f32.mrf.mxu0
    %v871 = vadd.f32 0.0, %v870
    %872 = vmatmul.bf16.gmra.mxu0 %v854
    %v873 = vpop.f32.mrf.mxu0
    %v874 = vadd.f32 0.0, %v873
    %v875 = vpop.f32.mrf.mxu0
    %v876 = vadd.f32 0.0, %v875
    %877 = vdwg.mxu0
    %v878 = vmul.f32 %v869, %v643
    %v879 = vmul.f32 %v871, %v644
    %v880 = vmul.f32 %v874, %v645
    %v881 = vmul.f32 %v876, %v646
    %v882 = vadd.f32 %v878, %v879
    %v883 = vadd.f32 %v882, %v880
    %v884 = vadd.f32 %v883, %v881
    %v885 = vpack.c.bf16 %v884, %v768
    %v886 = vld [vmem:[#allocation8] sm:$0xf]
    %v887 = vld [vmem:[#allocation8 + $0x4] sm:$0xf]
    %v888 = vld [vmem:[#allocation8 + $0x8] sm:$0xf]
    %v889 = vld [vmem:[#allocation8 + $0xc] sm:$0xf]
    %v890 = vld [vmem:[#allocation8 + $0x10] sm:$0xf]
    %v891 = vld [vmem:[#allocation8 + $0x14] sm:$0xf]
    %v892 = vld [vmem:[#allocation8 + $0x18] sm:$0xf]
    %v893 = vld [vmem:[#allocation8 + $0x1c] sm:$0xf]
    %v894 = vld [vmem:[#allocation8 + $0x20] sm:$0xf]
    %v895 = vld [vmem:[#allocation8 + $0x24] sm:$0xf]
    %v896 = vld [vmem:[#allocation8 + $0x28] sm:$0xf]
    %v897 = vld [vmem:[#allocation8 + $0x2c] sm:$0xf]
    %v898 = vld [vmem:[#allocation8 + $0x30] sm:$0xf]
    %v899 = vld [vmem:[#allocation8 + $0x34] sm:$0xf]
    %v900 = vld [vmem:[#allocation8 + $0x38] sm:$0xf]
    %v901 = vld [vmem:[#allocation8 + $0x3c] sm:$0xf]
    %v918 = vunpack.c.l.b16 %v886
    %v919 = vunpack.c.l.b16 %v887
    %v920 = vunpack.c.l.b16 %v888
    %v921 = vunpack.c.l.b16 %v889
    %v922 = vunpack.c.l.b16 %v890
    %v923 = vunpack.c.l.b16 %v891
    %v924 = vunpack.c.l.b16 %v892
    %v925 = vunpack.c.l.b16 %v893
    %v926 = vunpack.c.l.b16 %v894
    %v927 = vunpack.c.l.b16 %v895
    %v928 = vunpack.c.l.b16 %v896
    %v929 = vunpack.c.l.b16 %v897
    %v930 = vunpack.c.l.b16 %v898
    %v931 = vunpack.c.l.b16 %v899
    %v932 = vunpack.c.l.b16 %v900
    %v933 = vunpack.c.l.b16 %v901
    %v934 = vpack.c.b16 %v919, %v918
    %v935 = vpack.c.b16 %v921, %v920
    %v936 = vpack.c.b16 %v923, %v922
    %v937 = vpack.c.b16 %v925, %v924
    %v938 = vpack.c.b16 %v927, %v926
    %v939 = vpack.c.b16 %v929, %v928
    %v940 = vpack.c.b16 %v931, %v930
    %v941 = vpack.c.b16 %v933, %v932
    %950 = vmatpush.bf16.msra.mxu0 %v941
    %951 = vmatpush.bf16.msra.mxu0 %v940
    %952 = vmatpush.bf16.msra.mxu0 %v939
    %953 = vmatpush.bf16.msra.mxu0 %v938
    %954 = vmatpush.bf16.msra.mxu0 %v937
    %955 = vmatpush.bf16.msra.mxu0 %v936
    %956 = vmatpush.bf16.msra.mxu0 %v935
    %957 = vmatpush.bf16.msra.mxu0 %v934
    %958 = vmatmul.bf16.gmra.mxu0 %v885
    %v959 = vpop.f32.mrf.mxu0
    %v960 = vadd.f32 0.0, %v959
    %v961 = vpop.f32.mrf.mxu0
    %v962 = vadd.f32 0.0, %v961
    %963 = vdwg.mxu0
    %v964 = vadd.f32 %v332, %v960
    %v965 = vadd.f32 %v334, %v962
    %v966 = vld [vmem:[%s10] sm:$0x1]
    %v967 = vmul.f32 %v964, %v964
    %v968 = vmul.f32 %v965, %v965
    %969 = vadd.xlane.f32.xlu0 %v967
    %v970 = vpop.xlane.xlu0 %969
    %971 = vadd.xlane.f32.xlu0 %v968
    %v972 = vpop.xlane.xlu0 %971
    %v973 = vmul.f32 %v970, %v368
    %v974 = vmul.f32 %v972, %v368
    %v975 = vadd.f32 %v973, 1e-06
    %v976 = vadd.f32 %v974, 1e-06
    %v977 = vrsqrt.pop %v975
    %v978 = vmul.f32 %v977, %v975
    %v979 = vmul.f32 %v978, %v977
    %v980 = vmul.f32 0.5, %v979
    %v981 = vsub.f32 1.5, %v980
    %v982 = vmul.f32 %v977, %v981
    %vm983 = vweird.f32 %v975
    %vm984 = vweird.f32 %v977
    %vm985 = vmor %vm983, %vm984
    %v986 = vsel %vm985, %v977, %v982
    %v987 = vrsqrt.pop %v976
    %v988 = vmul.f32 %v987, %v976
    %v989 = vmul.f32 %v988, %v987
    %v990 = vmul.f32 0.5, %v989
    %v991 = vsub.f32 1.5, %v990
    %v992 = vmul.f32 %v987, %v991
    %vm993 = vweird.f32 %v976
    %vm994 = vweird.f32 %v987
    %vm995 = vmor %vm993, %vm994
    %v996 = vsel %vm995, %v987, %v992
    %v997 = vmul.f32 %v964, %v986
    %v998 = vmul.f32 %v965, %v996
    %v1000 = vperm.slane %v966, 0
    %v1002 = vmul.f32 %v997, %v1000
    %v1003 = vmul.f32 %v998, %v1000
    %v1004 = vpack.c.bf16 %v1003, %v1002
    %v1005 = vld [vmem:[#allocation10] sm:$0xff]
    %v1006 = vld [vmem:[#allocation10 + $0x8] sm:$0xff]
    %v1007 = vld [vmem:[#allocation10 + $0x10] sm:$0xff]
    %v1008 = vld [vmem:[#allocation10 + $0x18] sm:$0xff]
    %v1009 = vld [vmem:[#allocation10 + $0x20] sm:$0xff]
    %v1010 = vld [vmem:[#allocation10 + $0x28] sm:$0xff]
    %v1011 = vld [vmem:[#allocation10 + $0x30] sm:$0xff]
    %v1012 = vld [vmem:[#allocation10 + $0x38] sm:$0xff]
    %v1013 = vld [vmem:[#allocation10 + $0x40] sm:$0xff]
    %v1014 = vld [vmem:[#allocation10 + $0x48] sm:$0xff]
    %v1015 = vld [vmem:[#allocation10 + $0x50] sm:$0xff]
    %v1016 = vld [vmem:[#allocation10 + $0x58] sm:$0xff]
    %v1017 = vld [vmem:[#allocation10 + $0x60] sm:$0xff]
    %v1018 = vld [vmem:[#allocation10 + $0x68] sm:$0xff]
    %v1019 = vld [vmem:[#allocation10 + $0x70] sm:$0xff]
    %v1020 = vld [vmem:[#allocation10 + $0x78] sm:$0xff]
    %v1021 = vld [vmem:[#allocation10 + $0x80] sm:$0xff]
    %v1022 = vld [vmem:[#allocation10 + $0x88] sm:$0xff]
    %v1023 = vld [vmem:[#allocation10 + $0x90] sm:$0xff]
    %v1024 = vld [vmem:[#allocation10 + $0x98] sm:$0xff]
    %v1025 = vld [vmem:[#allocation10 + $0xa0] sm:$0xff]
    %v1026 = vld [vmem:[#allocation10 + $0xa8] sm:$0xff]
    %v1027 = vld [vmem:[#allocation10 + $0xb0] sm:$0xff]
    %v1028 = vld [vmem:[#allocation10 + $0xb8] sm:$0xff]
    %v1029 = vld [vmem:[#allocation10 + $0xc0] sm:$0xff]
    %v1030 = vld [vmem:[#allocation10 + $0xc8] sm:$0xff]
    %v1031 = vld [vmem:[#allocation10 + $0xd0] sm:$0xff]
    %v1032 = vld [vmem:[#allocation10 + $0xd8] sm:$0xff]
    %v1033 = vld [vmem:[#allocation10 + $0xe0] sm:$0xff]
    %v1034 = vld [vmem:[#allocation10 + $0xe8] sm:$0xff]
    %v1035 = vld [vmem:[#allocation10 + $0xf0] sm:$0xff]
    %v1036 = vld [vmem:[#allocation10 + $0xf8] sm:$0xff]
    %v1069 = vunpack.c.l.b16 %v1005
    %v1070 = vunpack.c.h.b16 %v1005
    %v1071 = vunpack.c.l.b16 %v1006
    %v1072 = vunpack.c.h.b16 %v1006
    %v1073 = vunpack.c.l.b16 %v1007
    %v1074 = vunpack.c.h.b16 %v1007
    %v1075 = vunpack.c.l.b16 %v1008
    %v1076 = vunpack.c.h.b16 %v1008
    %v1077 = vunpack.c.l.b16 %v1009
    %v1078 = vunpack.c.h.b16 %v1009
    %v1079 = vunpack.c.l.b16 %v1010
    %v1080 = vunpack.c.h.b16 %v1010
    %v1081 = vunpack.c.l.b16 %v1011
    %v1082 = vunpack.c.h.b16 %v1011
    %v1083 = vunpack.c.l.b16 %v1012
    %v1084 = vunpack.c.h.b16 %v1012
    %v1085 = vunpack.c.l.b16 %v1013
    %v1086 = vunpack.c.h.b16 %v1013
    %v1087 = vunpack.c.l.b16 %v1014
    %v1088 = vunpack.c.h.b16 %v1014
    %v1089 = vunpack.c.l.b16 %v1015
    %v1090 = vunpack.c.h.b16 %v1015
    %v1091 = vunpack.c.l.b16 %v1016
    %v1092 = vunpack.c.h.b16 %v1016
    %v1093 = vunpack.c.l.b16 %v1017
    %v1094 = vunpack.c.h.b16 %v1017
    %v1095 = vunpack.c.l.b16 %v1018
    %v1096 = vunpack.c.h.b16 %v1018
    %v1097 = vunpack.c.l.b16 %v1019
    %v1098 = vunpack.c.h.b16 %v1019
    %v1099 = vunpack.c.l.b16 %v1020
    %v1100 = vunpack.c.h.b16 %v1020
    %v1101 = vunpack.c.l.b16 %v1021
    %v1102 = vunpack.c.h.b16 %v1021
    %v1103 = vunpack.c.l.b16 %v1022
    %v1104 = vunpack.c.h.b16 %v1022
    %v1105 = vunpack.c.l.b16 %v1023
    %v1106 = vunpack.c.h.b16 %v1023
    %v1107 = vunpack.c.l.b16 %v1024
    %v1108 = vunpack.c.h.b16 %v1024
    %v1109 = vunpack.c.l.b16 %v1025
    %v1110 = vunpack.c.h.b16 %v1025
    %v1111 = vunpack.c.l.b16 %v1026
    %v1112 = vunpack.c.h.b16 %v1026
    %v1113 = vunpack.c.l.b16 %v1027
    %v1114 = vunpack.c.h.b16 %v1027
    %v1115 = vunpack.c.l.b16 %v1028
    %v1116 = vunpack.c.h.b16 %v1028
    %v1117 = vunpack.c.l.b16 %v1029
    %v1118 = vunpack.c.h.b16 %v1029
    %v1119 = vunpack.c.l.b16 %v1030
    %v1120 = vunpack.c.h.b16 %v1030
    %v1121 = vunpack.c.l.b16 %v1031
    %v1122 = vunpack.c.h.b16 %v1031
    %v1123 = vunpack.c.l.b16 %v1032
    %v1124 = vunpack.c.h.b16 %v1032
    %v1125 = vunpack.c.l.b16 %v1033
    %v1126 = vunpack.c.h.b16 %v1033
    %v1127 = vunpack.c.l.b16 %v1034
    %v1128 = vunpack.c.h.b16 %v1034
    %v1129 = vunpack.c.l.b16 %v1035
    %v1130 = vunpack.c.h.b16 %v1035
    %v1131 = vunpack.c.l.b16 %v1036
    %v1132 = vunpack.c.h.b16 %v1036
    %v1133 = vpack.c.b16 %v1073, %v1069
    %v1134 = vpack.c.b16 %v1074, %v1070
    %v1135 = vpack.c.b16 %v1075, %v1071
    %v1136 = vpack.c.b16 %v1076, %v1072
    %v1137 = vpack.c.b16 %v1081, %v1077
    %v1138 = vpack.c.b16 %v1082, %v1078
    %v1139 = vpack.c.b16 %v1083, %v1079
    %v1140 = vpack.c.b16 %v1084, %v1080
    %v1141 = vpack.c.b16 %v1089, %v1085
    %v1142 = vpack.c.b16 %v1090, %v1086
    %v1143 = vpack.c.b16 %v1091, %v1087
    %v1144 = vpack.c.b16 %v1092, %v1088
    %v1145 = vpack.c.b16 %v1097, %v1093
    %v1146 = vpack.c.b16 %v1098, %v1094
    %v1147 = vpack.c.b16 %v1099, %v1095
    %v1148 = vpack.c.b16 %v1100, %v1096
    %v1149 = vpack.c.b16 %v1105, %v1101
    %v1150 = vpack.c.b16 %v1106, %v1102
    %v1151 = vpack.c.b16 %v1107, %v1103
    %v1152 = vpack.c.b16 %v1108, %v1104
    %v1153 = vpack.c.b16 %v1113, %v1109
    %v1154 = vpack.c.b16 %v1114, %v1110
    %v1155 = vpack.c.b16 %v1115, %v1111
    %v1156 = vpack.c.b16 %v1116, %v1112
    %v1157 = vpack.c.b16 %v1121, %v1117
    %v1158 = vpack.c.b16 %v1122, %v1118
    %v1159 = vpack.c.b16 %v1123, %v1119
    %v1160 = vpack.c.b16 %v1124, %v1120
    %v1161 = vpack.c.b16 %v1129, %v1125
    %v1162 = vpack.c.b16 %v1130, %v1126
    %v1163 = vpack.c.b16 %v1131, %v1127
    %v1164 = vpack.c.b16 %v1132, %v1128
    %1197 = vmatpush.bf16.msra.mxu0 %v1161
    %1198 = vmatpush.bf16.msra.mxu0 %v1157
    %1199 = vmatpush.bf16.msra.mxu0 %v1153
    %1200 = vmatpush.bf16.msra.mxu0 %v1149
    %1201 = vmatpush.bf16.msra.mxu0 %v1145
    %1202 = vmatpush.bf16.msra.mxu0 %v1141
    %1203 = vmatpush.bf16.msra.mxu0 %v1137
    %1204 = vmatpush.bf16.msra.mxu0 %v1133
    %1205 = vmatmul.bf16.gmra.mxu0 %v1004
    %v1206 = vpop.f32.mrf.mxu0
    %v1207 = vadd.f32 0.0, %v1206
    %v1208 = vpop.f32.mrf.mxu0
    %v1209 = vadd.f32 0.0, %v1208
    %1210 = vdwg.mxu0
    %1211 = vmatpush.bf16.msra.mxu0 %v1162
    %1212 = vmatpush.bf16.msra.mxu0 %v1158
    %1213 = vmatpush.bf16.msra.mxu0 %v1154
    %1214 = vmatpush.bf16.msra.mxu0 %v1150
    %1215 = vmatpush.bf16.msra.mxu0 %v1146
    %1216 = vmatpush.bf16.msra.mxu0 %v1142
    %1217 = vmatpush.bf16.msra.mxu0 %v1138
    %1218 = vmatpush.bf16.msra.mxu0 %v1134
    %1219 = vmatmul.bf16.gmra.mxu0 %v1004
    %v1220 = vpop.f32.mrf.mxu0
    %v1221 = vadd.f32 0.0, %v1220
    %v1222 = vpop.f32.mrf.mxu0
    %v1223 = vadd.f32 0.0, %v1222
    %1224 = vdwg.mxu0
    %1225 = vmatpush.bf16.msra.mxu0 %v1163
    %1226 = vmatpush.bf16.msra.mxu0 %v1159
    %1227 = vmatpush.bf16.msra.mxu0 %v1155
    %1228 = vmatpush.bf16.msra.mxu0 %v1151
    %1229 = vmatpush.bf16.msra.mxu0 %v1147
    %1230 = vmatpush.bf16.msra.mxu0 %v1143
    %1231 = vmatpush.bf16.msra.mxu0 %v1139
    %1232 = vmatpush.bf16.msra.mxu0 %v1135
    %1233 = vmatmul.bf16.gmra.mxu0 %v1004
    %v1234 = vpop.f32.mrf.mxu0
    %v1235 = vadd.f32 0.0, %v1234
    %v1236 = vpop.f32.mrf.mxu0
    %v1237 = vadd.f32 0.0, %v1236
    %1238 = vdwg.mxu0
    %1239 = vmatpush.bf16.msra.mxu0 %v1164
    %1240 = vmatpush.bf16.msra.mxu0 %v1160
    %1241 = vmatpush.bf16.msra.mxu0 %v1156
    %1242 = vmatpush.bf16.msra.mxu0 %v1152
    %1243 = vmatpush.bf16.msra.mxu0 %v1148
    %1244 = vmatpush.bf16.msra.mxu0 %v1144
    %1245 = vmatpush.bf16.msra.mxu0 %v1140
    %1246 = vmatpush.bf16.msra.mxu0 %v1136
    %1247 = vmatmul.bf16.gmra.mxu0 %v1004
    %v1248 = vpop.f32.mrf.mxu0
    %v1249 = vadd.f32 0.0, %v1248
    %v1250 = vpop.f32.mrf.mxu0
    %v1251 = vadd.f32 0.0, %v1250
    %1252 = vdwg.mxu0
    %v1253 = vsub.f32 0.0, %v1207
    %v1254 = vsub.f32 0.0, %v1221
    %v1255 = vsub.f32 0.0, %v1209
    %v1256 = vsub.f32 0.0, %v1223
    %v1257 = vmul.f32 %v1253, 1.442695
    %v1258 = vpow.pop %v1257
    %v1259 = vmul.f32 %v1254, 1.442695
    %v1260 = vpow.pop %v1259
    %v1261 = vmul.f32 %v1255, 1.442695
    %v1262 = vpow.pop %v1261
    %v1263 = vmul.f32 %v1256, 1.442695
    %v1264 = vpow.pop %v1263
    %v1265 = vadd.f32 %v1258, 1.0
    %v1266 = vadd.f32 %v1260, 1.0
    %v1267 = vadd.f32 %v1262, 1.0
    %v1268 = vadd.f32 %v1264, 1.0
    %v1269 = vrcp.pop %v1265
    %v1270 = vmul.f32 %v1265, %v1269
    %v1271 = vsub.f32 1.0, %v1270
    %v1272 = vmul.f32 %v1269, %v1271
    %v1273 = vadd.f32 %v1269, %v1272
    %vm1274 = vweird.f32 %v1265
    %vm1275 = vweird.f32 %v1269
    %vm1276 = vmor %vm1274, %vm1275
    %v1277 = vsel %vm1276, %v1269, %v1273
    %v1278 = vand.u32 2147483647, %v1265
    %vm1279 = vcmp.eq.f32.partialorder %v1278, 8.507059e+37
    %v1280 = vand.u32 %v1265, 2147483648
    %v1281 = vor.u32 1.1754944e-38, %v1280
    %v1282 = vsel %vm1279, %v1281, %v1277
    %v1283 = vmul.f32 1.0, %v1282
    %v1284 = vrcp.pop %v1266
    %v1285 = vmul.f32 %v1266, %v1284
    %v1286 = vsub.f32 1.0, %v1285
    %v1287 = vmul.f32 %v1284, %v1286
    %v1288 = vadd.f32 %v1284, %v1287
    %vm1289 = vweird.f32 %v1266
    %vm1290 = vweird.f32 %v1284
    %vm1291 = vmor %vm1289, %vm1290
    %v1292 = vsel %vm1291, %v1284, %v1288
    %v1293 = vand.u32 2147483647, %v1266
    %vm1294 = vcmp.eq.f32.partialorder %v1293, 8.507059e+37
    %v1295 = vand.u32 %v1266, 2147483648
    %v1296 = vor.u32 1.1754944e-38, %v1295
    %v1297 = vsel %vm1294, %v1296, %v1292
    %v1298 = vmul.f32 1.0, %v1297
    %v1299 = vrcp.pop %v1267
    %v1300 = vmul.f32 %v1267, %v1299
    %v1301 = vsub.f32 1.0, %v1300
    %v1302 = vmul.f32 %v1299, %v1301
    %v1303 = vadd.f32 %v1299, %v1302
    %vm1304 = vweird.f32 %v1267
    %vm1305 = vweird.f32 %v1299
    %vm1306 = vmor %vm1304, %vm1305
    %v1307 = vsel %vm1306, %v1299, %v1303
    %v1308 = vand.u32 2147483647, %v1267
    %vm1309 = vcmp.eq.f32.partialorder %v1308, 8.507059e+37
    %v1310 = vand.u32 %v1267, 2147483648
    %v1311 = vor.u32 1.1754944e-38, %v1310
    %v1312 = vsel %vm1309, %v1311, %v1307
    %v1313 = vmul.f32 1.0, %v1312
    %v1314 = vrcp.pop %v1268
    %v1315 = vmul.f32 %v1268, %v1314
    %v1316 = vsub.f32 1.0, %v1315
    %v1317 = vmul.f32 %v1314, %v1316
    %v1318 = vadd.f32 %v1314, %v1317
    %vm1319 = vweird.f32 %v1268
    %vm1320 = vweird.f32 %v1314
    %vm1321 = vmor %vm1319, %vm1320
    %v1322 = vsel %vm1321, %v1314, %v1318
    %v1323 = vand.u32 2147483647, %v1268
    %vm1324 = vcmp.eq.f32.partialorder %v1323, 8.507059e+37
    %v1325 = vand.u32 %v1268, 2147483648
    %v1326 = vor.u32 1.1754944e-38, %v1325
    %v1327 = vsel %vm1324, %v1326, %v1322
    %v1328 = vmul.f32 1.0, %v1327
    %v1329 = vmul.f32 %v1207, %v1283
    %v1330 = vmul.f32 %v1221, %v1298
    %v1331 = vmul.f32 %v1209, %v1313
    %v1332 = vmul.f32 %v1223, %v1328
    %v1333 = vmul.f32 %v1329, %v1235
    %v1334 = vmul.f32 %v1330, %v1249
    %v1335 = vmul.f32 %v1331, %v1237
    %v1336 = vmul.f32 %v1332, %v1251
    %v1337 = vpack.c.bf16 %v1335, %v1333
    %v1338 = vpack.c.bf16 %v1336, %v1334
    %v1339 = vld [vmem:[#allocation11] sm:$0xf]
    %v1340 = vld [vmem:[#allocation11 + $0x4] sm:$0xf]
    %v1341 = vld [vmem:[#allocation11 + $0x8] sm:$0xf]
    %v1342 = vld [vmem:[#allocation11 + $0xc] sm:$0xf]
    %v1343 = vld [vmem:[#allocation11 + $0x10] sm:$0xf]
    %v1344 = vld [vmem:[#allocation11 + $0x14] sm:$0xf]
    %v1345 = vld [vmem:[#allocation11 + $0x18] sm:$0xf]
    %v1346 = vld [vmem:[#allocation11 + $0x1c] sm:$0xf]
    %v1347 = vld [vmem:[#allocation11 + $0x20] sm:$0xf]
    %v1348 = vld [vmem:[#allocation11 + $0x24] sm:$0xf]
    %v1349 = vld [vmem:[#allocation11 + $0x28] sm:$0xf]
    %v1350 = vld [vmem:[#allocation11 + $0x2c] sm:$0xf]
    %v1351 = vld [vmem:[#allocation11 + $0x30] sm:$0xf]
    %v1352 = vld [vmem:[#allocation11 + $0x34] sm:$0xf]
    %v1353 = vld [vmem:[#allocation11 + $0x38] sm:$0xf]
    %v1354 = vld [vmem:[#allocation11 + $0x3c] sm:$0xf]
    %v1355 = vld [vmem:[#allocation11 + $0x40] sm:$0xf]
    %v1356 = vld [vmem:[#allocation11 + $0x44] sm:$0xf]
    %v1357 = vld [vmem:[#allocation11 + $0x48] sm:$0xf]
    %v1358 = vld [vmem:[#allocation11 + $0x4c] sm:$0xf]
    %v1359 = vld [vmem:[#allocation11 + $0x50] sm:$0xf]
    %v1360 = vld [vmem:[#allocation11 + $0x54] sm:$0xf]
    %v1361 = vld [vmem:[#allocation11 + $0x58] sm:$0xf]
    %v1362 = vld [vmem:[#allocation11 + $0x5c] sm:$0xf]
    %v1363 = vld [vmem:[#allocation11 + $0x60] sm:$0xf]
    %v1364 = vld [vmem:[#allocation11 + $0x64] sm:$0xf]
    %v1365 = vld [vmem:[#allocation11 + $0x68] sm:$0xf]
    %v1366 = vld [vmem:[#allocation11 + $0x6c] sm:$0xf]
    %v1367 = vld [vmem:[#allocation11 + $0x70] sm:$0xf]
    %v1368 = vld [vmem:[#allocation11 + $0x74] sm:$0xf]
    %v1369 = vld [vmem:[#allocation11 + $0x78] sm:$0xf]
    %v1370 = vld [vmem:[#allocation11 + $0x7c] sm:$0xf]
    %v1403 = vunpack.c.l.b16 %v1339
    %v1404 = vunpack.c.l.b16 %v1340
    %v1405 = vunpack.c.l.b16 %v1341
    %v1406 = vunpack.c.l.b16 %v1342
    %v1407 = vunpack.c.l.b16 %v1343
    %v1408 = vunpack.c.l.b16 %v1344
    %v1409 = vunpack.c.l.b16 %v1345
    %v1410 = vunpack.c.l.b16 %v1346
    %v1411 = vunpack.c.l.b16 %v1347
    %v1412 = vunpack.c.l.b16 %v1348
    %v1413 = vunpack.c.l.b16 %v1349
    %v1414 = vunpack.c.l.b16 %v1350
    %v1415 = vunpack.c.l.b16 %v1351
    %v1416 = vunpack.c.l.b16 %v1352
    %v1417 = vunpack.c.l.b16 %v1353
    %v1418 = vunpack.c.l.b16 %v1354
    %v1419 = vunpack.c.l.b16 %v1355
    %v1420 = vunpack.c.l.b16 %v1356
    %v1421 = vunpack.c.l.b16 %v1357
    %v1422 = vunpack.c.l.b16 %v1358
    %v1423 = vunpack.c.l.b16 %v1359
    %v1424 = vunpack.c.l.b16 %v1360
    %v1425 = vunpack.c.l.b16 %v1361
    %v1426 = vunpack.c.l.b16 %v1362
    %v1427 = vunpack.c.l.b16 %v1363
    %v1428 = vunpack.c.l.b16 %v1364
    %v1429 = vunpack.c.l.b16 %v1365
    %v1430 = vunpack.c.l.b16 %v1366
    %v1431 = vunpack.c.l.b16 %v1367
    %v1432 = vunpack.c.l.b16 %v1368
    %v1433 = vunpack.c.l.b16 %v1369
    %v1434 = vunpack.c.l.b16 %v1370
    %v1435 = vpack.c.b16 %v1404, %v1403
    %v1436 = vpack.c.b16 %v1406, %v1405
    %v1437 = vpack.c.b16 %v1408, %v1407
    %v1438 = vpack.c.b16 %v1410, %v1409
    %v1439 = vpack.c.b16 %v1412, %v1411
    %v1440 = vpack.c.b16 %v1414, %v1413
    %v1441 = vpack.c.b16 %v1416, %v1415
    %v1442 = vpack.c.b16 %v1418, %v1417
    %v1443 = vpack.c.b16 %v1420, %v1419
    %v1444 = vpack.c.b16 %v1422, %v1421
    %v1445 = vpack.c.b16 %v1424, %v1423
    %v1446 = vpack.c.b16 %v1426, %v1425
    %v1447 = vpack.c.b16 %v1428, %v1427
    %v1448 = vpack.c.b16 %v1430, %v1429
    %v1449 = vpack.c.b16 %v1432, %v1431
    %v1450 = vpack.c.b16 %v1434, %v1433
    %1467 = vmatpush.bf16.msra.mxu0 %v1442
    %1468 = vmatpush.bf16.msra.mxu0 %v1441
    %1469 = vmatpush.bf16.msra.mxu0 %v1440
    %1470 = vmatpush.bf16.msra.mxu0 %v1439
    %1471 = vmatpush.bf16.msra.mxu0 %v1438
    %1472 = vmatpush.bf16.msra.mxu0 %v1437
    %1473 = vmatpush.bf16.msra.mxu0 %v1436
    %1474 = vmatpush.bf16.msra.mxu0 %v1435
    %1475 = vmatmul.bf16.gmra.mxu0 %v1337
    %v1476 = vpop.f32.mrf.mxu0
    %v1477 = vadd.f32 0.0, %v1476
    %v1478 = vpop.f32.mrf.mxu0
    %v1479 = vadd.f32 0.0, %v1478
    %1480 = vdwg.mxu0
    %1481 = vmatpush.bf16.msra.mxu0 %v1450
    %1482 = vmatpush.bf16.msra.mxu0 %v1449
    %1483 = vmatpush.bf16.msra.mxu0 %v1448
    %1484 = vmatpush.bf16.msra.mxu0 %v1447
    %1485 = vmatpush.bf16.msra.mxu0 %v1446
    %1486 = vmatpush.bf16.msra.mxu0 %v1445
    %1487 = vmatpush.bf16.msra.mxu0 %v1444
    %1488 = vmatpush.bf16.msra.mxu0 %v1443
    %1489 = vmatmul.bf16.gmra.mxu0 %v1338
    %v1490 = vpop.f32.mrf.mxu0
    %v1491 = vadd.f32 %v1477, %v1490
    %v1492 = vpop.f32.mrf.mxu0
    %v1493 = vadd.f32 %v1479, %v1492
    %1494 = vdwg.mxu0
    %v1495 = vadd.f32 %v964, %v1491
    %v1496 = vadd.f32 %v965, %v1493
    %s1497 = scalar_lea.vmem %s7, 1
    %v1498 = vld [vmem:[%s1497] sm:$0x1]
    %v1499 = vmul.f32 %v1495, %v1495
    %v1500 = vmul.f32 %v1496, %v1496
    %1501 = vadd.xlane.f32.xlu0 %v1499
    %v1502 = vpop.xlane.xlu0 %1501
    %1503 = vadd.xlane.f32.xlu0 %v1500
    %v1504 = vpop.xlane.xlu0 %1503
    %v1505 = vmul.f32 %v1502, %v368
    %v1506 = vmul.f32 %v1504, %v368
    %v1507 = vadd.f32 %v1505, 1e-06
    %v1508 = vadd.f32 %v1506, 1e-06
    %v1509 = vrsqrt.pop %v1507
    %v1510 = vmul.f32 %v1509, %v1507
    %v1511 = vmul.f32 %v1510, %v1509
    %v1512 = vmul.f32 0.5, %v1511
    %v1513 = vsub.f32 1.5, %v1512
    %v1514 = vmul.f32 %v1509, %v1513
    %vm1515 = vweird.f32 %v1507
    %vm1516 = vweird.f32 %v1509
    %vm1517 = vmor %vm1515, %vm1516
    %v1518 = vsel %vm1517, %v1509, %v1514
    %v1519 = vrsqrt.pop %v1508
    %v1520 = vmul.f32 %v1519, %v1508
    %v1521 = vmul.f32 %v1520, %v1519
    %v1522 = vmul.f32 0.5, %v1521
    %v1523 = vsub.f32 1.5, %v1522
    %v1524 = vmul.f32 %v1519, %v1523
    %vm1525 = vweird.f32 %v1508
    %vm1526 = vweird.f32 %v1519
    %vm1527 = vmor %vm1525, %vm1526
    %v1528 = vsel %vm1527, %v1519, %v1524
    %v1529 = vmul.f32 %v1495, %v1518
    %v1530 = vmul.f32 %v1496, %v1528
    %v1532 = vperm.slane %v1498, 0
    %v1534 = vmul.f32 %v1529, %v1532
    %v1535 = vmul.f32 %v1530, %v1532
    %v1536 = vpack.c.bf16 %v1535, %v1534
    %s1537 = scalar_lea.vmem [#allocation7], 192
    %v1538 = vld [vmem:[%s1537] sm:$0xff]
    %v1539 = vld [vmem:[%s1537 + $0x8] sm:$0xf]
    %v1540 = vld [vmem:[%s1537 + $0xc] sm:$0xff]
    %v1541 = vld [vmem:[%s1537 + $0x14] sm:$0xf]
    %v1542 = vld [vmem:[%s1537 + $0x18] sm:$0xff]
    %v1543 = vld [vmem:[%s1537 + $0x20] sm:$0xf]
    %v1544 = vld [vmem:[%s1537 + $0x24] sm:$0xff]
    %v1545 = vld [vmem:[%s1537 + $0x2c] sm:$0xf]
    %v1546 = vld [vmem:[%s1537 + $0x30] sm:$0xff]
    %v1547 = vld [vmem:[%s1537 + $0x38] sm:$0xf]
    %v1548 = vld [vmem:[%s1537 + $0x3c] sm:$0xff]
    %v1549 = vld [vmem:[%s1537 + $0x44] sm:$0xf]
    %v1550 = vld [vmem:[%s1537 + $0x48] sm:$0xff]
    %v1551 = vld [vmem:[%s1537 + $0x50] sm:$0xf]
    %v1552 = vld [vmem:[%s1537 + $0x54] sm:$0xff]
    %v1553 = vld [vmem:[%s1537 + $0x5c] sm:$0xf]
    %v1554 = vld [vmem:[%s1537 + $0x60] sm:$0xff]
    %v1555 = vld [vmem:[%s1537 + $0x68] sm:$0xf]
    %v1556 = vld [vmem:[%s1537 + $0x6c] sm:$0xff]
    %v1557 = vld [vmem:[%s1537 + $0x74] sm:$0xf]
    %v1558 = vld [vmem:[%s1537 + $0x78] sm:$0xff]
    %v1559 = vld [vmem:[%s1537 + $0x80] sm:$0xf]
    %v1560 = vld [vmem:[%s1537 + $0x84] sm:$0xff]
    %v1561 = vld [vmem:[%s1537 + $0x8c] sm:$0xf]
    %v1562 = vld [vmem:[%s1537 + $0x90] sm:$0xff]
    %v1563 = vld [vmem:[%s1537 + $0x98] sm:$0xf]
    %v1564 = vld [vmem:[%s1537 + $0x9c] sm:$0xff]
    %v1565 = vld [vmem:[%s1537 + $0xa4] sm:$0xf]
    %v1566 = vld [vmem:[%s1537 + $0xa8] sm:$0xff]
    %v1567 = vld [vmem:[%s1537 + $0xb0] sm:$0xf]
    %v1568 = vld [vmem:[%s1537 + $0xb4] sm:$0xff]
    %v1569 = vld [vmem:[%s1537 + $0xbc] sm:$0xf]
    %v1602 = vunpack.c.l.b16 %v1538
    %v1603 = vunpack.c.h.b16 %v1538
    %v1604 = vunpack.c.l.b16 %v1539
    %v1605 = vunpack.c.l.b16 %v1540
    %v1606 = vunpack.c.h.b16 %v1540
    %v1607 = vunpack.c.l.b16 %v1541
    %v1608 = vunpack.c.l.b16 %v1542
    %v1609 = vunpack.c.h.b16 %v1542
    %v1610 = vunpack.c.l.b16 %v1543
    %v1611 = vunpack.c.l.b16 %v1544
    %v1612 = vunpack.c.h.b16 %v1544
    %v1613 = vunpack.c.l.b16 %v1545
    %v1614 = vunpack.c.l.b16 %v1546
    %v1615 = vunpack.c.h.b16 %v1546
    %v1616 = vunpack.c.l.b16 %v1547
    %v1617 = vunpack.c.l.b16 %v1548
    %v1618 = vunpack.c.h.b16 %v1548
    %v1619 = vunpack.c.l.b16 %v1549
    %v1620 = vunpack.c.l.b16 %v1550
    %v1621 = vunpack.c.h.b16 %v1550
    %v1622 = vunpack.c.l.b16 %v1551
    %v1623 = vunpack.c.l.b16 %v1552
    %v1624 = vunpack.c.h.b16 %v1552
    %v1625 = vunpack.c.l.b16 %v1553
    %v1626 = vunpack.c.l.b16 %v1554
    %v1627 = vunpack.c.h.b16 %v1554
    %v1628 = vunpack.c.l.b16 %v1555
    %v1629 = vunpack.c.l.b16 %v1556
    %v1630 = vunpack.c.h.b16 %v1556
    %v1631 = vunpack.c.l.b16 %v1557
    %v1632 = vunpack.c.l.b16 %v1558
    %v1633 = vunpack.c.h.b16 %v1558
    %v1634 = vunpack.c.l.b16 %v1559
    %v1635 = vunpack.c.l.b16 %v1560
    %v1636 = vunpack.c.h.b16 %v1560
    %v1637 = vunpack.c.l.b16 %v1561
    %v1638 = vunpack.c.l.b16 %v1562
    %v1639 = vunpack.c.h.b16 %v1562
    %v1640 = vunpack.c.l.b16 %v1563
    %v1641 = vunpack.c.l.b16 %v1564
    %v1642 = vunpack.c.h.b16 %v1564
    %v1643 = vunpack.c.l.b16 %v1565
    %v1644 = vunpack.c.l.b16 %v1566
    %v1645 = vunpack.c.h.b16 %v1566
    %v1646 = vunpack.c.l.b16 %v1567
    %v1647 = vunpack.c.l.b16 %v1568
    %v1648 = vunpack.c.h.b16 %v1568
    %v1649 = vunpack.c.l.b16 %v1569
    %v1650 = vpack.c.b16 %v1605, %v1602
    %v1651 = vpack.c.b16 %v1606, %v1603
    %v1652 = vpack.c.b16 %v1607, %v1604
    %v1653 = vpack.c.b16 %v1611, %v1608
    %v1654 = vpack.c.b16 %v1612, %v1609
    %v1655 = vpack.c.b16 %v1613, %v1610
    %v1656 = vpack.c.b16 %v1617, %v1614
    %v1657 = vpack.c.b16 %v1618, %v1615
    %v1658 = vpack.c.b16 %v1619, %v1616
    %v1659 = vpack.c.b16 %v1623, %v1620
    %v1660 = vpack.c.b16 %v1624, %v1621
    %v1661 = vpack.c.b16 %v1625, %v1622
    %v1662 = vpack.c.b16 %v1629, %v1626
    %v1663 = vpack.c.b16 %v1630, %v1627
    %v1664 = vpack.c.b16 %v1631, %v1628
    %v1665 = vpack.c.b16 %v1635, %v1632
    %v1666 = vpack.c.b16 %v1636, %v1633
    %v1667 = vpack.c.b16 %v1637, %v1634
    %v1668 = vpack.c.b16 %v1641, %v1638
    %v1669 = vpack.c.b16 %v1642, %v1639
    %v1670 = vpack.c.b16 %v1643, %v1640
    %v1671 = vpack.c.b16 %v1647, %v1644
    %v1672 = vpack.c.b16 %v1648, %v1645
    %v1673 = vpack.c.b16 %v1649, %v1646
    %1698 = vmatpush.bf16.msra.mxu0 %v1671
    %1699 = vmatpush.bf16.msra.mxu0 %v1668
    %1700 = vmatpush.bf16.msra.mxu0 %v1665
    %1701 = vmatpush.bf16.msra.mxu0 %v1662
    %1702 = vmatpush.bf16.msra.mxu0 %v1659
    %1703 = vmatpush.bf16.msra.mxu0 %v1656
    %1704 = vmatpush.bf16.msra.mxu0 %v1653
    %1705 = vmatpush.bf16.msra.mxu0 %v1650
    %1706 = vmatmul.bf16.gmra.mxu0 %v1536
    %v1707 = vpop.f32.mrf.mxu0
    %v1708 = vadd.f32 0.0, %v1707
    %v1709 = vpop.f32.mrf.mxu0
    %v1710 = vadd.f32 0.0, %v1709
    %1711 = vdwg.mxu0
    %1712 = vmatpush.bf16.msra.mxu0 %v1672
    %1713 = vmatpush.bf16.msra.mxu0 %v1669
    %1714 = vmatpush.bf16.msra.mxu0 %v1666
    %1715 = vmatpush.bf16.msra.mxu0 %v1663
    %1716 = vmatpush.bf16.msra.mxu0 %v1660
    %1717 = vmatpush.bf16.msra.mxu0 %v1657
    %1718 = vmatpush.bf16.msra.mxu0 %v1654
    %1719 = vmatpush.bf16.msra.mxu0 %v1651
    %1720 = vmatmul.bf16.gmra.mxu0 %v1536
    %v1721 = vpop.f32.mrf.mxu0
    %v1722 = vadd.f32 0.0, %v1721
    %v1723 = vpop.f32.mrf.mxu0
    %v1724 = vadd.f32 0.0, %v1723
    %1725 = vdwg.mxu0
    %1726 = vmatpush.bf16.msra.mxu0 %v1673
    %1727 = vmatpush.bf16.msra.mxu0 %v1670
    %1728 = vmatpush.bf16.msra.mxu0 %v1667
    %1729 = vmatpush.bf16.msra.mxu0 %v1664
    %1730 = vmatpush.bf16.msra.mxu0 %v1661
    %1731 = vmatpush.bf16.msra.mxu0 %v1658
    %1732 = vmatpush.bf16.msra.mxu0 %v1655
    %1733 = vmatpush.bf16.msra.mxu0 %v1652
    %1734 = vmatmul.bf16.gmra.mxu0 %v1536
    %v1735 = vpop.f32.mrf.mxu0
    %v1736 = vadd.f32 0.0, %v1735
    %v1737 = vpop.f32.mrf.mxu0
    %v1738 = vadd.f32 0.0, %v1737
    %1739 = vdwg.mxu0
    %1740 = vrot.lane.b32.xlu0 %v1708, 16
    %v1741 = vpop.permute.xlu0 %1740
    %1742 = vrot.lane.b32.xlu0 %v1710, 16
    %v1743 = vpop.permute.xlu0 %1742
    %1744 = vrot.lane.b32.xlu0 %v1708, 112
    %v1745 = vpop.permute.xlu0 %1744
    %1746 = vrot.lane.b32.xlu0 %v1710, 112
    %v1747 = vpop.permute.xlu0 %1746
    %v1748 = vmul.f32 %v1708, %v340
    %v1749 = vmul.f32 %v1710, %v340
    %v1750 = vmul.f32 %v1741, %v341
    %v1751 = vmul.f32 %v1743, %v341
    %v1752 = vadd.f32 %v1748, %v1750
    %v1753 = vadd.f32 %v1749, %v1751
    %v1754 = vmul.f32 %v1745, %v342
    %v1755 = vmul.f32 %v1747, %v342
    %v1756 = vsub.f32 %v1752, %v1754
    %v1757 = vsub.f32 %v1753, %v1755
    %1758 = vrot.lane.b32.xlu0 %v1722, 16
    %v1759 = vpop.permute.xlu0 %1758
    %1760 = vrot.lane.b32.xlu0 %v1724, 16
    %v1761 = vpop.permute.xlu0 %1760
    %1762 = vrot.lane.b32.xlu0 %v1722, 112
    %v1763 = vpop.permute.xlu0 %1762
    %1764 = vrot.lane.b32.xlu0 %v1724, 112
    %v1765 = vpop.permute.xlu0 %1764
    %v1766 = vmul.f32 %v1722, %v340
    %v1767 = vmul.f32 %v1724, %v340
    %v1768 = vmul.f32 %v1759, %v341
    %v1769 = vmul.f32 %v1761, %v341
    %v1770 = vadd.f32 %v1766, %v1768
    %v1771 = vadd.f32 %v1767, %v1769
    %v1772 = vmul.f32 %v1763, %v342
    %v1773 = vmul.f32 %v1765, %v342
    %v1774 = vsub.f32 %v1770, %v1772
    %v1775 = vsub.f32 %v1771, %v1773
    %v1776 = vmul.f32 %v1756, %v643
    %v1777 = vmul.f32 %v1756, %v644
    %v1778 = vmul.f32 %v1756, %v645
    %v1779 = vmul.f32 %v1756, %v646
    %v1780 = vpack.c.bf16 %v1777, %v1776
    %v1781 = vpack.c.bf16 %v1779, %v1778
    %v1782 = vpack.c.bf16 %v1774, %v1774
    %1783 = vmatpush.bf16.xpose.msra.mxu0 0
    %1784 = vmatpush.bf16.xpose.msra.mxu0 0
    %1785 = vmatpush.bf16.xpose.msra.mxu0 0
    %1786 = vmatpush.bf16.xpose.msra.mxu0 0
    %1787 = vmatpush.bf16.xpose.msra.mxu0 0
    %1788 = vmatpush.bf16.xpose.msra.mxu0 0
    %1789 = vmatpush.bf16.xpose.msra.mxu0 0
    %1790 = vmatpush.bf16.xpose.msra.mxu0 %v1782
    %1791 = vmatmul.bf16.gmra.mxu0 %v1780
    %v1792 = vpop.f32.mrf.mxu0
    %v1793 = vadd.f32 0.0, %v1792
    %v1794 = vpop.f32.mrf.mxu0
    %v1795 = vadd.f32 0.0, %v1794
    %1796 = vmatmul.bf16.gmra.mxu0 %v1781
    %v1797 = vpop.f32.mrf.mxu0
    %v1798 = vadd.f32 0.0, %v1797
    %v1799 = vpop.f32.mrf.mxu0
    %v1800 = vadd.f32 0.0, %v1799
    %1801 = vdwg.mxu0
    %v1802 = vmul.f32 %v1793, 0.17677669
    %v1803 = vmul.f32 %v1795, 0.17677669
    %v1804 = vmul.f32 %v1798, 0.17677669
    %v1805 = vmul.f32 %v1800, 0.17677669
    %v1806 = vadd.f32 %v1802, %v352
    %v1807 = vadd.f32 %v1803, %v352
    %v1808 = vadd.f32 %v1804, %v352
    %v1809 = vadd.f32 %v1805, %v352
    %v1810 = vsel %vm685, %v1806, -inf
    %1811 = vmax.xlane.f32.xlu0 %v1810
    %v1812 = vpop.xlane.xlu0 %1811
    %v1813 = vsel %vm685, %v1807, -inf
    %1814 = vmax.xlane.f32.xlu0 %v1813
    %v1815 = vpop.xlane.xlu0 %1814
    %v1816 = vsel %vm685, %v1808, -inf
    %1817 = vmax.xlane.f32.xlu0 %v1816
    %v1818 = vpop.xlane.xlu0 %1817
    %v1819 = vsel %vm685, %v1809, -inf
    %1820 = vmax.xlane.f32.xlu0 %v1819
    %v1821 = vpop.xlane.xlu0 %1820
    %v1822 = vsub.f32 %v1806, %v1812
    %v1823 = vsub.f32 %v1807, %v1815
    %v1824 = vsub.f32 %v1808, %v1818
    %v1825 = vsub.f32 %v1809, %v1821
    %v1826 = vmul.f32 %v1822, 1.442695
    %v1827 = vpow.pop %v1826
    %v1828 = vmul.f32 %v1823, 1.442695
    %v1829 = vpow.pop %v1828
    %v1830 = vmul.f32 %v1824, 1.442695
    %v1831 = vpow.pop %v1830
    %v1832 = vmul.f32 %v1825, 1.442695
    %v1833 = vpow.pop %v1832
    %v1834 = vsel %vm685, %v1827, 0.0
    %1835 = vadd.xlane.f32.xlu0 %v1834
    %v1836 = vpop.xlane.xlu0 %1835
    %v1837 = vsel %vm685, %v1829, 0.0
    %1838 = vadd.xlane.f32.xlu0 %v1837
    %v1839 = vpop.xlane.xlu0 %1838
    %v1840 = vsel %vm685, %v1831, 0.0
    %1841 = vadd.xlane.f32.xlu0 %v1840
    %v1842 = vpop.xlane.xlu0 %1841
    %v1843 = vsel %vm685, %v1833, 0.0
    %1844 = vadd.xlane.f32.xlu0 %v1843
    %v1845 = vpop.xlane.xlu0 %1844
    %v1846 = vrcp.pop %v1836
    %v1847 = vrcp.pop %v1839
    %v1848 = vrcp.pop %v1842
    %v1849 = vrcp.pop %v1845
    %v1850 = vmul.f32 %v1827, %v1846
    %v1851 = vmul.f32 %v1829, %v1847
    %v1852 = vmul.f32 %v1831, %v1848
    %v1853 = vmul.f32 %v1833, %v1849
    %v1854 = vpack.c.bf16 %v1851, %v1850
    %v1855 = vpack.c.bf16 %v1853, %v1852
    %v1856 = vpack.c.bf16 %v1736, %v1736
    %v1858 = vsel %vm685, %v1854, 0
    %v1861 = vsel %vm685, %v1855, 0
    %v1864 = vsel %vm739, %v1856, 0
    %1866 = vmatpush.bf16.msra.mxu0 0
    %1867 = vmatpush.bf16.msra.mxu0 0
    %1868 = vmatpush.bf16.msra.mxu0 0
    %1869 = vmatpush.bf16.msra.mxu0 0
    %1870 = vmatpush.bf16.msra.mxu0 0
    %1871 = vmatpush.bf16.msra.mxu0 0
    %1872 = vmatpush.bf16.msra.mxu0 0
    %1873 = vmatpush.bf16.msra.mxu0 %v1864
    %1874 = vmatmul.bf16.gmra.mxu0 %v1858
    %v1875 = vpop.f32.mrf.mxu0
    %v1876 = vadd.f32 0.0, %v1875
    %v1877 = vpop.f32.mrf.mxu0
    %v1878 = vadd.f32 0.0, %v1877
    %1879 = vmatmul.bf16.gmra.mxu0 %v1861
    %v1880 = vpop.f32.mrf.mxu0
    %v1881 = vadd.f32 0.0, %v1880
    %v1882 = vpop.f32.mrf.mxu0
    %v1883 = vadd.f32 0.0, %v1882
    %1884 = vdwg.mxu0
    %v1885 = vmul.f32 %v1876, %v643
    %v1886 = vmul.f32 %v1878, %v644
    %v1887 = vmul.f32 %v1881, %v645
    %v1888 = vmul.f32 %v1883, %v646
    %v1889 = vadd.f32 %v1885, %v1886
    %v1890 = vadd.f32 %v1889, %v1887
    %v1891 = vadd.f32 %v1890, %v1888
    %v1892 = vmul.f32 %v1757, %v643
    %v1893 = vmul.f32 %v1757, %v644
    %v1894 = vmul.f32 %v1757, %v645
    %v1895 = vmul.f32 %v1757, %v646
    %v1896 = vpack.c.bf16 %v1893, %v1892
    %v1897 = vpack.c.bf16 %v1895, %v1894
    %v1898 = vpack.c.bf16 %v1775, %v1775
    %1899 = vmatpush.bf16.xpose.msra.mxu0 0
    %1900 = vmatpush.bf16.xpose.msra.mxu0 0
    %1901 = vmatpush.bf16.xpose.msra.mxu0 0
    %1902 = vmatpush.bf16.xpose.msra.mxu0 0
    %1903 = vmatpush.bf16.xpose.msra.mxu0 0
    %1904 = vmatpush.bf16.xpose.msra.mxu0 0
    %1905 = vmatpush.bf16.xpose.msra.mxu0 0
    %1906 = vmatpush.bf16.xpose.msra.mxu0 %v1898
    %1907 = vmatmul.bf16.gmra.mxu0 %v1896
    %v1908 = vpop.f32.mrf.mxu0
    %v1909 = vadd.f32 0.0, %v1908
    %v1910 = vpop.f32.mrf.mxu0
    %v1911 = vadd.f32 0.0, %v1910
    %1912 = vmatmul.bf16.gmra.mxu0 %v1897
    %v1913 = vpop.f32.mrf.mxu0
    %v1914 = vadd.f32 0.0, %v1913
    %v1915 = vpop.f32.mrf.mxu0
    %v1916 = vadd.f32 0.0, %v1915
    %1917 = vdwg.mxu0
    %v1918 = vmul.f32 %v1909, 0.17677669
    %v1919 = vmul.f32 %v1911, 0.17677669
    %v1920 = vmul.f32 %v1914, 0.17677669
    %v1921 = vmul.f32 %v1916, 0.17677669
    %v1922 = vadd.f32 %v1918, %v354
    %v1923 = vadd.f32 %v1919, %v354
    %v1924 = vadd.f32 %v1920, %v354
    %v1925 = vadd.f32 %v1921, %v354
    %v1926 = vsel %vm685, %v1922, -inf
    %1927 = vmax.xlane.f32.xlu0 %v1926
    %v1928 = vpop.xlane.xlu0 %1927
    %v1929 = vsel %vm685, %v1923, -inf
    %1930 = vmax.xlane.f32.xlu0 %v1929
    %v1931 = vpop.xlane.xlu0 %1930
    %v1932 = vsel %vm685, %v1924, -inf
    %1933 = vmax.xlane.f32.xlu0 %v1932
    %v1934 = vpop.xlane.xlu0 %1933
    %v1935 = vsel %vm685, %v1925, -inf
    %1936 = vmax.xlane.f32.xlu0 %v1935
    %v1937 = vpop.xlane.xlu0 %1936
    %v1938 = vsub.f32 %v1922, %v1928
    %v1939 = vsub.f32 %v1923, %v1931
    %v1940 = vsub.f32 %v1924, %v1934
    %v1941 = vsub.f32 %v1925, %v1937
    %v1942 = vmul.f32 %v1938, 1.442695
    %v1943 = vpow.pop %v1942
    %v1944 = vmul.f32 %v1939, 1.442695
    %v1945 = vpow.pop %v1944
    %v1946 = vmul.f32 %v1940, 1.442695
    %v1947 = vpow.pop %v1946
    %v1948 = vmul.f32 %v1941, 1.442695
    %v1949 = vpow.pop %v1948
    %v1950 = vsel %vm685, %v1943, 0.0
    %1951 = vadd.xlane.f32.xlu0 %v1950
    %v1952 = vpop.xlane.xlu0 %1951
    %v1953 = vsel %vm685, %v1945, 0.0
    %1954 = vadd.xlane.f32.xlu0 %v1953
    %v1955 = vpop.xlane.xlu0 %1954
    %v1956 = vsel %vm685, %v1947, 0.0
    %1957 = vadd.xlane.f32.xlu0 %v1956
    %v1958 = vpop.xlane.xlu0 %1957
    %v1959 = vsel %vm685, %v1949, 0.0
    %1960 = vadd.xlane.f32.xlu0 %v1959
    %v1961 = vpop.xlane.xlu0 %1960
    %v1962 = vrcp.pop %v1952
    %v1963 = vrcp.pop %v1955
    %v1964 = vrcp.pop %v1958
    %v1965 = vrcp.pop %v1961
    %v1966 = vmul.f32 %v1943, %v1962
    %v1967 = vmul.f32 %v1945, %v1963
    %v1968 = vmul.f32 %v1947, %v1964
    %v1969 = vmul.f32 %v1949, %v1965
    %v1970 = vpack.c.bf16 %v1967, %v1966
    %v1971 = vpack.c.bf16 %v1969, %v1968
    %v1972 = vpack.c.bf16 %v1738, %v1738
    %v1974 = vsel %vm685, %v1970, 0
    %v1977 = vsel %vm685, %v1971, 0
    %v1980 = vsel %vm739, %v1972, 0
    %1982 = vmatpush.bf16.msra.mxu0 0
    %1983 = vmatpush.bf16.msra.mxu0 0
    %1984 = vmatpush.bf16.msra.mxu0 0
    %1985 = vmatpush.bf16.msra.mxu0 0
    %1986 = vmatpush.bf16.msra.mxu0 0
    %1987 = vmatpush.bf16.msra.mxu0 0
    %1988 = vmatpush.bf16.msra.mxu0 0
    %1989 = vmatpush.bf16.msra.mxu0 %v1980
    %1990 = vmatmul.bf16.gmra.mxu0 %v1974
    %v1991 = vpop.f32.mrf.mxu0
    %v1992 = vadd.f32 0.0, %v1991
    %v1993 = vpop.f32.mrf.mxu0
    %v1994 = vadd.f32 0.0, %v1993
    %1995 = vmatmul.bf16.gmra.mxu0 %v1977
    %v1996 = vpop.f32.mrf.mxu0
    %v1997 = vadd.f32 0.0, %v1996
    %v1998 = vpop.f32.mrf.mxu0
    %v1999 = vadd.f32 0.0, %v1998
    %2000 = vdwg.mxu0
    %v2001 = vmul.f32 %v1992, %v643
    %v2002 = vmul.f32 %v1994, %v644
    %v2003 = vmul.f32 %v1997, %v645
    %v2004 = vmul.f32 %v1999, %v646
    %v2005 = vadd.f32 %v2001, %v2002
    %v2006 = vadd.f32 %v2005, %v2003
    %v2007 = vadd.f32 %v2006, %v2004
    %v2008 = vpack.c.bf16 %v2007, %v1891
    %s2009 = scalar_lea.vmem [#allocation8], 64
    %v2010 = vld [vmem:[%s2009] sm:$0xf]
    %v2011 = vld [vmem:[%s2009 + $0x4] sm:$0xf]
    %v2012 = vld [vmem:[%s2009 + $0x8] sm:$0xf]
    %v2013 = vld [vmem:[%s2009 + $0xc] sm:$0xf]
    %v2014 = vld [vmem:[%s2009 + $0x10] sm:$0xf]
    %v2015 = vld [vmem:[%s2009 + $0x14] sm:$0xf]
    %v2016 = vld [vmem:[%s2009 + $0x18] sm:$0xf]
    %v2017 = vld [vmem:[%s2009 + $0x1c] sm:$0xf]
    %v2018 = vld [vmem:[%s2009 + $0x20] sm:$0xf]
    %v2019 = vld [vmem:[%s2009 + $0x24] sm:$0xf]
    %v2020 = vld [vmem:[%s2009 + $0x28] sm:$0xf]
    %v2021 = vld [vmem:[%s2009 + $0x2c] sm:$0xf]
    %v2022 = vld [vmem:[%s2009 + $0x30] sm:$0xf]
    %v2023 = vld [vmem:[%s2009 + $0x34] sm:$0xf]
    %v2024 = vld [vmem:[%s2009 + $0x38] sm:$0xf]
    %v2025 = vld [vmem:[%s2009 + $0x3c] sm:$0xf]
    %v2042 = vunpack.c.l.b16 %v2010
    %v2043 = vunpack.c.l.b16 %v2011
    %v2044 = vunpack.c.l.b16 %v2012
    %v2045 = vunpack.c.l.b16 %v2013
    %v2046 = vunpack.c.l.b16 %v2014
    %v2047 = vunpack.c.l.b16 %v2015
    %v2048 = vunpack.c.l.b16 %v2016
    %v2049 = vunpack.c.l.b16 %v2017
    %v2050 = vunpack.c.l.b16 %v2018
    %v2051 = vunpack.c.l.b16 %v2019
    %v2052 = vunpack.c.l.b16 %v2020
    %v2053 = vunpack.c.l.b16 %v2021
    %v2054 = vunpack.c.l.b16 %v2022
    %v2055 = vunpack.c.l.b16 %v2023
    %v2056 = vunpack.c.l.b16 %v2024
    %v2057 = vunpack.c.l.b16 %v2025
    %v2058 = vpack.c.b16 %v2043, %v2042
    %v2059 = vpack.c.b16 %v2045, %v2044
    %v2060 = vpack.c.b16 %v2047, %v2046
    %v2061 = vpack.c.b16 %v2049, %v2048
    %v2062 = vpack.c.b16 %v2051, %v2050
    %v2063 = vpack.c.b16 %v2053, %v2052
    %v2064 = vpack.c.b16 %v2055, %v2054
    %v2065 = vpack.c.b16 %v2057, %v2056
    %2074 = vmatpush.bf16.msra.mxu0 %v2065
    %2075 = vmatpush.bf16.msra.mxu0 %v2064
    %2076 = vmatpush.bf16.msra.mxu0 %v2063
    %2077 = vmatpush.bf16.msra.mxu0 %v2062
    %2078 = vmatpush.bf16.msra.mxu0 %v2061
    %2079 = vmatpush.bf16.msra.mxu0 %v2060
    %2080 = vmatpush.bf16.msra.mxu0 %v2059
    %2081 = vmatpush.bf16.msra.mxu0 %v2058
    %2082 = vmatmul.bf16.gmra.mxu0 %v2008
    %v2083 = vpop.f32.mrf.mxu0
    %v2084 = vadd.f32 0.0, %v2083
    %v2085 = vpop.f32.mrf.mxu0
    %v2086 = vadd.f32 0.0, %v2085
    %2087 = vdwg.mxu0
    %v2088 = vadd.f32 %v1495, %v2084
    %v2089 = vadd.f32 %v1496, %v2086
    %s2090 = scalar_lea.vmem %s10, 1
    %v2091 = vld [vmem:[%s2090] sm:$0x1]
    %v2092 = vmul.f32 %v2088, %v2088
    %v2093 = vmul.f32 %v2089, %v2089
    %2094 = vadd.xlane.f32.xlu0 %v2092
    %v2095 = vpop.xlane.xlu0 %2094
    %2096 = vadd.xlane.f32.xlu0 %v2093
    %v2097 = vpop.xlane.xlu0 %2096
    %v2098 = vmul.f32 %v2095, %v368
    %v2099 = vmul.f32 %v2097, %v368
    %v2100 = vadd.f32 %v2098, 1e-06
    %v2101 = vadd.f32 %v2099, 1e-06
    %v2102 = vrsqrt.pop %v2100
    %v2103 = vmul.f32 %v2102, %v2100
    %v2104 = vmul.f32 %v2103, %v2102
    %v2105 = vmul.f32 0.5, %v2104
    %v2106 = vsub.f32 1.5, %v2105
    %v2107 = vmul.f32 %v2102, %v2106
    %vm2108 = vweird.f32 %v2100
    %vm2109 = vweird.f32 %v2102
    %vm2110 = vmor %vm2108, %vm2109
    %v2111 = vsel %vm2110, %v2102, %v2107
    %v2112 = vrsqrt.pop %v2101
    %v2113 = vmul.f32 %v2112, %v2101
    %v2114 = vmul.f32 %v2113, %v2112
    %v2115 = vmul.f32 0.5, %v2114
    %v2116 = vsub.f32 1.5, %v2115
    %v2117 = vmul.f32 %v2112, %v2116
    %vm2118 = vweird.f32 %v2101
    %vm2119 = vweird.f32 %v2112
    %vm2120 = vmor %vm2118, %vm2119
    %v2121 = vsel %vm2120, %v2112, %v2117
    %v2122 = vmul.f32 %v2088, %v2111
    %v2123 = vmul.f32 %v2089, %v2121
    %v2125 = vperm.slane %v2091, 0
    %v2127 = vmul.f32 %v2122, %v2125
    %v2128 = vmul.f32 %v2123, %v2125
    %v2129 = vpack.c.bf16 %v2128, %v2127
    %s2130 = scalar_lea.vmem [#allocation10], 256
    %v2131 = vld [vmem:[%s2130] sm:$0xff]
    %v2132 = vld [vmem:[%s2130 + $0x8] sm:$0xff]
    %v2133 = vld [vmem:[%s2130 + $0x10] sm:$0xff]
    %v2134 = vld [vmem:[%s2130 + $0x18] sm:$0xff]
    %v2135 = vld [vmem:[%s2130 + $0x20] sm:$0xff]
    %v2136 = vld [vmem:[%s2130 + $0x28] sm:$0xff]
    %v2137 = vld [vmem:[%s2130 + $0x30] sm:$0xff]
    %v2138 = vld [vmem:[%s2130 + $0x38] sm:$0xff]
    %v2139 = vld [vmem:[%s2130 + $0x40] sm:$0xff]
    %v2140 = vld [vmem:[%s2130 + $0x48] sm:$0xff]
    %v2141 = vld [vmem:[%s2130 + $0x50] sm:$0xff]
    %v2142 = vld [vmem:[%s2130 + $0x58] sm:$0xff]
    %v2143 = vld [vmem:[%s2130 + $0x60] sm:$0xff]
    %v2144 = vld [vmem:[%s2130 + $0x68] sm:$0xff]
    %v2145 = vld [vmem:[%s2130 + $0x70] sm:$0xff]
    %v2146 = vld [vmem:[%s2130 + $0x78] sm:$0xff]
    %v2147 = vld [vmem:[%s2130 + $0x80] sm:$0xff]
    %v2148 = vld [vmem:[%s2130 + $0x88] sm:$0xff]
    %v2149 = vld [vmem:[%s2130 + $0x90] sm:$0xff]
    %v2150 = vld [vmem:[%s2130 + $0x98] sm:$0xff]
    %v2151 = vld [vmem:[%s2130 + $0xa0] sm:$0xff]
    %v2152 = vld [vmem:[%s2130 + $0xa8] sm:$0xff]
    %v2153 = vld [vmem:[%s2130 + $0xb0] sm:$0xff]
    %v2154 = vld [vmem:[%s2130 + $0xb8] sm:$0xff]
    %v2155 = vld [vmem:[%s2130 + $0xc0] sm:$0xff]
    %v2156 = vld [vmem:[%s2130 + $0xc8] sm:$0xff]
    %v2157 = vld [vmem:[%s2130 + $0xd0] sm:$0xff]
    %v2158 = vld [vmem:[%s2130 + $0xd8] sm:$0xff]
    %v2159 = vld [vmem:[%s2130 + $0xe0] sm:$0xff]
    %v2160 = vld [vmem:[%s2130 + $0xe8] sm:$0xff]
    %v2161 = vld [vmem:[%s2130 + $0xf0] sm:$0xff]
    %v2162 = vld [vmem:[%s2130 + $0xf8] sm:$0xff]
    %v2195 = vunpack.c.l.b16 %v2131
    %v2196 = vunpack.c.h.b16 %v2131
    %v2197 = vunpack.c.l.b16 %v2132
    %v2198 = vunpack.c.h.b16 %v2132
    %v2199 = vunpack.c.l.b16 %v2133
    %v2200 = vunpack.c.h.b16 %v2133
    %v2201 = vunpack.c.l.b16 %v2134
    %v2202 = vunpack.c.h.b16 %v2134
    %v2203 = vunpack.c.l.b16 %v2135
    %v2204 = vunpack.c.h.b16 %v2135
    %v2205 = vunpack.c.l.b16 %v2136
    %v2206 = vunpack.c.h.b16 %v2136
    %v2207 = vunpack.c.l.b16 %v2137
    %v2208 = vunpack.c.h.b16 %v2137
    %v2209 = vunpack.c.l.b16 %v2138
    %v2210 = vunpack.c.h.b16 %v2138
    %v2211 = vunpack.c.l.b16 %v2139
    %v2212 = vunpack.c.h.b16 %v2139
    %v2213 = vunpack.c.l.b16 %v2140
    %v2214 = vunpack.c.h.b16 %v2140
    %v2215 = vunpack.c.l.b16 %v2141
    %v2216 = vunpack.c.h.b16 %v2141
    %v2217 = vunpack.c.l.b16 %v2142
    %v2218 = vunpack.c.h.b16 %v2142
    %v2219 = vunpack.c.l.b16 %v2143
    %v2220 = vunpack.c.h.b16 %v2143
    %v2221 = vunpack.c.l.b16 %v2144
    %v2222 = vunpack.c.h.b16 %v2144
    %v2223 = vunpack.c.l.b16 %v2145
    %v2224 = vunpack.c.h.b16 %v2145
    %v2225 = vunpack.c.l.b16 %v2146
    %v2226 = vunpack.c.h.b16 %v2146
    %v2227 = vunpack.c.l.b16 %v2147
    %v2228 = vunpack.c.h.b16 %v2147
    %v2229 = vunpack.c.l.b16 %v2148
    %v2230 = vunpack.c.h.b16 %v2148
    %v2231 = vunpack.c.l.b16 %v2149
    %v2232 = vunpack.c.h.b16 %v2149
    %v2233 = vunpack.c.l.b16 %v2150
    %v2234 = vunpack.c.h.b16 %v2150
    %v2235 = vunpack.c.l.b16 %v2151
    %v2236 = vunpack.c.h.b16 %v2151
    %v2237 = vunpack.c.l.b16 %v2152
    %v2238 = vunpack.c.h.b16 %v2152
    %v2239 = vunpack.c.l.b16 %v2153
    %v2240 = vunpack.c.h.b16 %v2153
    %v2241 = vunpack.c.l.b16 %v2154
    %v2242 = vunpack.c.h.b16 %v2154
    %v2243 = vunpack.c.l.b16 %v2155
    %v2244 = vunpack.c.h.b16 %v2155
    %v2245 = vunpack.c.l.b16 %v2156
    %v2246 = vunpack.c.h.b16 %v2156
    %v2247 = vunpack.c.l.b16 %v2157
    %v2248 = vunpack.c.h.b16 %v2157
    %v2249 = vunpack.c.l.b16 %v2158
    %v2250 = vunpack.c.h.b16 %v2158
    %v2251 = vunpack.c.l.b16 %v2159
    %v2252 = vunpack.c.h.b16 %v2159
    %v2253 = vunpack.c.l.b16 %v2160
    %v2254 = vunpack.c.h.b16 %v2160
    %v2255 = vunpack.c.l.b16 %v2161
    %v2256 = vunpack.c.h.b16 %v2161
    %v2257 = vunpack.c.l.b16 %v2162
    %v2258 = vunpack.c.h.b16 %v2162
    %v2259 = vpack.c.b16 %v2199, %v2195
    %v2260 = vpack.c.b16 %v2200, %v2196
    %v2261 = vpack.c.b16 %v2201, %v2197
    %v2262 = vpack.c.b16 %v2202, %v2198
    %v2263 = vpack.c.b16 %v2207, %v2203
    %v2264 = vpack.c.b16 %v2208, %v2204
    %v2265 = vpack.c.b16 %v2209, %v2205
    %v2266 = vpack.c.b16 %v2210, %v2206
    %v2267 = vpack.c.b16 %v2215, %v2211
    %v2268 = vpack.c.b16 %v2216, %v2212
    %v2269 = vpack.c.b16 %v2217, %v2213
    %v2270 = vpack.c.b16 %v2218, %v2214
    %v2271 = vpack.c.b16 %v2223, %v2219
    %v2272 = vpack.c.b16 %v2224, %v2220
    %v2273 = vpack.c.b16 %v2225, %v2221
    %v2274 = vpack.c.b16 %v2226, %v2222
    %v2275 = vpack.c.b16 %v2231, %v2227
    %v2276 = vpack.c.b16 %v2232, %v2228
    %v2277 = vpack.c.b16 %v2233, %v2229
    %v2278 = vpack.c.b16 %v2234, %v2230
    %v2279 = vpack.c.b16 %v2239, %v2235
    %v2280 = vpack.c.b16 %v2240, %v2236
    %v2281 = vpack.c.b16 %v2241, %v2237
    %v2282 = vpack.c.b16 %v2242, %v2238
    %v2283 = vpack.c.b16 %v2247, %v2243
    %v2284 = vpack.c.b16 %v2248, %v2244
    %v2285 = vpack.c.b16 %v2249, %v2245
    %v2286 = vpack.c.b16 %v2250, %v2246
    %v2287 = vpack.c.b16 %v2255, %v2251
    %v2288 = vpack.c.b16 %v2256, %v2252
    %v2289 = vpack.c.b16 %v2257, %v2253
    %v2290 = vpack.c.b16 %v2258, %v2254
    %2323 = vmatpush.bf16.msra.mxu0 %v2287
    %2324 = vmatpush.bf16.msra.mxu0 %v2283
    %2325 = vmatpush.bf16.msra.mxu0 %v2279
    %2326 = vmatpush.bf16.msra.mxu0 %v2275
    %2327 = vmatpush.bf16.msra.mxu0 %v2271
    %2328 = vmatpush.bf16.msra.mxu0 %v2267
    %2329 = vmatpush.bf16.msra.mxu0 %v2263
    %2330 = vmatpush.bf16.msra.mxu0 %v2259
    %2331 = vmatmul.bf16.gmra.mxu0 %v2129
    %v2332 = vpop.f32.mrf.mxu0
    %v2333 = vadd.f32 0.0, %v2332
    %v2334 = vpop.f32.mrf.mxu0
    %v2335 = vadd.f32 0.0, %v2334
    %2336 = vdwg.mxu0
    %2337 = vmatpush.bf16.msra.mxu0 %v2288
    %2338 = vmatpush.bf16.msra.mxu0 %v2284
    %2339 = vmatpush.bf16.msra.mxu0 %v2280
    %2340 = vmatpush.bf16.msra.mxu0 %v2276
    %2341 = vmatpush.bf16.msra.mxu0 %v2272
    %2342 = vmatpush.bf16.msra.mxu0 %v2268
    %2343 = vmatpush.bf16.msra.mxu0 %v2264
    %2344 = vmatpush.bf16.msra.mxu0 %v2260
    %2345 = vmatmul.bf16.gmra.mxu0 %v2129
    %v2346 = vpop.f32.mrf.mxu0
    %v2347 = vadd.f32 0.0, %v2346
    %v2348 = vpop.f32.mrf.mxu0
    %v2349 = vadd.f32 0.0, %v2348
    %2350 = vdwg.mxu0
    %2351 = vmatpush.bf16.msra.mxu0 %v2289
    %2352 = vmatpush.bf16.msra.mxu0 %v2285
    %2353 = vmatpush.bf16.msra.mxu0 %v2281
    %2354 = vmatpush.bf16.msra.mxu0 %v2277
    %2355 = vmatpush.bf16.msra.mxu0 %v2273
    %2356 = vmatpush.bf16.msra.mxu0 %v2269
    %2357 = vmatpush.bf16.msra.mxu0 %v2265
    %2358 = vmatpush.bf16.msra.mxu0 %v2261
    %2359 = vmatmul.bf16.gmra.mxu0 %v2129
    %v2360 = vpop.f32.mrf.mxu0
    %v2361 = vadd.f32 0.0, %v2360
    %v2362 = vpop.f32.mrf.mxu0
    %v2363 = vadd.f32 0.0, %v2362
    %2364 = vdwg.mxu0
    %2365 = vmatpush.bf16.msra.mxu0 %v2290
    %2366 = vmatpush.bf16.msra.mxu0 %v2286
    %2367 = vmatpush.bf16.msra.mxu0 %v2282
    %2368 = vmatpush.bf16.msra.mxu0 %v2278
    %2369 = vmatpush.bf16.msra.mxu0 %v2274
    %2370 = vmatpush.bf16.msra.mxu0 %v2270
    %2371 = vmatpush.bf16.msra.mxu0 %v2266
    %2372 = vmatpush.bf16.msra.mxu0 %v2262
    %2373 = vmatmul.bf16.gmra.mxu0 %v2129
    %v2374 = vpop.f32.mrf.mxu0
    %v2375 = vadd.f32 0.0, %v2374
    %v2376 = vpop.f32.mrf.mxu0
    %v2377 = vadd.f32 0.0, %v2376
    %2378 = vdwg.mxu0
    %v2379 = vsub.f32 0.0, %v2333
    %v2380 = vsub.f32 0.0, %v2347
    %v2381 = vsub.f32 0.0, %v2335
    %v2382 = vsub.f32 0.0, %v2349
    %v2383 = vmul.f32 %v2379, 1.442695
    %v2384 = vpow.pop %v2383
    %v2385 = vmul.f32 %v2380, 1.442695
    %v2386 = vpow.pop %v2385
    %v2387 = vmul.f32 %v2381, 1.442695
    %v2388 = vpow.pop %v2387
    %v2389 = vmul.f32 %v2382, 1.442695
    %v2390 = vpow.pop %v2389
    %v2391 = vadd.f32 %v2384, 1.0
    %v2392 = vadd.f32 %v2386, 1.0
    %v2393 = vadd.f32 %v2388, 1.0
    %v2394 = vadd.f32 %v2390, 1.0
    %v2395 = vrcp.pop %v2391
    %v2396 = vmul.f32 %v2391, %v2395
    %v2397 = vsub.f32 1.0, %v2396
    %v2398 = vmul.f32 %v2395, %v2397
    %v2399 = vadd.f32 %v2395, %v2398
    %vm2400 = vweird.f32 %v2391
    %vm2401 = vweird.f32 %v2395
    %vm2402 = vmor %vm2400, %vm2401
    %v2403 = vsel %vm2402, %v2395, %v2399
    %v2404 = vand.u32 2147483647, %v2391
    %vm2405 = vcmp.eq.f32.partialorder %v2404, 8.507059e+37
    %v2406 = vand.u32 %v2391, 2147483648
    %v2407 = vor.u32 1.1754944e-38, %v2406
    %v2408 = vsel %vm2405, %v2407, %v2403
    %v2409 = vmul.f32 1.0, %v2408
    %v2410 = vrcp.pop %v2392
    %v2411 = vmul.f32 %v2392, %v2410
    %v2412 = vsub.f32 1.0, %v2411
    %v2413 = vmul.f32 %v2410, %v2412
    %v2414 = vadd.f32 %v2410, %v2413
    %vm2415 = vweird.f32 %v2392
    %vm2416 = vweird.f32 %v2410
    %vm2417 = vmor %vm2415, %vm2416
    %v2418 = vsel %vm2417, %v2410, %v2414
    %v2419 = vand.u32 2147483647, %v2392
    %vm2420 = vcmp.eq.f32.partialorder %v2419, 8.507059e+37
    %v2421 = vand.u32 %v2392, 2147483648
    %v2422 = vor.u32 1.1754944e-38, %v2421
    %v2423 = vsel %vm2420, %v2422, %v2418
    %v2424 = vmul.f32 1.0, %v2423
    %v2425 = vrcp.pop %v2393
    %v2426 = vmul.f32 %v2393, %v2425
    %v2427 = vsub.f32 1.0, %v2426
    %v2428 = vmul.f32 %v2425, %v2427
    %v2429 = vadd.f32 %v2425, %v2428
    %vm2430 = vweird.f32 %v2393
    %vm2431 = vweird.f32 %v2425
    %vm2432 = vmor %vm2430, %vm2431
    %v2433 = vsel %vm2432, %v2425, %v2429
    %v2434 = vand.u32 2147483647, %v2393
    %vm2435 = vcmp.eq.f32.partialorder %v2434, 8.507059e+37
    %v2436 = vand.u32 %v2393, 2147483648
    %v2437 = vor.u32 1.1754944e-38, %v2436
    %v2438 = vsel %vm2435, %v2437, %v2433
    %v2439 = vmul.f32 1.0, %v2438
    %v2440 = vrcp.pop %v2394
    %v2441 = vmul.f32 %v2394, %v2440
    %v2442 = vsub.f32 1.0, %v2441
    %v2443 = vmul.f32 %v2440, %v2442
    %v2444 = vadd.f32 %v2440, %v2443
    %vm2445 = vweird.f32 %v2394
    %vm2446 = vweird.f32 %v2440
    %vm2447 = vmor %vm2445, %vm2446
    %v2448 = vsel %vm2447, %v2440, %v2444
    %v2449 = vand.u32 2147483647, %v2394
    %vm2450 = vcmp.eq.f32.partialorder %v2449, 8.507059e+37
    %v2451 = vand.u32 %v2394, 2147483648
    %v2452 = vor.u32 1.1754944e-38, %v2451
    %v2453 = vsel %vm2450, %v2452, %v2448
    %v2454 = vmul.f32 1.0, %v2453
    %v2455 = vmul.f32 %v2333, %v2409
    %v2456 = vmul.f32 %v2347, %v2424
    %v2457 = vmul.f32 %v2335, %v2439
    %v2458 = vmul.f32 %v2349, %v2454
    %v2459 = vmul.f32 %v2455, %v2361
    %v2460 = vmul.f32 %v2456, %v2375
    %v2461 = vmul.f32 %v2457, %v2363
    %v2462 = vmul.f32 %v2458, %v2377
    %v2463 = vpack.c.bf16 %v2461, %v2459
    %v2464 = vpack.c.bf16 %v2462, %v2460
    %s2465 = scalar_lea.vmem [#allocation11], 128
    %v2466 = vld [vmem:[%s2465] sm:$0xf]
    %v2467 = vld [vmem:[%s2465 + $0x4] sm:$0xf]
    %v2468 = vld [vmem:[%s2465 + $0x8] sm:$0xf]
    %v2469 = vld [vmem:[%s2465 + $0xc] sm:$0xf]
    %v2470 = vld [vmem:[%s2465 + $0x10] sm:$0xf]
    %v2471 = vld [vmem:[%s2465 + $0x14] sm:$0xf]
    %v2472 = vld [vmem:[%s2465 + $0x18] sm:$0xf]
    %v2473 = vld [vmem:[%s2465 + $0x1c] sm:$0xf]
    %v2474 = vld [vmem:[%s2465 + $0x20] sm:$0xf]
    %v2475 = vld [vmem:[%s2465 + $0x24] sm:$0xf]
    %v2476 = vld [vmem:[%s2465 + $0x28] sm:$0xf]
    %v2477 = vld [vmem:[%s2465 + $0x2c] sm:$0xf]
    %v2478 = vld [vmem:[%s2465 + $0x30] sm:$0xf]
    %v2479 = vld [vmem:[%s2465 + $0x34] sm:$0xf]
    %v2480 = vld [vmem:[%s2465 + $0x38] sm:$0xf]
    %v2481 = vld [vmem:[%s2465 + $0x3c] sm:$0xf]
    %v2482 = vld [vmem:[%s2465 + $0x40] sm:$0xf]
    %v2483 = vld [vmem:[%s2465 + $0x44] sm:$0xf]
    %v2484 = vld [vmem:[%s2465 + $0x48] sm:$0xf]
    %v2485 = vld [vmem:[%s2465 + $0x4c] sm:$0xf]
    %v2486 = vld [vmem:[%s2465 + $0x50] sm:$0xf]
    %v2487 = vld [vmem:[%s2465 + $0x54] sm:$0xf]
    %v2488 = vld [vmem:[%s2465 + $0x58] sm:$0xf]
    %v2489 = vld [vmem:[%s2465 + $0x5c] sm:$0xf]
    %v2490 = vld [vmem:[%s2465 + $0x60] sm:$0xf]
    %v2491 = vld [vmem:[%s2465 + $0x64] sm:$0xf]
    %v2492 = vld [vmem:[%s2465 + $0x68] sm:$0xf]
    %v2493 = vld [vmem:[%s2465 + $0x6c] sm:$0xf]
    %v2494 = vld [vmem:[%s2465 + $0x70] sm:$0xf]
    %v2495 = vld [vmem:[%s2465 + $0x74] sm:$0xf]
    %v2496 = vld [vmem:[%s2465 + $0x78] sm:$0xf]
    %v2497 = vld [vmem:[%s2465 + $0x7c] sm:$0xf]
    %v2530 = vunpack.c.l.b16 %v2466
    %v2531 = vunpack.c.l.b16 %v2467
    %v2532 = vunpack.c.l.b16 %v2468
    %v2533 = vunpack.c.l.b16 %v2469
    %v2534 = vunpack.c.l.b16 %v2470
    %v2535 = vunpack.c.l.b16 %v2471
    %v2536 = vunpack.c.l.b16 %v2472
    %v2537 = vunpack.c.l.b16 %v2473
    %v2538 = vunpack.c.l.b16 %v2474
    %v2539 = vunpack.c.l.b16 %v2475
    %v2540 = vunpack.c.l.b16 %v2476
    %v2541 = vunpack.c.l.b16 %v2477
    %v2542 = vunpack.c.l.b16 %v2478
    %v2543 = vunpack.c.l.b16 %v2479
    %v2544 = vunpack.c.l.b16 %v2480
    %v2545 = vunpack.c.l.b16 %v2481
    %v2546 = vunpack.c.l.b16 %v2482
    %v2547 = vunpack.c.l.b16 %v2483
    %v2548 = vunpack.c.l.b16 %v2484
    %v2549 = vunpack.c.l.b16 %v2485
    %v2550 = vunpack.c.l.b16 %v2486
    %v2551 = vunpack.c.l.b16 %v2487
    %v2552 = vunpack.c.l.b16 %v2488
    %v2553 = vunpack.c.l.b16 %v2489
    %v2554 = vunpack.c.l.b16 %v2490
    %v2555 = vunpack.c.l.b16 %v2491
    %v2556 = vunpack.c.l.b16 %v2492
    %v2557 = vunpack.c.l.b16 %v2493
    %v2558 = vunpack.c.l.b16 %v2494
    %v2559 = vunpack.c.l.b16 %v2495
    %v2560 = vunpack.c.l.b16 %v2496
    %v2561 = vunpack.c.l.b16 %v2497
    %v2562 = vpack.c.b16 %v2531, %v2530
    %v2563 = vpack.c.b16 %v2533, %v2532
    %v2564 = vpack.c.b16 %v2535, %v2534
    %v2565 = vpack.c.b16 %v2537, %v2536
    %v2566 = vpack.c.b16 %v2539, %v2538
    %v2567 = vpack.c.b16 %v2541, %v2540
    %v2568 = vpack.c.b16 %v2543, %v2542
    %v2569 = vpack.c.b16 %v2545, %v2544
    %v2570 = vpack.c.b16 %v2547, %v2546
    %v2571 = vpack.c.b16 %v2549, %v2548
    %v2572 = vpack.c.b16 %v2551, %v2550
    %v2573 = vpack.c.b16 %v2553, %v2552
    %v2574 = vpack.c.b16 %v2555, %v2554
    %v2575 = vpack.c.b16 %v2557, %v2556
    %v2576 = vpack.c.b16 %v2559, %v2558
    %v2577 = vpack.c.b16 %v2561, %v2560
    %2594 = vmatpush.bf16.msra.mxu0 %v2569
    %2595 = vmatpush.bf16.msra.mxu0 %v2568
    %2596 = vmatpush.bf16.msra.mxu0 %v2567
    %2597 = vmatpush.bf16.msra.mxu0 %v2566
    %2598 = vmatpush.bf16.msra.mxu0 %v2565
    %2599 = vmatpush.bf16.msra.mxu0 %v2564
    %2600 = vmatpush.bf16.msra.mxu0 %v2563
    %2601 = vmatpush.bf16.msra.mxu0 %v2562
    %2602 = vmatmul.bf16.gmra.mxu0 %v2463
    %v2603 = vpop.f32.mrf.mxu0
    %v2604 = vadd.f32 0.0, %v2603
    %v2605 = vpop.f32.mrf.mxu0
    %v2606 = vadd.f32 0.0, %v2605
    %2607 = vdwg.mxu0
    %2608 = vmatpush.bf16.msra.mxu0 %v2577
    %2609 = vmatpush.bf16.msra.mxu0 %v2576
    %2610 = vmatpush.bf16.msra.mxu0 %v2575
    %2611 = vmatpush.bf16.msra.mxu0 %v2574
    %2612 = vmatpush.bf16.msra.mxu0 %v2573
    %2613 = vmatpush.bf16.msra.mxu0 %v2572
    %2614 = vmatpush.bf16.msra.mxu0 %v2571
    %2615 = vmatpush.bf16.msra.mxu0 %v2570
    %2616 = vmatmul.bf16.gmra.mxu0 %v2464
    %v2617 = vpop.f32.mrf.mxu0
    %v2618 = vadd.f32 %v2604, %v2617
    %v2619 = vpop.f32.mrf.mxu0
    %v2620 = vadd.f32 %v2606, %v2619
    %2621 = vdwg.mxu0
    %v2622 = vadd.f32 %v2088, %v2618
    %v2623 = vadd.f32 %v2089, %v2620
    %v2624 = vld [vmem:[%s13] sm:$0x1]
    %v2625 = vmul.f32 %v2622, %v2622
    %v2626 = vmul.f32 %v2623, %v2623
    %2627 = vadd.xlane.f32.xlu0 %v2625
    %v2628 = vpop.xlane.xlu0 %2627
    %2629 = vadd.xlane.f32.xlu0 %v2626
    %v2630 = vpop.xlane.xlu0 %2629
    %v2631 = vmul.f32 %v2628, %v368
    %v2632 = vmul.f32 %v2630, %v368
    %v2633 = vadd.f32 %v2631, 1e-06
    %v2634 = vadd.f32 %v2632, 1e-06
    %v2635 = vrsqrt.pop %v2633
    %v2636 = vmul.f32 %v2635, %v2633
    %v2637 = vmul.f32 %v2636, %v2635
    %v2638 = vmul.f32 0.5, %v2637
    %v2639 = vsub.f32 1.5, %v2638
    %v2640 = vmul.f32 %v2635, %v2639
    %vm2641 = vweird.f32 %v2633
    %vm2642 = vweird.f32 %v2635
    %vm2643 = vmor %vm2641, %vm2642
    %v2644 = vsel %vm2643, %v2635, %v2640
    %v2645 = vrsqrt.pop %v2634
    %v2646 = vmul.f32 %v2645, %v2634
    %v2647 = vmul.f32 %v2646, %v2645
    %v2648 = vmul.f32 0.5, %v2647
    %v2649 = vsub.f32 1.5, %v2648
    %v2650 = vmul.f32 %v2645, %v2649
    %vm2651 = vweird.f32 %v2634
    %vm2652 = vweird.f32 %v2645
    %vm2653 = vmor %vm2651, %vm2652
    %v2654 = vsel %vm2653, %v2645, %v2650
    %v2655 = vmul.f32 %v2622, %v2644
    %v2656 = vmul.f32 %v2623, %v2654
    %v2658 = vperm.slane %v2624, 0
    %v2660 = vmul.f32 %v2655, %v2658
    %v2661 = vmul.f32 %v2656, %v2658
    %v2662 = vpack.c.bf16 %v2661, %v2660
    %v2663 = vld [vmem:[#allocation13] sm:$0xff]
    %v2664 = vld [vmem:[#allocation13 + $0x8] sm:$0xff]
    %v2665 = vld [vmem:[#allocation13 + $0x10] sm:$0xff]
    %v2666 = vld [vmem:[#allocation13 + $0x18] sm:$0xff]
    %v2667 = vld [vmem:[#allocation13 + $0x20] sm:$0xff]
    %v2668 = vld [vmem:[#allocation13 + $0x28] sm:$0xff]
    %v2669 = vld [vmem:[#allocation13 + $0x30] sm:$0xff]
    %v2670 = vld [vmem:[#allocation13 + $0x38] sm:$0xff]
    %v2671 = vld [vmem:[#allocation13 + $0x40] sm:$0xff]
    %v2672 = vld [vmem:[#allocation13 + $0x48] sm:$0xff]
    %v2673 = vld [vmem:[#allocation13 + $0x50] sm:$0xff]
    %v2674 = vld [vmem:[#allocation13 + $0x58] sm:$0xff]
    %v2675 = vld [vmem:[#allocation13 + $0x60] sm:$0xff]
    %v2676 = vld [vmem:[#allocation13 + $0x68] sm:$0xff]
    %v2677 = vld [vmem:[#allocation13 + $0x70] sm:$0xff]
    %v2678 = vld [vmem:[#allocation13 + $0x78] sm:$0xff]
    %v2695 = vunpack.c.l.b16 %v2663
    %v2696 = vunpack.c.h.b16 %v2663
    %v2697 = vunpack.c.l.b16 %v2664
    %v2698 = vunpack.c.h.b16 %v2664
    %v2699 = vunpack.c.l.b16 %v2665
    %v2700 = vunpack.c.h.b16 %v2665
    %v2701 = vunpack.c.l.b16 %v2666
    %v2702 = vunpack.c.h.b16 %v2666
    %v2703 = vunpack.c.l.b16 %v2667
    %v2704 = vunpack.c.h.b16 %v2667
    %v2705 = vunpack.c.l.b16 %v2668
    %v2706 = vunpack.c.h.b16 %v2668
    %v2707 = vunpack.c.l.b16 %v2669
    %v2708 = vunpack.c.h.b16 %v2669
    %v2709 = vunpack.c.l.b16 %v2670
    %v2710 = vunpack.c.h.b16 %v2670
    %v2711 = vunpack.c.l.b16 %v2671
    %v2712 = vunpack.c.h.b16 %v2671
    %v2713 = vunpack.c.l.b16 %v2672
    %v2714 = vunpack.c.h.b16 %v2672
    %v2715 = vunpack.c.l.b16 %v2673
    %v2716 = vunpack.c.h.b16 %v2673
    %v2717 = vunpack.c.l.b16 %v2674
    %v2718 = vunpack.c.h.b16 %v2674
    %v2719 = vunpack.c.l.b16 %v2675
    %v2720 = vunpack.c.h.b16 %v2675
    %v2721 = vunpack.c.l.b16 %v2676
    %v2722 = vunpack.c.h.b16 %v2676
    %v2723 = vunpack.c.l.b16 %v2677
    %v2724 = vunpack.c.h.b16 %v2677
    %v2725 = vunpack.c.l.b16 %v2678
    %v2726 = vunpack.c.h.b16 %v2678
    %v2727 = vpack.c.b16 %v2697, %v2695
    %v2728 = vpack.c.b16 %v2698, %v2696
    %v2729 = vpack.c.b16 %v2701, %v2699
    %v2730 = vpack.c.b16 %v2702, %v2700
    %v2731 = vpack.c.b16 %v2705, %v2703
    %v2732 = vpack.c.b16 %v2706, %v2704
    %v2733 = vpack.c.b16 %v2709, %v2707
    %v2734 = vpack.c.b16 %v2710, %v2708
    %v2735 = vpack.c.b16 %v2713, %v2711
    %v2736 = vpack.c.b16 %v2714, %v2712
    %v2737 = vpack.c.b16 %v2717, %v2715
    %v2738 = vpack.c.b16 %v2718, %v2716
    %v2739 = vpack.c.b16 %v2721, %v2719
    %v2740 = vpack.c.b16 %v2722, %v2720
    %v2741 = vpack.c.b16 %v2725, %v2723
    %v2742 = vpack.c.b16 %v2726, %v2724
    %2759 = vmatpush.bf16.msra.mxu0 %v2741
    %2760 = vmatpush.bf16.msra.mxu0 %v2739
    %2761 = vmatpush.bf16.msra.mxu0 %v2737
    %2762 = vmatpush.bf16.msra.mxu0 %v2735
    %2763 = vmatpush.bf16.msra.mxu0 %v2733
    %2764 = vmatpush.bf16.msra.mxu0 %v2731
    %2765 = vmatpush.bf16.msra.mxu0 %v2729
    %2766 = vmatpush.bf16.msra.mxu0 %v2727
    %2767 = vmatmul.bf16.gmra.mxu0 %v2662
    %v2768 = vpop.f32.mrf.mxu0
    %v2769 = vadd.f32 0.0, %v2768
    %v2770 = vpop.f32.mrf.mxu0
    %v2771 = vadd.f32 0.0, %v2770
    %2772 = vdwg.mxu0
    %2773 = vmatpush.bf16.msra.mxu0 %v2742
    %2774 = vmatpush.bf16.msra.mxu0 %v2740
    %2775 = vmatpush.bf16.msra.mxu0 %v2738
    %2776 = vmatpush.bf16.msra.mxu0 %v2736
    %2777 = vmatpush.bf16.msra.mxu0 %v2734
    %2778 = vmatpush.bf16.msra.mxu0 %v2732
    %2779 = vmatpush.bf16.msra.mxu0 %v2730
    %2780 = vmatpush.bf16.msra.mxu0 %v2728
    %2781 = vmatmul.bf16.gmra.mxu0 %v2662
    %v2782 = vpop.f32.mrf.mxu0
    %v2783 = vadd.f32 0.0, %v2782
    %v2784 = vpop.f32.mrf.mxu0
    %v2785 = vadd.f32 0.0, %v2784
    %2786 = vdwg.mxu0
    %2787 = vst [vmem:[#allocation14] sm:$0xff] %v2769
    %2788 = vst [vmem:[#allocation14 + $0x8] sm:$0xff] %v2783
    %2789 = vst [vmem:[#allocation14 + $0x10] sm:$0xff] %v2771
    %2790 = vst [vmem:[#allocation14 + $0x18] sm:$0xff] %v2785
    // Predicated region
    $region90: #{advanced_model_forward.1} parent=1 // pred_check
      _
    $region91: #{advanced_model_forward.1} parent=1 // pred_check_branch
      %2792 = sbr.rel (0) target = $region93
    $region92: #{advanced_model_forward.1} parent=1 // pred_region
      %2794 = vsyncadd [#allocation4], 0
      %s2795 = sshll.u32 [#allocation14], 4
      %s2796 = int_to_ptr.vmem [resolvable:$true] %s2795
      %s2797 = sshll.u32 %s15, 4
      %s2798 = int_to_ptr.hbm [resolvable:$true] %s2797
      %2803 = dma.vmem_to_hbm [thread:$0]  %s2796, 512, %s2798, [#allocation4], 256, 256, 16
    $region93: #{advanced_model_forward.1} parent=1 // pred_fallthru
      _
    // Predicated region
    $region94: #{advanced_model_forward.1} parent=1 // pred_check
      _
    $region95: #{advanced_model_forward.1} parent=1 // pred_check_branch
      %2805 = sbr.rel (0) target = $region97
    $region96: #{advanced_model_forward.1} parent=1 // pred_region
      %2807 = dma.done [#allocation4], 512
    $region97: #{advanced_model_forward.1} parent=1 // pred_fallthru
      _
    %2808 = vsyncpa [#allocation3], 1
    %2809 = vsyncpa [#allocation6], 1
    %2810 = vsyncpa [#allocation9], 1
    %2811 = vsyncpa [#allocation12], 1
    %2812 = vsyncpa [#allocation4], 1

</llo_original>
